<compile_context>
chip_gen: v7x
topology: tpu7x:2x2x1
jax: 0.10.0
libtpu: 0.0.40
codegen_flags: <defaults>
</compile_context>

<pallas_src>
import functools

import jax
import jax.numpy as jnp
import numpy as np
from jax.experimental import pallas as pl
from jax.experimental.pallas import tpu as pltpu

ROW_ALIGN = 16  # sublane granule safe for both f32 (8) and 2-byte (16) row tiles


def _round_up(x, m):
    return ((x + m - 1) // m) * m


def _cdiv(a, b):
    return -(-a // b)


def _device_kind():
    try:
        return jax.devices()[0].device_kind.lower()
    except Exception:
        return ""


def _is_multi_tensorcore(kind):
    # v5e / v6e expose a single TensorCore per chip; v4 / v5p / v7x expose two.
    if ("v5e" in kind) or ("lite" in kind) or ("v6" in kind):
        return False
    return any(tag in kind for tag in ("v4", "v5", "v7"))


def _physical_vmem_bytes(kind):
    try:
        cap = int(getattr(pltpu.get_tpu_info(), "vmem_capacity_bytes", 0) or 0)
        if cap > 0:
            return cap
    except Exception:
        pass
    return (64 << 20) if "v7" in kind else (128 << 20)


# ----------------------------- Pallas kernel ---------------------------------


def _mlp_skip_kernel(layer_plan, skip_dim, compute_dtype,
                     x_ref, z_ref, w_ref, b_ref, o_ref):
    """Runs the whole MLP for one tile of rows.

    layer_plan: static tuple of (is_skip, w_row_offset, k_y) per layer.
    w_ref: (sum_in, hidden) packed transposed weights in `compute_dtype`.
    b_ref: (n_layers, hidden) biases, float32.
    Matmul operands are `compute_dtype`; accumulation / bias / ReLU are f32.
    """
    n_layers = len(layer_plan)
    y = x_ref[...].astype(compute_dtype)
    z = None
    for li, (is_skip, off, k_y) in enumerate(layer_plan):
        # Static ref slices of the packed weight buffer are free views.
        acc = jnp.dot(y, w_ref[off:off + k_y, :], preferred_element_type=jnp.float32)
        if is_skip:
            if z is None:
                z = z_ref[...].astype(compute_dtype)
            # torch.cat((y, z), -1) @ W.T  ==  y @ Wy.T + z @ Wz.T  (split weights)
            # TODO(synk): merge into one K=(hidden+skip) dot once in-kernel lane-concat
            # of (TM,hidden)|(TM,skip) is verified to lower cleanly on all targets.
            acc = acc + jnp.dot(z, w_ref[off + k_y:off + k_y + skip_dim, :],
                                preferred_element_type=jnp.float32)
        act = jnp.maximum(acc + b_ref[li:li + 1, :].astype(jnp.float32), 0.0)
        if li + 1 < n_layers:
            # carry activations in the compute dtype (ReLU fused with the downcast)
            y = act.astype(compute_dtype)
        else:
            # TODO(synk): lane-dense output packing ((TM,64)->(TM/2,128) fold) once
            # Mosaic's lane-merging reshape is confirmed on the target jaxlib.
            o_ref[...] = act.astype(o_ref.dtype)


# ----------------------- parameter packing (done once) ------------------------


def pack_params(ref_params, input_skips, skip_dim, hidden_dim,
                compute_dtype=jnp.bfloat16):
    """Pack per-layer (W[out,in], b[out]) into two flat kernel buffers.

    Weights are transposed to (in, out) and concatenated along rows; skip layers are
    stored as the two row blocks [Wy ; Wz]. Casting to the streaming dtype happens
    here, once, not per forward call.
    """
    input_skips = set(input_skips)
    assert 0 not in input_skips, "layer 0 cannot be a skip layer (matches the module)"
    w_blocks, b_rows, plan = [], [], []
    off = 0
    for li, (w, b) in enumerate(ref_params):
        assert w.shape[0] == hidden_dim
        wt = jnp.asarray(w).T.astype(compute_dtype)          # (in, hidden)
        is_skip = li in input_skips
        k_y = int(wt.shape[0]) - (skip_dim if is_skip else 0)
        plan.append((bool(is_skip), int(off), int(k_y)))
        w_blocks.append(wt)
        b_rows.append(jnp.asarray(b, jnp.float32).reshape(1, hidden_dim))
        off += int(wt.shape[0])
    # TODO(synk): for huge configs, single-buffer these constant inputs
    # (pl.Buffered(1)) or DMA them once into VMEM scratch.
    return {
        "w_all": jnp.concatenate(w_blocks, axis=0),
        "b_all": jnp.concatenate(b_rows, axis=0),
        "plan": tuple(plan),
        "hidden_dim": int(hidden_dim),
        "skip_dim": int(skip_dim),
        "compute_dtype": compute_dtype,
    }


# ----------------------------- Python wrapper ---------------------------------


def mlp_with_input_skips(x, z, packed, *, tile_rows=4096, out_dtype=None):
    """x: (..., input_dim), z: (..., skip_dim) -> (..., hidden_dim)."""
    lead_shape = x.shape[:-1]
    input_dim = x.shape[-1]
    hidden_dim = packed["hidden_dim"]
    skip_dim = packed["skip_dim"]
    compute_dtype = packed["compute_dtype"]
    w_all, b_all, plan = packed["w_all"], packed["b_all"], packed["plan"]
    assert z.shape[:-1] == lead_shape and z.shape[-1] == skip_dim
    if out_dtype is None:
        out_dtype = x.dtype

    # Stream activations in their native dtype; cast to the matmul dtype inside the
    # kernel (no extra wrapper-side HBM read+write passes). For best HBM traffic the
    # producer should already emit bf16.
    x2 = x.reshape(-1, input_dim)
    z2 = z.reshape(-1, skip_dim)
    n_rows = x2.shape[0]

    kind = _device_kind()
    multi_tc = _is_multi_tensorcore(kind)
    vmem_budget = (_physical_vmem_bytes(kind) * 3) // 4   # ~25% headroom for compiler scratch

    # ----- row tiling: one big tile per step, clamped by rows and VMEM budget -----
    max_tile = (n_rows // ROW_ALIGN) * ROW_ALIGN if n_rows >= ROW_ALIGN else ROW_ALIGN
    tile_rows = max(ROW_ALIGN, min(_round_up(int(tile_rows), ROW_ALIGN), max_tile))

    x_b = x2.dtype.itemsize
    z_b = z2.dtype.itemsize
    o_b = jnp.dtype(out_dtype).itemsize
    param_bytes = (w_all.size * w_all.dtype.itemsize + b_all.size * b_all.dtype.itemsize)

    def tile_need(tm):
        act = tm * (input_dim * x_b + skip_dim * z_b)
        out = tm * hidden_dim * o_b
        tmp = 3 * tm * max(hidden_dim, input_dim, skip_dim) * 4  # f32 acc/cast temporaries
        return 2 * (act + out) + 2 * param_bytes + tmp

    while tile_rows > ROW_ALIGN and tile_need(tile_rows) > vmem_budget:
        tile_rows = max(ROW_ALIGN, _round_up(tile_rows // 2, ROW_ALIGN))

    n_steps = _cdiv(n_rows, tile_rows)
    # 2-TensorCore chips (v4 / v5p / v7x): give each core >= 2 grid steps. On
    # single-core v5e / v6e a forced split is pure per-step overhead, so skip it.
    if multi_tc and n_steps < 4 and n_rows >= 4 * ROW_ALIGN:
        tile_rows = max(ROW_ALIGN, _round_up(_cdiv(n_rows, 4), ROW_ALIGN))
        n_steps = _cdiv(n_rows, tile_rows)

    vmem_limit = int(min(vmem_budget, max(2 * tile_need(tile_rows), 32 << 20)))

    kernel = functools.partial(_mlp_skip_kernel, plan, skip_dim, compute_dtype)

    out2 = pl.pallas_call(
        kernel,
        out_shape=jax.ShapeDtypeStruct((n_rows, hidden_dim), out_dtype),
        grid_spec=pltpu.PrefetchScalarGridSpec(
            num_scalar_prefetch=0,
            grid=(n_steps,),
            in_specs=[
                pl.BlockSpec((tile_rows, input_dim), lambda i: (i, 0)),
                pl.BlockSpec((tile_rows, skip_dim), lambda i: (i, 0)),
                # constant block index -> packed params fetched once, stay resident
                pl.BlockSpec(w_all.shape, lambda i: (0, 0)),
                pl.BlockSpec(b_all.shape, lambda i: (0, 0)),
            ],
            out_specs=pl.BlockSpec((tile_rows, hidden_dim), lambda i: (i, 0)),
        ),
        compiler_params=pltpu.CompilerParams(
            dimension_semantics=("parallel",),
            vmem_limit_bytes=vmem_limit,
        ),
    )(x2, z2, w_all, b_all)
    # TODO(synk): on v7x, optionally stream weights/activations as fp8 (e4m3) with f32
    # accumulation behind an accuracy check.

    return out2.reshape(*lead_shape, hidden_dim)


# --------------------- deterministic parameter construction -------------------


def init_params(key, n_layers, input_dim, skip_dim, hidden_dim, input_skips):
    """Per-layer (W[out,in], b[out]) with PyTorch nn.Linear-style uniform init, f32."""
    input_skips = set(input_skips)
    ref_params = []
    for li in range(n_layers):
        if li == 0:
            dimin = input_dim
        elif li in input_skips:
            dimin = hidden_dim + skip_dim
        else:
            dimin = hidden_dim
        dimout = hidden_dim
        key, kw, kb = jax.random.split(key, 3)
        bound = 1.0 / np.sqrt(dimin)
        w = jax.random.uniform(kw, (dimout, dimin), jnp.float32, -bound, bound)
        b = jax.random.uniform(kb, (dimout,), jnp.float32, -bound, bound)
        ref_params.append((w, b))
    return ref_params


def reference_forward(x, z, ref_params, input_skips):
    """Pure-JAX replica of the PyTorch forward pass for verification."""
    input_skips = set(input_skips)
    y = x
    for li, (w, b) in enumerate(ref_params):
        if li in input_skips:
            y = jnp.concatenate((y, z), axis=-1)
        y = jnp.maximum(jnp.einsum("...i,oi->...o", y, w) + b, 0.0)
    return y


# ----------------------------------- main --------------------------------------


if __name__ == "__main__":
    n_layers = 4
    input_dim = 32
    output_dim = 64   # unused by the module's layer construction (mirrors PyTorch)
    skip_dim = 32
    hidden_dim = 64
    input_skips = (2,)

    key = jax.random.PRNGKey(0)
    key, kx, kz = jax.random.split(key, 3)
    x = jax.random.normal(kx, (2, 256, input_dim), jnp.float32)   # (..., input_dim)
    z = jax.random.normal(kz, (2, 256, skip_dim), jnp.float32)    # (..., skip_dim)

    ref_params = init_params(key, n_layers, input_dim, skip_dim, hidden_dim, input_skips)
    ref = reference_forward(x, z, ref_params, input_skips)

    # 1) f32 matmul path: structural check against the pure-JAX reference.
    packed_f32 = pack_params(ref_params, input_skips, skip_dim, hidden_dim, jnp.float32)
    out_f32 = jax.block_until_ready(mlp_with_input_skips(x, z, packed_f32))
    np.testing.assert_allclose(np.asarray(out_f32), np.asarray(ref), rtol=1e-5, atol=1e-5)

    # 2) production path: bf16 matmul operands + bf16-carried intermediates, f32
    #    accumulation -> relaxed tolerance vs the f32 reference (expected, not a bug).
    packed_bf16 = pack_params(ref_params, input_skips, skip_dim, hidden_dim, jnp.bfloat16)
    out_bf16 = jax.block_until_ready(mlp_with_input_skips(x, z, packed_bf16))
    np.testing.assert_allclose(np.asarray(out_bf16), np.asarray(ref), rtol=5e-2, atol=5e-2)

    # 3) ragged row count (not a multiple of the tile) -> exercises Pallas's partial
    #    last block (no wrapper-side padding pass), multi-step grid.
    xr = x.reshape(-1, input_dim)[:489]
    zr = z.reshape(-1, skip_dim)[:489]
    refr = reference_forward(xr, zr, ref_params, input_skips)
    outr = jax.block_until_ready(mlp_with_input_skips(xr, zr, packed_f32, tile_rows=256))
    np.testing.assert_allclose(np.asarray(outr), np.asarray(refr), rtol=1e-5, atol=1e-5)

    print("KERNEL_OK")
</pallas_src>

<mosaic_0001>
module attributes {stable_mosaic.version = 11 : i64} {
  func.func @_mlp_skip_kernel(%arg0: i32, %arg1: memref<512x32xf32, #tpu.memory_space<vmem>>, %arg2: memref<512x32xf32, #tpu.memory_space<vmem>>, %arg3: memref<256x64xf32, #tpu.memory_space<vmem>>, %arg4: memref<4x64xf32, #tpu.memory_space<vmem>>, %arg5: memref<512x64xf32, #tpu.memory_space<vmem>>) attributes {dimension_semantics = [#tpu.dimension_semantics<parallel>], iteration_bounds = array<i64: 1>, scalar_prefetch = 0 : i64, scratch_operands = 0 : i64, tpu.core_type = #tpu.core_type<tc>, window_params = [{transform_indices = @transform_0, window_bounds = array<i64: 512, 32>}, {transform_indices = @transform_1, window_bounds = array<i64: 512, 32>}, {pipeline_mode = #tpu.pipeline_mode<synchronous>, transform_indices = @transform_2, window_bounds = array<i64: 256, 64>}, {pipeline_mode = #tpu.pipeline_mode<synchronous>, transform_indices = @transform_3, window_bounds = array<i64: 4, 64>}, {transform_indices = @transform_4, window_bounds = array<i64: 512, 64>}]} {
    %c0 = arith.constant 0 : index
    %c0_0 = arith.constant 0 : index
    %0 = vector.load %arg1[%c0, %c0_0] : memref<512x32xf32, #tpu.memory_space<vmem>>, vector<512x32xf32>
    %c0_1 = arith.constant 0 : index
    %c0_2 = arith.constant 0 : index
    %1 = vector.load %arg3[%c0_1, %c0_2] : memref<256x64xf32, #tpu.memory_space<vmem>>, vector<32x64xf32>
    %cst = arith.constant dense<0.000000e+00> : vector<512x64xf32>
    %2 = tpu.matmul %0, %1, %cst {dimension_numbers = #tpu.dot_dimension_numbers<[1], [0], [0], [1], [0, 0, 1, 1], [], []>} : vector<512x32xf32>, vector<32x64xf32>, vector<512x64xf32> -> vector<512x64xf32>
    %c0_3 = arith.constant 0 : index
    %c0_4 = arith.constant 0 : index
    %3 = vector.load %arg4[%c0_3, %c0_4] : memref<4x64xf32, #tpu.memory_space<vmem>>, vector<1x64xf32>
    %4 = vector.broadcast %3 : vector<1x64xf32> to vector<512x64xf32>
    %5 = arith.addf %2, %4 : vector<512x64xf32>
    %cst_5 = arith.constant 0.000000e+00 : f32
    %6 = vector.broadcast %cst_5 : f32 to vector<512x64xf32>
    %7 = arith.maximumf %5, %6 : vector<512x64xf32>
    %c32 = arith.constant 32 : index
    %c0_6 = arith.constant 0 : index
    %8 = vector.load %arg3[%c32, %c0_6] : memref<256x64xf32, #tpu.memory_space<vmem>>, vector<64x64xf32>
    %cst_7 = arith.constant dense<0.000000e+00> : vector<512x64xf32>
    %9 = tpu.matmul %7, %8, %cst_7 {dimension_numbers = #tpu.dot_dimension_numbers<[1], [0], [0], [1], [0, 0, 1, 1], [], []>} : vector<512x64xf32>, vector<64x64xf32>, vector<512x64xf32> -> vector<512x64xf32>
    %c1 = arith.constant 1 : index
    %c0_8 = arith.constant 0 : index
    %10 = vector.load %arg4[%c1, %c0_8] : memref<4x64xf32, #tpu.memory_space<vmem>>, vector<1x64xf32>
    %11 = vector.broadcast %10 : vector<1x64xf32> to vector<512x64xf32>
    %12 = arith.addf %9, %11 : vector<512x64xf32>
    %cst_9 = arith.constant 0.000000e+00 : f32
    %13 = vector.broadcast %cst_9 : f32 to vector<512x64xf32>
    %14 = arith.maximumf %12, %13 : vector<512x64xf32>
    %c96 = arith.constant 96 : index
    %c0_10 = arith.constant 0 : index
    %15 = vector.load %arg3[%c96, %c0_10] : memref<256x64xf32, #tpu.memory_space<vmem>>, vector<64x64xf32>
    %cst_11 = arith.constant dense<0.000000e+00> : vector<512x64xf32>
    %16 = tpu.matmul %14, %15, %cst_11 {dimension_numbers = #tpu.dot_dimension_numbers<[1], [0], [0], [1], [0, 0, 1, 1], [], []>} : vector<512x64xf32>, vector<64x64xf32>, vector<512x64xf32> -> vector<512x64xf32>
    %c0_12 = arith.constant 0 : index
    %c0_13 = arith.constant 0 : index
    %17 = vector.load %arg2[%c0_12, %c0_13] : memref<512x32xf32, #tpu.memory_space<vmem>>, vector<512x32xf32>
    %c160 = arith.constant 160 : index
    %c0_14 = arith.constant 0 : index
    %18 = vector.load %arg3[%c160, %c0_14] : memref<256x64xf32, #tpu.memory_space<vmem>>, vector<32x64xf32>
    %cst_15 = arith.constant dense<0.000000e+00> : vector<512x64xf32>
    %19 = tpu.matmul %17, %18, %cst_15 {dimension_numbers = #tpu.dot_dimension_numbers<[1], [0], [0], [1], [0, 0, 1, 1], [], []>} : vector<512x32xf32>, vector<32x64xf32>, vector<512x64xf32> -> vector<512x64xf32>
    %20 = arith.addf %16, %19 : vector<512x64xf32>
    %c2 = arith.constant 2 : index
    %c0_16 = arith.constant 0 : index
    %21 = vector.load %arg4[%c2, %c0_16] : memref<4x64xf32, #tpu.memory_space<vmem>>, vector<1x64xf32>
    %22 = vector.broadcast %21 : vector<1x64xf32> to vector<512x64xf32>
    %23 = arith.addf %20, %22 : vector<512x64xf32>
    %cst_17 = arith.constant 0.000000e+00 : f32
    %24 = vector.broadcast %cst_17 : f32 to vector<512x64xf32>
    %25 = arith.maximumf %23, %24 : vector<512x64xf32>
    %c192 = arith.constant 192 : index
    %c0_18 = arith.constant 0 : index
    %26 = vector.load %arg3[%c192, %c0_18] : memref<256x64xf32, #tpu.memory_space<vmem>>, vector<64x64xf32>
    %cst_19 = arith.constant dense<0.000000e+00> : vector<512x64xf32>
    %27 = tpu.matmul %25, %26, %cst_19 {dimension_numbers = #tpu.dot_dimension_numbers<[1], [0], [0], [1], [0, 0, 1, 1], [], []>} : vector<512x64xf32>, vector<64x64xf32>, vector<512x64xf32> -> vector<512x64xf32>
    %c3 = arith.constant 3 : index
    %c0_20 = arith.constant 0 : index
    %28 = vector.load %arg4[%c3, %c0_20] : memref<4x64xf32, #tpu.memory_space<vmem>>, vector<1x64xf32>
    %29 = vector.broadcast %28 : vector<1x64xf32> to vector<512x64xf32>
    %30 = arith.addf %27, %29 : vector<512x64xf32>
    %cst_21 = arith.constant 0.000000e+00 : f32
    %31 = vector.broadcast %cst_21 : f32 to vector<512x64xf32>
    %32 = arith.maximumf %30, %31 : vector<512x64xf32>
    %c0_22 = arith.constant 0 : index
    %c0_23 = arith.constant 0 : index
    %33 = vector.load %arg5[%c0_22, %c0_23] : memref<512x64xf32, #tpu.memory_space<vmem>>, vector<512x64xf32>
    tpu.vector_store %arg5[%c0_22, %c0_23], %32 {strides = array<i32>} : memref<512x64xf32, #tpu.memory_space<vmem>>, vector<512x64xf32>,
    return
  }
  func.func @transform_0(%arg0: i32) -> (i32, i32) {
    %c0_i32 = arith.constant 0 : i32
    %c0_i32_0 = arith.constant 0 : i32
    return %arg0, %c0_i32 : i32, i32
  }
  func.func @transform_1(%arg0: i32) -> (i32, i32) {
    %c0_i32 = arith.constant 0 : i32
    %c0_i32_0 = arith.constant 0 : i32
    return %arg0, %c0_i32 : i32, i32
  }
  func.func @transform_2(%arg0: i32) -> (i32, i32) {
    %c0_i32 = arith.constant 0 : i32
    %c0_i32_0 = arith.constant 0 : i32
    %c0_i32_1 = arith.constant 0 : i32
    return %c0_i32, %c0_i32_0 : i32, i32
  }
  func.func @transform_3(%arg0: i32) -> (i32, i32) {
    %c0_i32 = arith.constant 0 : i32
    %c0_i32_0 = arith.constant 0 : i32
    %c0_i32_1 = arith.constant 0 : i32
    return %c0_i32, %c0_i32_0 : i32, i32
  }
  func.func @transform_4(%arg0: i32) -> (i32, i32) {
    %c0_i32 = arith.constant 0 : i32
    %c0_i32_0 = arith.constant 0 : i32
    return %arg0, %c0_i32 : i32, i32
  }
}

</mosaic_0001>

<llo_original>
// kernel: tpu_custom_call.1
$region0: #{tpu_custom_call.1}
  #allocation0 [shape = 'u32[]', space=smem, size = 0x4, offset = 0x4, fixed_abs, tag = 'smem constant byte address 0x4 - core index']
  #allocation1 [shape = 'u32[144,128]{1,0:T(1,128)}', space=vmem, size = 0x12000, scoped, tag = 'internal scratch']
  %s0 = inlined_call_operand.vmem [shape: f32[512,32], index: 0, kind: input, shape index: {}]
  %s1 = inlined_call_operand.vmem [shape: f32[512,32], index: 1, kind: input, shape index: {}]
  %s2 = inlined_call_operand.vmem [shape: f32[256,64], index: 2, kind: input, shape index: {}]
  %s3 = inlined_call_operand.vmem [shape: f32[4,64], index: 3, kind: input, shape index: {}]
  %s4 = inlined_call_operand.vmem [shape: f32[512,64], index: 4, kind: output, shape index: {}]
  %s5 = sld [smem:[#allocation0]]
  $region26: #{tpu_custom_call.1} parent=0
    _
  %s7 = ssub.s32 1, %s5
  %s8 = scalar_select 0, %s7, %s5
  // Predicated region
  $region2: #{tpu_custom_call.1} parent=0 // pred_check
    _
  $region3: #{tpu_custom_call.1} parent=0 // pred_check_branch
    %10 = sbr.rel (0) target = $region5
  $region4: #{tpu_custom_call.1} parent=0 // pred_region
    _
  $region5: #{tpu_custom_call.1} parent=0 // pred_fallthru
    _
  // Predicated region
  $region6: #{tpu_custom_call.1} parent=0 // pred_check
    _
  $region7: #{tpu_custom_call.1} parent=0 // pred_check_branch
    %12 = sbr.rel (0) target = $region9
  $region8: #{tpu_custom_call.1} parent=0 // pred_region
    _
  $region9: #{tpu_custom_call.1} parent=0 // pred_fallthru
    _
  // Predicated region
  $region10: #{tpu_custom_call.1} parent=0 // pred_check
    _
  $region11: #{tpu_custom_call.1} parent=0 // pred_check_branch
    %14 = sbr.rel (0) target = $region13
  $region12: #{tpu_custom_call.1} parent=0 // pred_region
    _
  $region13: #{tpu_custom_call.1} parent=0 // pred_fallthru
    _
  // Predicated region
  $region14: #{tpu_custom_call.1} parent=0 // pred_check
    _
  $region15: #{tpu_custom_call.1} parent=0 // pred_check_branch
    %16 = sbr.rel (0) target = $region17
  $region16: #{tpu_custom_call.1} parent=0 // pred_region
    _
  $region17: #{tpu_custom_call.1} parent=0 // pred_fallthru
    _
  %v17 = vld [vmem:[%s0] sm:$0xff]
  %v18 = vld [vmem:[%s0 + $0x8] sm:$0xff]
  %v19 = vld [vmem:[%s0 + $0x10] sm:$0xff]
  %v20 = vld [vmem:[%s0 + $0x18] sm:$0xff]
  %v21 = vld [vmem:[%s0 + $0x20] sm:$0xff]
  %v22 = vld [vmem:[%s0 + $0x28] sm:$0xff]
  %v23 = vld [vmem:[%s0 + $0x30] sm:$0xff]
  %v24 = vld [vmem:[%s0 + $0x38] sm:$0xff]
  %v25 = vld [vmem:[%s0 + $0x40] sm:$0xff]
  %v26 = vld [vmem:[%s0 + $0x48] sm:$0xff]
  %v27 = vld [vmem:[%s0 + $0x50] sm:$0xff]
  %v28 = vld [vmem:[%s0 + $0x58] sm:$0xff]
  %v29 = vld [vmem:[%s0 + $0x60] sm:$0xff]
  %v30 = vld [vmem:[%s0 + $0x68] sm:$0xff]
  %v31 = vld [vmem:[%s0 + $0x70] sm:$0xff]
  %v32 = vld [vmem:[%s0 + $0x78] sm:$0xff]
  %v33 = vld [vmem:[%s0 + $0x80] sm:$0xff]
  %v34 = vld [vmem:[%s0 + $0x88] sm:$0xff]
  %v35 = vld [vmem:[%s0 + $0x90] sm:$0xff]
  %v36 = vld [vmem:[%s0 + $0x98] sm:$0xff]
  %v37 = vld [vmem:[%s0 + $0xa0] sm:$0xff]
  %v38 = vld [vmem:[%s0 + $0xa8] sm:$0xff]
  %v39 = vld [vmem:[%s0 + $0xb0] sm:$0xff]
  %v40 = vld [vmem:[%s0 + $0xb8] sm:$0xff]
  %v41 = vld [vmem:[%s0 + $0xc0] sm:$0xff]
  %v42 = vld [vmem:[%s0 + $0xc8] sm:$0xff]
  %v43 = vld [vmem:[%s0 + $0xd0] sm:$0xff]
  %v44 = vld [vmem:[%s0 + $0xd8] sm:$0xff]
  %v45 = vld [vmem:[%s0 + $0xe0] sm:$0xff]
  %v46 = vld [vmem:[%s0 + $0xe8] sm:$0xff]
  %v47 = vld [vmem:[%s0 + $0xf0] sm:$0xff]
  %v48 = vld [vmem:[%s0 + $0xf8] sm:$0xff]
  %v49 = vld [vmem:[%s0 + $0x100] sm:$0xff]
  %v50 = vld [vmem:[%s0 + $0x108] sm:$0xff]
  %v51 = vld [vmem:[%s0 + $0x110] sm:$0xff]
  %v52 = vld [vmem:[%s0 + $0x118] sm:$0xff]
  %v53 = vld [vmem:[%s0 + $0x120] sm:$0xff]
  %v54 = vld [vmem:[%s0 + $0x128] sm:$0xff]
  %v55 = vld [vmem:[%s0 + $0x130] sm:$0xff]
  %v56 = vld [vmem:[%s0 + $0x138] sm:$0xff]
  %v57 = vld [vmem:[%s0 + $0x140] sm:$0xff]
  %v58 = vld [vmem:[%s0 + $0x148] sm:$0xff]
  %v59 = vld [vmem:[%s0 + $0x150] sm:$0xff]
  %v60 = vld [vmem:[%s0 + $0x158] sm:$0xff]
  %v61 = vld [vmem:[%s0 + $0x160] sm:$0xff]
  %v62 = vld [vmem:[%s0 + $0x168] sm:$0xff]
  %v63 = vld [vmem:[%s0 + $0x170] sm:$0xff]
  %v64 = vld [vmem:[%s0 + $0x178] sm:$0xff]
  %v65 = vld [vmem:[%s0 + $0x180] sm:$0xff]
  %v66 = vld [vmem:[%s0 + $0x188] sm:$0xff]
  %v67 = vld [vmem:[%s0 + $0x190] sm:$0xff]
  %v68 = vld [vmem:[%s0 + $0x198] sm:$0xff]
  %v69 = vld [vmem:[%s0 + $0x1a0] sm:$0xff]
  %v70 = vld [vmem:[%s0 + $0x1a8] sm:$0xff]
  %v71 = vld [vmem:[%s0 + $0x1b0] sm:$0xff]
  %v72 = vld [vmem:[%s0 + $0x1b8] sm:$0xff]
  %v73 = vld [vmem:[%s0 + $0x1c0] sm:$0xff]
  %v74 = vld [vmem:[%s0 + $0x1c8] sm:$0xff]
  %v75 = vld [vmem:[%s0 + $0x1d0] sm:$0xff]
  %v76 = vld [vmem:[%s0 + $0x1d8] sm:$0xff]
  %v77 = vld [vmem:[%s0 + $0x1e0] sm:$0xff]
  %v78 = vld [vmem:[%s0 + $0x1e8] sm:$0xff]
  %v79 = vld [vmem:[%s0 + $0x1f0] sm:$0xff]
  %v80 = vld [vmem:[%s0 + $0x1f8] sm:$0xff]
  %v81 = vld [vmem:[%s2] sm:$0xff]
  %v82 = vld [vmem:[%s2 + $0x8] sm:$0xff]
  %v83 = vld [vmem:[%s2 + $0x10] sm:$0xff]
  %v84 = vld [vmem:[%s2 + $0x18] sm:$0xff]
  %v85 = vld [vmem:[%s3] sm:$0x1]
  %v86 = vlaneseq
  %v87 = vshrl.u32 %v86, 7
  %v88 = vsub.s32 0, %v87
  %v89 = vrot.slane %v85, %v88
  %vm90 = vcmask 261120
  %v92 = vsel %vm90, %v17, 0
  %v95 = vsel %vm90, %v18, 0
  %v98 = vsel %vm90, %v19, 0
  %v101 = vsel %vm90, %v20, 0
  %v104 = vsel %vm90, %v21, 0
  %v107 = vsel %vm90, %v22, 0
  %v110 = vsel %vm90, %v23, 0
  %v113 = vsel %vm90, %v24, 0
  %v116 = vsel %vm90, %v25, 0
  %v119 = vsel %vm90, %v26, 0
  %v122 = vsel %vm90, %v27, 0
  %v125 = vsel %vm90, %v28, 0
  %v128 = vsel %vm90, %v29, 0
  %v131 = vsel %vm90, %v30, 0
  %v134 = vsel %vm90, %v31, 0
  %v137 = vsel %vm90, %v32, 0
  %v140 = vsel %vm90, %v33, 0
  %v143 = vsel %vm90, %v34, 0
  %v146 = vsel %vm90, %v35, 0
  %v149 = vsel %vm90, %v36, 0
  %v152 = vsel %vm90, %v37, 0
  %v155 = vsel %vm90, %v38, 0
  %v158 = vsel %vm90, %v39, 0
  %v161 = vsel %vm90, %v40, 0
  %v164 = vsel %vm90, %v41, 0
  %v167 = vsel %vm90, %v42, 0
  %v170 = vsel %vm90, %v43, 0
  %v173 = vsel %vm90, %v44, 0
  %v176 = vsel %vm90, %v45, 0
  %v179 = vsel %vm90, %v46, 0
  %v182 = vsel %vm90, %v47, 0
  %v185 = vsel %vm90, %v48, 0
  %v188 = vsel %vm90, %v49, 0
  %v191 = vsel %vm90, %v50, 0
  %v194 = vsel %vm90, %v51, 0
  %v197 = vsel %vm90, %v52, 0
  %v200 = vsel %vm90, %v53, 0
  %v203 = vsel %vm90, %v54, 0
  %v206 = vsel %vm90, %v55, 0
  %v209 = vsel %vm90, %v56, 0
  %v212 = vsel %vm90, %v57, 0
  %v215 = vsel %vm90, %v58, 0
  %v218 = vsel %vm90, %v59, 0
  %v221 = vsel %vm90, %v60, 0
  %v224 = vsel %vm90, %v61, 0
  %v227 = vsel %vm90, %v62, 0
  %v230 = vsel %vm90, %v63, 0
  %v233 = vsel %vm90, %v64, 0
  %v236 = vsel %vm90, %v65, 0
  %v239 = vsel %vm90, %v66, 0
  %v242 = vsel %vm90, %v67, 0
  %v245 = vsel %vm90, %v68, 0
  %v248 = vsel %vm90, %v69, 0
  %v251 = vsel %vm90, %v70, 0
  %v254 = vsel %vm90, %v71, 0
  %v257 = vsel %vm90, %v72, 0
  %v260 = vsel %vm90, %v73, 0
  %v263 = vsel %vm90, %v74, 0
  %v266 = vsel %vm90, %v75, 0
  %v269 = vsel %vm90, %v76, 0
  %v272 = vsel %vm90, %v77, 0
  %v275 = vsel %vm90, %v78, 0
  %v278 = vsel %vm90, %v79, 0
  %v281 = vsel %vm90, %v80, 0
  %283 = vmatprep.subr.mxu0 0.0
  %284 = vmatpush1.msra.mxu0 %v81
  %285 = vmatprep.subr.mxu0 0.0
  %286 = vmatpush1.msra.mxu0 %v82
  %287 = vmatprep.subr.mxu0 0.0
  %288 = vmatpush1.msra.mxu0 %v83
  %289 = vmatprep.subr.mxu0 0.0
  %290 = vmatpush1.msra.mxu0 %v84
  %291 = vmatprep.subr.mxu0 0.0
  %292 = vmatpush1.msra.mxu0 0.0
  %293 = vmatprep.subr.mxu0 0.0
  %294 = vmatpush1.msra.mxu0 0.0
  %295 = vmatprep.subr.mxu0 0.0
  %296 = vmatpush1.msra.mxu0 0.0
  %297 = vmatprep.subr.mxu0 0.0
  %298 = vmatpush1.msra.mxu0 0.0
  %299 = vmatprep.subr.mxu0 0.0
  %300 = vmatpush1.msra.mxu0 0.0
  %301 = vmatprep.subr.mxu0 0.0
  %302 = vmatpush1.msra.mxu0 0.0
  %303 = vmatprep.subr.mxu0 0.0
  %304 = vmatpush1.msra.mxu0 0.0
  %305 = vmatprep.subr.mxu0 0.0
  %306 = vmatpush1.msra.mxu0 0.0
  %307 = vmatprep.subr.mxu0 0.0
  %308 = vmatpush1.msra.mxu0 0.0
  %309 = vmatprep.subr.mxu0 0.0
  %310 = vmatpush1.msra.mxu0 0.0
  %311 = vmatprep.subr.mxu0 0.0
  %312 = vmatpush1.msra.mxu0 0.0
  %313 = vmatprep.subr.mxu0 0.0
  %314 = vmatpush1.msra.mxu0 0.0
  %315 = vmatprep.subr.mxu0 0.0
  %316 = vmatpush1.msra.mxu0 0.0
  %317 = vmatprep.subr.mxu0 0.0
  %318 = vmatpush1.msra.mxu0 0.0
  %319 = vmatprep.subr.mxu0 0.0
  %320 = vmatpush1.msra.mxu0 0.0
  %321 = vmatprep.subr.mxu0 0.0
  %322 = vmatpush1.msra.mxu0 0.0
  %323 = vmatprep.subr.mxu0 0.0
  %324 = vmatpush1.msra.mxu0 0.0
  %325 = vmatprep.subr.mxu0 0.0
  %326 = vmatpush1.msra.mxu0 0.0
  %327 = vmatprep.subr.mxu0 0.0
  %328 = vmatpush1.msra.mxu0 0.0
  %329 = vmatprep.subr.mxu0 0.0
  %330 = vmatpush1.msra.mxu0 0.0
  %331 = vmatprep.subr.mxu0 0.0
  %332 = vmatpush1.msra.mxu0 0.0
  %333 = vmatprep.subr.mxu0 0.0
  %334 = vmatpush1.msra.mxu0 0.0
  %335 = vmatprep.subr.mxu0 0.0
  %336 = vmatpush1.msra.mxu0 0.0
  %337 = vmatprep.subr.mxu0 0.0
  %338 = vmatpush1.msra.mxu0 0.0
  %339 = vmatprep.subr.mxu0 0.0
  %340 = vmatpush1.msra.mxu0 0.0
  %341 = vmatprep.subr.mxu0 0.0
  %342 = vmatpush1.msra.mxu0 0.0
  %343 = vmatprep.subr.mxu0 0.0
  %344 = vmatpush1.msra.mxu0 0.0
  %345 = vmatprep.subr.mxu0 0.0
  %346 = vmatpush1.msra.mxu0 0.0
  %347 = vmatprep.mubr.f32.mxu0 0.0
  %348 = vmatmul.mubr.f32.gmra.mrb[0].mxu0 %v92
  %v349 = vpop.f32.mrb[0].mxu0
  %v350 = vadd.f32 %v89, %v349
  %v351 = vpop.f32.mrb[0].mxu0
  %352 = vmatprep.mubr.f32.mxu0 0.0
  %353 = vmatmul.mubr.f32.gmra.mrb[0].mxu0 %v95
  %v354 = vpop.f32.mrb[0].mxu0
  %v355 = vadd.f32 %v89, %v354
  %v356 = vpop.f32.mrb[0].mxu0
  %357 = vmatprep.mubr.f32.mxu0 0.0
  %358 = vmatmul.mubr.f32.gmra.mrb[0].mxu0 %v98
  %v359 = vpop.f32.mrb[0].mxu0
  %v360 = vadd.f32 %v89, %v359
  %v361 = vpop.f32.mrb[0].mxu0
  %362 = vmatprep.mubr.f32.mxu0 0.0
  %363 = vmatmul.mubr.f32.gmra.mrb[0].mxu0 %v101
  %v364 = vpop.f32.mrb[0].mxu0
  %v365 = vadd.f32 %v89, %v364
  %v366 = vpop.f32.mrb[0].mxu0
  %367 = vmatprep.mubr.f32.mxu0 0.0
  %368 = vmatmul.mubr.f32.gmra.mrb[0].mxu0 %v104
  %v369 = vpop.f32.mrb[0].mxu0
  %v370 = vadd.f32 %v89, %v369
  %v371 = vpop.f32.mrb[0].mxu0
  %372 = vmatprep.mubr.f32.mxu0 0.0
  %373 = vmatmul.mubr.f32.gmra.mrb[0].mxu0 %v107
  %v374 = vpop.f32.mrb[0].mxu0
  %v375 = vadd.f32 %v89, %v374
  %v376 = vpop.f32.mrb[0].mxu0
  %377 = vmatprep.mubr.f32.mxu0 0.0
  %378 = vmatmul.mubr.f32.gmra.mrb[0].mxu0 %v110
  %v379 = vpop.f32.mrb[0].mxu0
  %v380 = vadd.f32 %v89, %v379
  %v381 = vpop.f32.mrb[0].mxu0
  %382 = vmatprep.mubr.f32.mxu0 0.0
  %383 = vmatmul.mubr.f32.gmra.mrb[0].mxu0 %v113
  %v384 = vpop.f32.mrb[0].mxu0
  %v385 = vadd.f32 %v89, %v384
  %v386 = vpop.f32.mrb[0].mxu0
  %387 = vmatprep.mubr.f32.mxu0 0.0
  %388 = vmatmul.mubr.f32.gmra.mrb[0].mxu0 %v116
  %v389 = vpop.f32.mrb[0].mxu0
  %v390 = vadd.f32 %v89, %v389
  %v391 = vpop.f32.mrb[0].mxu0
  %392 = vmatprep.mubr.f32.mxu0 0.0
  %393 = vmatmul.mubr.f32.gmra.mrb[0].mxu0 %v119
  %v394 = vpop.f32.mrb[0].mxu0
  %v395 = vadd.f32 %v89, %v394
  %v396 = vpop.f32.mrb[0].mxu0
  %397 = vmatprep.mubr.f32.mxu0 0.0
  %398 = vmatmul.mubr.f32.gmra.mrb[0].mxu0 %v122
  %v399 = vpop.f32.mrb[0].mxu0
  %v400 = vadd.f32 %v89, %v399
  %v401 = vpop.f32.mrb[0].mxu0
  %402 = vmatprep.mubr.f32.mxu0 0.0
  %403 = vmatmul.mubr.f32.gmra.mrb[0].mxu0 %v125
  %v404 = vpop.f32.mrb[0].mxu0
  %v405 = vadd.f32 %v89, %v404
  %v406 = vpop.f32.mrb[0].mxu0
  %407 = vmatprep.mubr.f32.mxu0 0.0
  %408 = vmatmul.mubr.f32.gmra.mrb[0].mxu0 %v128
  %v409 = vpop.f32.mrb[0].mxu0
  %v410 = vadd.f32 %v89, %v409
  %v411 = vpop.f32.mrb[0].mxu0
  %412 = vmatprep.mubr.f32.mxu0 0.0
  %413 = vmatmul.mubr.f32.gmra.mrb[0].mxu0 %v131
  %v414 = vpop.f32.mrb[0].mxu0
  %v415 = vadd.f32 %v89, %v414
  %v416 = vpop.f32.mrb[0].mxu0
  %417 = vmatprep.mubr.f32.mxu0 0.0
  %418 = vmatmul.mubr.f32.gmra.mrb[0].mxu0 %v134
  %v419 = vpop.f32.mrb[0].mxu0
  %v420 = vadd.f32 %v89, %v419
  %v421 = vpop.f32.mrb[0].mxu0
  %422 = vmatprep.mubr.f32.mxu0 0.0
  %423 = vmatmul.mubr.f32.gmra.mrb[0].mxu0 %v137
  %v424 = vpop.f32.mrb[0].mxu0
  %v425 = vadd.f32 %v89, %v424
  %v426 = vpop.f32.mrb[0].mxu0
  %427 = vmatprep.mubr.f32.mxu0 0.0
  %428 = vmatmul.mubr.f32.gmra.mrb[0].mxu0 %v140
  %v429 = vpop.f32.mrb[0].mxu0
  %v430 = vadd.f32 %v89, %v429
  %v431 = vpop.f32.mrb[0].mxu0
  %432 = vmatprep.mubr.f32.mxu0 0.0
  %433 = vmatmul.mubr.f32.gmra.mrb[0].mxu0 %v143
  %v434 = vpop.f32.mrb[0].mxu0
  %v435 = vadd.f32 %v89, %v434
  %v436 = vpop.f32.mrb[0].mxu0
  %437 = vmatprep.mubr.f32.mxu0 0.0
  %438 = vmatmul.mubr.f32.gmra.mrb[0].mxu0 %v146
  %v439 = vpop.f32.mrb[0].mxu0
  %v440 = vadd.f32 %v89, %v439
  %v441 = vpop.f32.mrb[0].mxu0
  %442 = vmatprep.mubr.f32.mxu0 0.0
  %443 = vmatmul.mubr.f32.gmra.mrb[0].mxu0 %v149
  %v444 = vpop.f32.mrb[0].mxu0
  %v445 = vadd.f32 %v89, %v444
  %v446 = vpop.f32.mrb[0].mxu0
  %447 = vmatprep.mubr.f32.mxu0 0.0
  %448 = vmatmul.mubr.f32.gmra.mrb[0].mxu0 %v152
  %v449 = vpop.f32.mrb[0].mxu0
  %v450 = vadd.f32 %v89, %v449
  %v451 = vpop.f32.mrb[0].mxu0
  %452 = vmatprep.mubr.f32.mxu0 0.0
  %453 = vmatmul.mubr.f32.gmra.mrb[0].mxu0 %v155
  %v454 = vpop.f32.mrb[0].mxu0
  %v455 = vadd.f32 %v89, %v454
  %v456 = vpop.f32.mrb[0].mxu0
  %457 = vmatprep.mubr.f32.mxu0 0.0
  %458 = vmatmul.mubr.f32.gmra.mrb[0].mxu0 %v158
  %v459 = vpop.f32.mrb[0].mxu0
  %v460 = vadd.f32 %v89, %v459
  %v461 = vpop.f32.mrb[0].mxu0
  %462 = vmatprep.mubr.f32.mxu0 0.0
  %463 = vmatmul.mubr.f32.gmra.mrb[0].mxu0 %v161
  %v464 = vpop.f32.mrb[0].mxu0
  %v465 = vadd.f32 %v89, %v464
  %v466 = vpop.f32.mrb[0].mxu0
  %467 = vmatprep.mubr.f32.mxu0 0.0
  %468 = vmatmul.mubr.f32.gmra.mrb[0].mxu0 %v164
  %v469 = vpop.f32.mrb[0].mxu0
  %v470 = vadd.f32 %v89, %v469
  %v471 = vpop.f32.mrb[0].mxu0
  %472 = vmatprep.mubr.f32.mxu0 0.0
  %473 = vmatmul.mubr.f32.gmra.mrb[0].mxu0 %v167
  %v474 = vpop.f32.mrb[0].mxu0
  %v475 = vadd.f32 %v89, %v474
  %v476 = vpop.f32.mrb[0].mxu0
  %477 = vmatprep.mubr.f32.mxu0 0.0
  %478 = vmatmul.mubr.f32.gmra.mrb[0].mxu0 %v170
  %v479 = vpop.f32.mrb[0].mxu0
  %v480 = vadd.f32 %v89, %v479
  %v481 = vpop.f32.mrb[0].mxu0
  %482 = vmatprep.mubr.f32.mxu0 0.0
  %483 = vmatmul.mubr.f32.gmra.mrb[0].mxu0 %v173
  %v484 = vpop.f32.mrb[0].mxu0
  %v485 = vadd.f32 %v89, %v484
  %v486 = vpop.f32.mrb[0].mxu0
  %487 = vmatprep.mubr.f32.mxu0 0.0
  %488 = vmatmul.mubr.f32.gmra.mrb[0].mxu0 %v176
  %v489 = vpop.f32.mrb[0].mxu0
  %v490 = vadd.f32 %v89, %v489
  %v491 = vpop.f32.mrb[0].mxu0
  %492 = vmatprep.mubr.f32.mxu0 0.0
  %493 = vmatmul.mubr.f32.gmra.mrb[0].mxu0 %v179
  %v494 = vpop.f32.mrb[0].mxu0
  %v495 = vadd.f32 %v89, %v494
  %v496 = vpop.f32.mrb[0].mxu0
  %497 = vmatprep.mubr.f32.mxu0 0.0
  %498 = vmatmul.mubr.f32.gmra.mrb[0].mxu0 %v182
  %v499 = vpop.f32.mrb[0].mxu0
  %v500 = vadd.f32 %v89, %v499
  %v501 = vpop.f32.mrb[0].mxu0
  %502 = vmatprep.mubr.f32.mxu0 0.0
  %503 = vmatmul.mubr.f32.gmra.mrb[0].mxu0 %v185
  %v504 = vpop.f32.mrb[0].mxu0
  %v505 = vadd.f32 %v89, %v504
  %v506 = vpop.f32.mrb[0].mxu0
  %507 = vmatprep.mubr.f32.mxu0 0.0
  %508 = vmatmul.mubr.f32.gmra.mrb[0].mxu0 %v188
  %v509 = vpop.f32.mrb[0].mxu0
  %v510 = vadd.f32 %v89, %v509
  %v511 = vpop.f32.mrb[0].mxu0
  %512 = vmatprep.mubr.f32.mxu0 0.0
  %513 = vmatmul.mubr.f32.gmra.mrb[0].mxu0 %v191
  %v514 = vpop.f32.mrb[0].mxu0
  %v515 = vadd.f32 %v89, %v514
  %v516 = vpop.f32.mrb[0].mxu0
  %517 = vmatprep.mubr.f32.mxu0 0.0
  %518 = vmatmul.mubr.f32.gmra.mrb[0].mxu0 %v194
  %v519 = vpop.f32.mrb[0].mxu0
  %v520 = vadd.f32 %v89, %v519
  %v521 = vpop.f32.mrb[0].mxu0
  %522 = vmatprep.mubr.f32.mxu0 0.0
  %523 = vmatmul.mubr.f32.gmra.mrb[0].mxu0 %v197
  %v524 = vpop.f32.mrb[0].mxu0
  %v525 = vadd.f32 %v89, %v524
  %v526 = vpop.f32.mrb[0].mxu0
  %527 = vmatprep.mubr.f32.mxu0 0.0
  %528 = vmatmul.mubr.f32.gmra.mrb[0].mxu0 %v200
  %v529 = vpop.f32.mrb[0].mxu0
  %v530 = vadd.f32 %v89, %v529
  %v531 = vpop.f32.mrb[0].mxu0
  %532 = vmatprep.mubr.f32.mxu0 0.0
  %533 = vmatmul.mubr.f32.gmra.mrb[0].mxu0 %v203
  %v534 = vpop.f32.mrb[0].mxu0
  %v535 = vadd.f32 %v89, %v534
  %v536 = vpop.f32.mrb[0].mxu0
  %537 = vmatprep.mubr.f32.mxu0 0.0
  %538 = vmatmul.mubr.f32.gmra.mrb[0].mxu0 %v206
  %v539 = vpop.f32.mrb[0].mxu0
  %v540 = vadd.f32 %v89, %v539
  %v541 = vpop.f32.mrb[0].mxu0
  %542 = vmatprep.mubr.f32.mxu0 0.0
  %543 = vmatmul.mubr.f32.gmra.mrb[0].mxu0 %v209
  %v544 = vpop.f32.mrb[0].mxu0
  %v545 = vadd.f32 %v89, %v544
  %v546 = vpop.f32.mrb[0].mxu0
  %547 = vmatprep.mubr.f32.mxu0 0.0
  %548 = vmatmul.mubr.f32.gmra.mrb[0].mxu0 %v212
  %v549 = vpop.f32.mrb[0].mxu0
  %v550 = vadd.f32 %v89, %v549
  %v551 = vpop.f32.mrb[0].mxu0
  %552 = vmatprep.mubr.f32.mxu0 0.0
  %553 = vmatmul.mubr.f32.gmra.mrb[0].mxu0 %v215
  %v554 = vpop.f32.mrb[0].mxu0
  %v555 = vadd.f32 %v89, %v554
  %v556 = vpop.f32.mrb[0].mxu0
  %557 = vmatprep.mubr.f32.mxu0 0.0
  %558 = vmatmul.mubr.f32.gmra.mrb[0].mxu0 %v218
  %v559 = vpop.f32.mrb[0].mxu0
  %v560 = vadd.f32 %v89, %v559
  %v561 = vpop.f32.mrb[0].mxu0
  %562 = vmatprep.mubr.f32.mxu0 0.0
  %563 = vmatmul.mubr.f32.gmra.mrb[0].mxu0 %v221
  %v564 = vpop.f32.mrb[0].mxu0
  %v565 = vadd.f32 %v89, %v564
  %v566 = vpop.f32.mrb[0].mxu0
  %567 = vmatprep.mubr.f32.mxu0 0.0
  %568 = vmatmul.mubr.f32.gmra.mrb[0].mxu0 %v224
  %v569 = vpop.f32.mrb[0].mxu0
  %v570 = vadd.f32 %v89, %v569
  %v571 = vpop.f32.mrb[0].mxu0
  %572 = vmatprep.mubr.f32.mxu0 0.0
  %573 = vmatmul.mubr.f32.gmra.mrb[0].mxu0 %v227
  %v574 = vpop.f32.mrb[0].mxu0
  %v575 = vadd.f32 %v89, %v574
  %v576 = vpop.f32.mrb[0].mxu0
  %577 = vmatprep.mubr.f32.mxu0 0.0
  %578 = vmatmul.mubr.f32.gmra.mrb[0].mxu0 %v230
  %v579 = vpop.f32.mrb[0].mxu0
  %v580 = vadd.f32 %v89, %v579
  %v581 = vpop.f32.mrb[0].mxu0
  %582 = vmatprep.mubr.f32.mxu0 0.0
  %583 = vmatmul.mubr.f32.gmra.mrb[0].mxu0 %v233
  %v584 = vpop.f32.mrb[0].mxu0
  %v585 = vadd.f32 %v89, %v584
  %v586 = vpop.f32.mrb[0].mxu0
  %587 = vmatprep.mubr.f32.mxu0 0.0
  %588 = vmatmul.mubr.f32.gmra.mrb[0].mxu0 %v236
  %v589 = vpop.f32.mrb[0].mxu0
  %v590 = vadd.f32 %v89, %v589
  %v591 = vpop.f32.mrb[0].mxu0
  %592 = vmatprep.mubr.f32.mxu0 0.0
  %593 = vmatmul.mubr.f32.gmra.mrb[0].mxu0 %v239
  %v594 = vpop.f32.mrb[0].mxu0
  %v595 = vadd.f32 %v89, %v594
  %v596 = vpop.f32.mrb[0].mxu0
  %597 = vmatprep.mubr.f32.mxu0 0.0
  %598 = vmatmul.mubr.f32.gmra.mrb[0].mxu0 %v242
  %v599 = vpop.f32.mrb[0].mxu0
  %v600 = vadd.f32 %v89, %v599
  %v601 = vpop.f32.mrb[0].mxu0
  %602 = vmatprep.mubr.f32.mxu0 0.0
  %603 = vmatmul.mubr.f32.gmra.mrb[0].mxu0 %v245
  %v604 = vpop.f32.mrb[0].mxu0
  %v605 = vadd.f32 %v89, %v604
  %v606 = vpop.f32.mrb[0].mxu0
  %607 = vmatprep.mubr.f32.mxu0 0.0
  %608 = vmatmul.mubr.f32.gmra.mrb[0].mxu0 %v248
  %v609 = vpop.f32.mrb[0].mxu0
  %v610 = vadd.f32 %v89, %v609
  %v611 = vpop.f32.mrb[0].mxu0
  %612 = vmatprep.mubr.f32.mxu0 0.0
  %613 = vmatmul.mubr.f32.gmra.mrb[0].mxu0 %v251
  %v614 = vpop.f32.mrb[0].mxu0
  %v615 = vadd.f32 %v89, %v614
  %v616 = vpop.f32.mrb[0].mxu0
  %617 = vmatprep.mubr.f32.mxu0 0.0
  %618 = vmatmul.mubr.f32.gmra.mrb[0].mxu0 %v254
  %v619 = vpop.f32.mrb[0].mxu0
  %v620 = vadd.f32 %v89, %v619
  %v621 = vpop.f32.mrb[0].mxu0
  %622 = vmatprep.mubr.f32.mxu0 0.0
  %623 = vmatmul.mubr.f32.gmra.mrb[0].mxu0 %v257
  %v624 = vpop.f32.mrb[0].mxu0
  %v625 = vadd.f32 %v89, %v624
  %v626 = vpop.f32.mrb[0].mxu0
  %627 = vmatprep.mubr.f32.mxu0 0.0
  %628 = vmatmul.mubr.f32.gmra.mrb[0].mxu0 %v260
  %v629 = vpop.f32.mrb[0].mxu0
  %v630 = vadd.f32 %v89, %v629
  %v631 = vpop.f32.mrb[0].mxu0
  %632 = vmatprep.mubr.f32.mxu0 0.0
  %633 = vmatmul.mubr.f32.gmra.mrb[0].mxu0 %v263
  %v634 = vpop.f32.mrb[0].mxu0
  %v635 = vadd.f32 %v89, %v634
  %v636 = vpop.f32.mrb[0].mxu0
  %637 = vmatprep.mubr.f32.mxu0 0.0
  %638 = vmatmul.mubr.f32.gmra.mrb[0].mxu0 %v266
  %v639 = vpop.f32.mrb[0].mxu0
  %v640 = vadd.f32 %v89, %v639
  %v641 = vpop.f32.mrb[0].mxu0
  %642 = vmatprep.mubr.f32.mxu0 0.0
  %643 = vmatmul.mubr.f32.gmra.mrb[0].mxu0 %v269
  %v644 = vpop.f32.mrb[0].mxu0
  %v645 = vadd.f32 %v89, %v644
  %v646 = vpop.f32.mrb[0].mxu0
  %647 = vmatprep.mubr.f32.mxu0 0.0
  %648 = vmatmul.mubr.f32.gmra.mrb[0].mxu0 %v272
  %v649 = vpop.f32.mrb[0].mxu0
  %v650 = vadd.f32 %v89, %v649
  %v651 = vpop.f32.mrb[0].mxu0
  %652 = vmatprep.mubr.f32.mxu0 0.0
  %653 = vmatmul.mubr.f32.gmra.mrb[0].mxu0 %v275
  %v654 = vpop.f32.mrb[0].mxu0
  %v655 = vadd.f32 %v89, %v654
  %v656 = vpop.f32.mrb[0].mxu0
  %657 = vmatprep.mubr.f32.mxu0 0.0
  %658 = vmatmul.mubr.f32.gmra.mrb[0].mxu0 %v278
  %v659 = vpop.f32.mrb[0].mxu0
  %v660 = vadd.f32 %v89, %v659
  %v661 = vpop.f32.mrb[0].mxu0
  %662 = vmatprep.mubr.f32.mxu0 0.0
  %663 = vmatmul.mubr.f32.gmra.mrb[0].mxu0 %v281
  %v664 = vpop.f32.mrb[0].mxu0
  %v665 = vadd.f32 %v89, %v664
  %v666 = vpop.f32.mrb[0].mxu0
  %667 = vdwg.mxu0
  %v668 = vmax.f32 %v350, 0.0
  %v669 = vmax.f32 %v355, 0.0
  %v670 = vmax.f32 %v360, 0.0
  %v671 = vmax.f32 %v365, 0.0
  %v672 = vmax.f32 %v370, 0.0
  %v673 = vmax.f32 %v375, 0.0
  %v674 = vmax.f32 %v380, 0.0
  %v675 = vmax.f32 %v385, 0.0
  %v676 = vmax.f32 %v390, 0.0
  %v677 = vmax.f32 %v395, 0.0
  %v678 = vmax.f32 %v400, 0.0
  %v679 = vmax.f32 %v405, 0.0
  %v680 = vmax.f32 %v410, 0.0
  %v681 = vmax.f32 %v415, 0.0
  %v682 = vmax.f32 %v420, 0.0
  %v683 = vmax.f32 %v425, 0.0
  %v684 = vmax.f32 %v430, 0.0
  %v685 = vmax.f32 %v435, 0.0
  %v686 = vmax.f32 %v440, 0.0
  %v687 = vmax.f32 %v445, 0.0
  %v688 = vmax.f32 %v450, 0.0
  %v689 = vmax.f32 %v455, 0.0
  %v690 = vmax.f32 %v460, 0.0
  %v691 = vmax.f32 %v465, 0.0
  %v692 = vmax.f32 %v470, 0.0
  %v693 = vmax.f32 %v475, 0.0
  %v694 = vmax.f32 %v480, 0.0
  %v695 = vmax.f32 %v485, 0.0
  %v696 = vmax.f32 %v490, 0.0
  %v697 = vmax.f32 %v495, 0.0
  %v698 = vmax.f32 %v500, 0.0
  %v699 = vmax.f32 %v505, 0.0
  %v700 = vmax.f32 %v510, 0.0
  %v701 = vmax.f32 %v515, 0.0
  %v702 = vmax.f32 %v520, 0.0
  %v703 = vmax.f32 %v525, 0.0
  %v704 = vmax.f32 %v530, 0.0
  %v705 = vmax.f32 %v535, 0.0
  %v706 = vmax.f32 %v540, 0.0
  %v707 = vmax.f32 %v545, 0.0
  %v708 = vmax.f32 %v550, 0.0
  %v709 = vmax.f32 %v555, 0.0
  %v710 = vmax.f32 %v560, 0.0
  %v711 = vmax.f32 %v565, 0.0
  %v712 = vmax.f32 %v570, 0.0
  %v713 = vmax.f32 %v575, 0.0
  %v714 = vmax.f32 %v580, 0.0
  %v715 = vmax.f32 %v585, 0.0
  %v716 = vmax.f32 %v590, 0.0
  %v717 = vmax.f32 %v595, 0.0
  %v718 = vmax.f32 %v600, 0.0
  %v719 = vmax.f32 %v605, 0.0
  %v720 = vmax.f32 %v610, 0.0
  %v721 = vmax.f32 %v615, 0.0
  %v722 = vmax.f32 %v620, 0.0
  %v723 = vmax.f32 %v625, 0.0
  %v724 = vmax.f32 %v630, 0.0
  %v725 = vmax.f32 %v635, 0.0
  %v726 = vmax.f32 %v640, 0.0
  %v727 = vmax.f32 %v645, 0.0
  %v728 = vmax.f32 %v650, 0.0
  %v729 = vmax.f32 %v655, 0.0
  %v730 = vmax.f32 %v660, 0.0
  %v731 = vmax.f32 %v665, 0.0
  %v732 = vld [vmem:[%s2 + $0x20] sm:$0xff]
  %v733 = vld [vmem:[%s2 + $0x28] sm:$0xff]
  %v734 = vld [vmem:[%s2 + $0x30] sm:$0xff]
  %v735 = vld [vmem:[%s2 + $0x38] sm:$0xff]
  %v736 = vld [vmem:[%s2 + $0x40] sm:$0xff]
  %v737 = vld [vmem:[%s2 + $0x48] sm:$0xff]
  %v738 = vld [vmem:[%s2 + $0x50] sm:$0xff]
  %v739 = vld [vmem:[%s2 + $0x58] sm:$0xff]
  %v740 = vld [vmem:[%s3 + $0x1] sm:$0x1]
  %v741 = vlaneseq
  %v742 = vshrl.u32 %v741, 7
  %v743 = vsub.s32 0, %v742
  %v744 = vrot.slane %v740, %v743
  %vm745 = vcmask 523264
  %v747 = vsel %vm745, %v668, 0
  %v750 = vsel %vm745, %v669, 0
  %v753 = vsel %vm745, %v670, 0
  %v756 = vsel %vm745, %v671, 0
  %v759 = vsel %vm745, %v672, 0
  %v762 = vsel %vm745, %v673, 0
  %v765 = vsel %vm745, %v674, 0
  %v768 = vsel %vm745, %v675, 0
  %v771 = vsel %vm745, %v676, 0
  %v774 = vsel %vm745, %v677, 0
  %v777 = vsel %vm745, %v678, 0
  %v780 = vsel %vm745, %v679, 0
  %v783 = vsel %vm745, %v680, 0
  %v786 = vsel %vm745, %v681, 0
  %v789 = vsel %vm745, %v682, 0
  %v792 = vsel %vm745, %v683, 0
  %v795 = vsel %vm745, %v684, 0
  %v798 = vsel %vm745, %v685, 0
  %v801 = vsel %vm745, %v686, 0
  %v804 = vsel %vm745, %v687, 0
  %v807 = vsel %vm745, %v688, 0
  %v810 = vsel %vm745, %v689, 0
  %v813 = vsel %vm745, %v690, 0
  %v816 = vsel %vm745, %v691, 0
  %v819 = vsel %vm745, %v692, 0
  %v822 = vsel %vm745, %v693, 0
  %v825 = vsel %vm745, %v694, 0
  %v828 = vsel %vm745, %v695, 0
  %v831 = vsel %vm745, %v696, 0
  %v834 = vsel %vm745, %v697, 0
  %v837 = vsel %vm745, %v698, 0
  %v840 = vsel %vm745, %v699, 0
  %v843 = vsel %vm745, %v700, 0
  %v846 = vsel %vm745, %v701, 0
  %v849 = vsel %vm745, %v702, 0
  %v852 = vsel %vm745, %v703, 0
  %v855 = vsel %vm745, %v704, 0
  %v858 = vsel %vm745, %v705, 0
  %v861 = vsel %vm745, %v706, 0
  %v864 = vsel %vm745, %v707, 0
  %v867 = vsel %vm745, %v708, 0
  %v870 = vsel %vm745, %v709, 0
  %v873 = vsel %vm745, %v710, 0
  %v876 = vsel %vm745, %v711, 0
  %v879 = vsel %vm745, %v712, 0
  %v882 = vsel %vm745, %v713, 0
  %v885 = vsel %vm745, %v714, 0
  %v888 = vsel %vm745, %v715, 0
  %v891 = vsel %vm745, %v716, 0
  %v894 = vsel %vm745, %v717, 0
  %v897 = vsel %vm745, %v718, 0
  %v900 = vsel %vm745, %v719, 0
  %v903 = vsel %vm745, %v720, 0
  %v906 = vsel %vm745, %v721, 0
  %v909 = vsel %vm745, %v722, 0
  %v912 = vsel %vm745, %v723, 0
  %v915 = vsel %vm745, %v724, 0
  %v918 = vsel %vm745, %v725, 0
  %v921 = vsel %vm745, %v726, 0
  %v924 = vsel %vm745, %v727, 0
  %v927 = vsel %vm745, %v728, 0
  %v930 = vsel %vm745, %v729, 0
  %v933 = vsel %vm745, %v730, 0
  %v936 = vsel %vm745, %v731, 0
  %938 = vmatprep.subr.mxu0 0.0
  %939 = vmatpush1.msra.mxu0 %v732
  %940 = vmatprep.subr.mxu0 0.0
  %941 = vmatpush1.msra.mxu0 %v733
  %942 = vmatprep.subr.mxu0 0.0
  %943 = vmatpush1.msra.mxu0 %v734
  %944 = vmatprep.subr.mxu0 0.0
  %945 = vmatpush1.msra.mxu0 %v735
  %946 = vmatprep.subr.mxu0 0.0
  %947 = vmatpush1.msra.mxu0 %v736
  %948 = vmatprep.subr.mxu0 0.0
  %949 = vmatpush1.msra.mxu0 %v737
  %950 = vmatprep.subr.mxu0 0.0
  %951 = vmatpush1.msra.mxu0 %v738
  %952 = vmatprep.subr.mxu0 0.0
  %953 = vmatpush1.msra.mxu0 %v739
  %954 = vmatprep.subr.mxu0 0.0
  %955 = vmatpush1.msra.mxu0 0.0
  %956 = vmatprep.subr.mxu0 0.0
  %957 = vmatpush1.msra.mxu0 0.0
  %958 = vmatprep.subr.mxu0 0.0
  %959 = vmatpush1.msra.mxu0 0.0
  %960 = vmatprep.subr.mxu0 0.0
  %961 = vmatpush1.msra.mxu0 0.0
  %962 = vmatprep.subr.mxu0 0.0
  %963 = vmatpush1.msra.mxu0 0.0
  %964 = vmatprep.subr.mxu0 0.0
  %965 = vmatpush1.msra.mxu0 0.0
  %966 = vmatprep.subr.mxu0 0.0
  %967 = vmatpush1.msra.mxu0 0.0
  %968 = vmatprep.subr.mxu0 0.0
  %969 = vmatpush1.msra.mxu0 0.0
  %970 = vmatprep.subr.mxu0 0.0
  %971 = vmatpush1.msra.mxu0 0.0
  %972 = vmatprep.subr.mxu0 0.0
  %973 = vmatpush1.msra.mxu0 0.0
  %974 = vmatprep.subr.mxu0 0.0
  %975 = vmatpush1.msra.mxu0 0.0
  %976 = vmatprep.subr.mxu0 0.0
  %977 = vmatpush1.msra.mxu0 0.0
  %978 = vmatprep.subr.mxu0 0.0
  %979 = vmatpush1.msra.mxu0 0.0
  %980 = vmatprep.subr.mxu0 0.0
  %981 = vmatpush1.msra.mxu0 0.0
  %982 = vmatprep.subr.mxu0 0.0
  %983 = vmatpush1.msra.mxu0 0.0
  %984 = vmatprep.subr.mxu0 0.0
  %985 = vmatpush1.msra.mxu0 0.0
  %986 = vmatprep.subr.mxu0 0.0
  %987 = vmatpush1.msra.mxu0 0.0
  %988 = vmatprep.subr.mxu0 0.0
  %989 = vmatpush1.msra.mxu0 0.0
  %990 = vmatprep.subr.mxu0 0.0
  %991 = vmatpush1.msra.mxu0 0.0
  %992 = vmatprep.subr.mxu0 0.0
  %993 = vmatpush1.msra.mxu0 0.0
  %994 = vmatprep.subr.mxu0 0.0
  %995 = vmatpush1.msra.mxu0 0.0
  %996 = vmatprep.subr.mxu0 0.0
  %997 = vmatpush1.msra.mxu0 0.0
  %998 = vmatprep.subr.mxu0 0.0
  %999 = vmatpush1.msra.mxu0 0.0
  %1000 = vmatprep.subr.mxu0 0.0
  %1001 = vmatpush1.msra.mxu0 0.0
  %1002 = vmatprep.mubr.f32.mxu0 0.0
  %1003 = vmatmul.mubr.f32.gmra.mrb[0].mxu0 %v747
  %v1004 = vpop.f32.mrb[0].mxu0
  %v1005 = vadd.f32 %v744, %v1004
  %v1006 = vpop.f32.mrb[0].mxu0
  %1007 = vmatprep.mubr.f32.mxu0 0.0
  %1008 = vmatmul.mubr.f32.gmra.mrb[0].mxu0 %v750
  %v1009 = vpop.f32.mrb[0].mxu0
  %v1010 = vadd.f32 %v744, %v1009
  %v1011 = vpop.f32.mrb[0].mxu0
  %1012 = vmatprep.mubr.f32.mxu0 0.0
  %1013 = vmatmul.mubr.f32.gmra.mrb[0].mxu0 %v753
  %v1014 = vpop.f32.mrb[0].mxu0
  %v1015 = vadd.f32 %v744, %v1014
  %v1016 = vpop.f32.mrb[0].mxu0
  %1017 = vmatprep.mubr.f32.mxu0 0.0
  %1018 = vmatmul.mubr.f32.gmra.mrb[0].mxu0 %v756
  %v1019 = vpop.f32.mrb[0].mxu0
  %v1020 = vadd.f32 %v744, %v1019
  %v1021 = vpop.f32.mrb[0].mxu0
  %1022 = vmatprep.mubr.f32.mxu0 0.0
  %1023 = vmatmul.mubr.f32.gmra.mrb[0].mxu0 %v759
  %v1024 = vpop.f32.mrb[0].mxu0
  %v1025 = vadd.f32 %v744, %v1024
  %v1026 = vpop.f32.mrb[0].mxu0
  %1027 = vmatprep.mubr.f32.mxu0 0.0
  %1028 = vmatmul.mubr.f32.gmra.mrb[0].mxu0 %v762
  %v1029 = vpop.f32.mrb[0].mxu0
  %v1030 = vadd.f32 %v744, %v1029
  %v1031 = vpop.f32.mrb[0].mxu0
  %1032 = vmatprep.mubr.f32.mxu0 0.0
  %1033 = vmatmul.mubr.f32.gmra.mrb[0].mxu0 %v765
  %v1034 = vpop.f32.mrb[0].mxu0
  %v1035 = vadd.f32 %v744, %v1034
  %v1036 = vpop.f32.mrb[0].mxu0
  %1037 = vmatprep.mubr.f32.mxu0 0.0
  %1038 = vmatmul.mubr.f32.gmra.mrb[0].mxu0 %v768
  %v1039 = vpop.f32.mrb[0].mxu0
  %v1040 = vadd.f32 %v744, %v1039
  %v1041 = vpop.f32.mrb[0].mxu0
  %1042 = vmatprep.mubr.f32.mxu0 0.0
  %1043 = vmatmul.mubr.f32.gmra.mrb[0].mxu0 %v771
  %v1044 = vpop.f32.mrb[0].mxu0
  %v1045 = vadd.f32 %v744, %v1044
  %v1046 = vpop.f32.mrb[0].mxu0
  %1047 = vmatprep.mubr.f32.mxu0 0.0
  %1048 = vmatmul.mubr.f32.gmra.mrb[0].mxu0 %v774
  %v1049 = vpop.f32.mrb[0].mxu0
  %v1050 = vadd.f32 %v744, %v1049
  %v1051 = vpop.f32.mrb[0].mxu0
  %1052 = vmatprep.mubr.f32.mxu0 0.0
  %1053 = vmatmul.mubr.f32.gmra.mrb[0].mxu0 %v777
  %v1054 = vpop.f32.mrb[0].mxu0
  %v1055 = vadd.f32 %v744, %v1054
  %v1056 = vpop.f32.mrb[0].mxu0
  %1057 = vmatprep.mubr.f32.mxu0 0.0
  %1058 = vmatmul.mubr.f32.gmra.mrb[0].mxu0 %v780
  %v1059 = vpop.f32.mrb[0].mxu0
  %v1060 = vadd.f32 %v744, %v1059
  %v1061 = vpop.f32.mrb[0].mxu0
  %1062 = vmatprep.mubr.f32.mxu0 0.0
  %1063 = vmatmul.mubr.f32.gmra.mrb[0].mxu0 %v783
  %v1064 = vpop.f32.mrb[0].mxu0
  %v1065 = vadd.f32 %v744, %v1064
  %v1066 = vpop.f32.mrb[0].mxu0
  %1067 = vmatprep.mubr.f32.mxu0 0.0
  %1068 = vmatmul.mubr.f32.gmra.mrb[0].mxu0 %v786
  %v1069 = vpop.f32.mrb[0].mxu0
  %v1070 = vadd.f32 %v744, %v1069
  %v1071 = vpop.f32.mrb[0].mxu0
  %1072 = vmatprep.mubr.f32.mxu0 0.0
  %1073 = vmatmul.mubr.f32.gmra.mrb[0].mxu0 %v789
  %v1074 = vpop.f32.mrb[0].mxu0
  %v1075 = vadd.f32 %v744, %v1074
  %v1076 = vpop.f32.mrb[0].mxu0
  %1077 = vmatprep.mubr.f32.mxu0 0.0
  %1078 = vmatmul.mubr.f32.gmra.mrb[0].mxu0 %v792
  %v1079 = vpop.f32.mrb[0].mxu0
  %v1080 = vadd.f32 %v744, %v1079
  %v1081 = vpop.f32.mrb[0].mxu0
  %1082 = vmatprep.mubr.f32.mxu0 0.0
  %1083 = vmatmul.mubr.f32.gmra.mrb[0].mxu0 %v795
  %v1084 = vpop.f32.mrb[0].mxu0
  %v1085 = vadd.f32 %v744, %v1084
  %v1086 = vpop.f32.mrb[0].mxu0
  %1087 = vmatprep.mubr.f32.mxu0 0.0
  %1088 = vmatmul.mubr.f32.gmra.mrb[0].mxu0 %v798
  %v1089 = vpop.f32.mrb[0].mxu0
  %v1090 = vadd.f32 %v744, %v1089
  %v1091 = vpop.f32.mrb[0].mxu0
  %1092 = vmatprep.mubr.f32.mxu0 0.0
  %1093 = vmatmul.mubr.f32.gmra.mrb[0].mxu0 %v801
  %v1094 = vpop.f32.mrb[0].mxu0
  %v1095 = vadd.f32 %v744, %v1094
  %v1096 = vpop.f32.mrb[0].mxu0
  %1097 = vmatprep.mubr.f32.mxu0 0.0
  %1098 = vmatmul.mubr.f32.gmra.mrb[0].mxu0 %v804
  %v1099 = vpop.f32.mrb[0].mxu0
  %v1100 = vadd.f32 %v744, %v1099
  %v1101 = vpop.f32.mrb[0].mxu0
  %1102 = vmatprep.mubr.f32.mxu0 0.0
  %1103 = vmatmul.mubr.f32.gmra.mrb[0].mxu0 %v807
  %v1104 = vpop.f32.mrb[0].mxu0
  %v1105 = vadd.f32 %v744, %v1104
  %v1106 = vpop.f32.mrb[0].mxu0
  %1107 = vmatprep.mubr.f32.mxu0 0.0
  %1108 = vmatmul.mubr.f32.gmra.mrb[0].mxu0 %v810
  %v1109 = vpop.f32.mrb[0].mxu0
  %v1110 = vadd.f32 %v744, %v1109
  %v1111 = vpop.f32.mrb[0].mxu0
  %1112 = vmatprep.mubr.f32.mxu0 0.0
  %1113 = vmatmul.mubr.f32.gmra.mrb[0].mxu0 %v813
  %v1114 = vpop.f32.mrb[0].mxu0
  %v1115 = vadd.f32 %v744, %v1114
  %v1116 = vpop.f32.mrb[0].mxu0
  %1117 = vmatprep.mubr.f32.mxu0 0.0
  %1118 = vmatmul.mubr.f32.gmra.mrb[0].mxu0 %v816
  %v1119 = vpop.f32.mrb[0].mxu0
  %v1120 = vadd.f32 %v744, %v1119
  %v1121 = vpop.f32.mrb[0].mxu0
  %1122 = vmatprep.mubr.f32.mxu0 0.0
  %1123 = vmatmul.mubr.f32.gmra.mrb[0].mxu0 %v819
  %v1124 = vpop.f32.mrb[0].mxu0
  %v1125 = vadd.f32 %v744, %v1124
  %v1126 = vpop.f32.mrb[0].mxu0
  %1127 = vmatprep.mubr.f32.mxu0 0.0
  %1128 = vmatmul.mubr.f32.gmra.mrb[0].mxu0 %v822
  %v1129 = vpop.f32.mrb[0].mxu0
  %v1130 = vadd.f32 %v744, %v1129
  %v1131 = vpop.f32.mrb[0].mxu0
  %1132 = vmatprep.mubr.f32.mxu0 0.0
  %1133 = vmatmul.mubr.f32.gmra.mrb[0].mxu0 %v825
  %v1134 = vpop.f32.mrb[0].mxu0
  %v1135 = vadd.f32 %v744, %v1134
  %v1136 = vpop.f32.mrb[0].mxu0
  %1137 = vmatprep.mubr.f32.mxu0 0.0
  %1138 = vmatmul.mubr.f32.gmra.mrb[0].mxu0 %v828
  %v1139 = vpop.f32.mrb[0].mxu0
  %v1140 = vadd.f32 %v744, %v1139
  %v1141 = vpop.f32.mrb[0].mxu0
  %1142 = vmatprep.mubr.f32.mxu0 0.0
  %1143 = vmatmul.mubr.f32.gmra.mrb[0].mxu0 %v831
  %v1144 = vpop.f32.mrb[0].mxu0
  %v1145 = vadd.f32 %v744, %v1144
  %v1146 = vpop.f32.mrb[0].mxu0
  %1147 = vmatprep.mubr.f32.mxu0 0.0
  %1148 = vmatmul.mubr.f32.gmra.mrb[0].mxu0 %v834
  %v1149 = vpop.f32.mrb[0].mxu0
  %v1150 = vadd.f32 %v744, %v1149
  %v1151 = vpop.f32.mrb[0].mxu0
  %1152 = vmatprep.mubr.f32.mxu0 0.0
  %1153 = vmatmul.mubr.f32.gmra.mrb[0].mxu0 %v837
  %v1154 = vpop.f32.mrb[0].mxu0
  %v1155 = vadd.f32 %v744, %v1154
  %v1156 = vpop.f32.mrb[0].mxu0
  %1157 = vmatprep.mubr.f32.mxu0 0.0
  %1158 = vmatmul.mubr.f32.gmra.mrb[0].mxu0 %v840
  %v1159 = vpop.f32.mrb[0].mxu0
  %v1160 = vadd.f32 %v744, %v1159
  %v1161 = vpop.f32.mrb[0].mxu0
  %1162 = vmatprep.mubr.f32.mxu0 0.0
  %1163 = vmatmul.mubr.f32.gmra.mrb[0].mxu0 %v843
  %v1164 = vpop.f32.mrb[0].mxu0
  %v1165 = vadd.f32 %v744, %v1164
  %v1166 = vpop.f32.mrb[0].mxu0
  %1167 = vmatprep.mubr.f32.mxu0 0.0
  %1168 = vmatmul.mubr.f32.gmra.mrb[0].mxu0 %v846
  %v1169 = vpop.f32.mrb[0].mxu0
  %v1170 = vadd.f32 %v744, %v1169
  %v1171 = vpop.f32.mrb[0].mxu0
  %1172 = vmatprep.mubr.f32.mxu0 0.0
  %1173 = vmatmul.mubr.f32.gmra.mrb[0].mxu0 %v849
  %v1174 = vpop.f32.mrb[0].mxu0
  %v1175 = vadd.f32 %v744, %v1174
  %v1176 = vpop.f32.mrb[0].mxu0
  %1177 = vmatprep.mubr.f32.mxu0 0.0
  %1178 = vmatmul.mubr.f32.gmra.mrb[0].mxu0 %v852
  %v1179 = vpop.f32.mrb[0].mxu0
  %v1180 = vadd.f32 %v744, %v1179
  %v1181 = vpop.f32.mrb[0].mxu0
  %1182 = vmatprep.mubr.f32.mxu0 0.0
  %1183 = vmatmul.mubr.f32.gmra.mrb[0].mxu0 %v855
  %v1184 = vpop.f32.mrb[0].mxu0
  %v1185 = vadd.f32 %v744, %v1184
  %v1186 = vpop.f32.mrb[0].mxu0
  %1187 = vmatprep.mubr.f32.mxu0 0.0
  %1188 = vmatmul.mubr.f32.gmra.mrb[0].mxu0 %v858
  %v1189 = vpop.f32.mrb[0].mxu0
  %v1190 = vadd.f32 %v744, %v1189
  %v1191 = vpop.f32.mrb[0].mxu0
  %1192 = vmatprep.mubr.f32.mxu0 0.0
  %1193 = vmatmul.mubr.f32.gmra.mrb[0].mxu0 %v861
  %v1194 = vpop.f32.mrb[0].mxu0
  %v1195 = vadd.f32 %v744, %v1194
  %v1196 = vpop.f32.mrb[0].mxu0
  %1197 = vmatprep.mubr.f32.mxu0 0.0
  %1198 = vmatmul.mubr.f32.gmra.mrb[0].mxu0 %v864
  %v1199 = vpop.f32.mrb[0].mxu0
  %v1200 = vadd.f32 %v744, %v1199
  %v1201 = vpop.f32.mrb[0].mxu0
  %1202 = vmatprep.mubr.f32.mxu0 0.0
  %1203 = vmatmul.mubr.f32.gmra.mrb[0].mxu0 %v867
  %v1204 = vpop.f32.mrb[0].mxu0
  %v1205 = vadd.f32 %v744, %v1204
  %v1206 = vpop.f32.mrb[0].mxu0
  %1207 = vmatprep.mubr.f32.mxu0 0.0
  %1208 = vmatmul.mubr.f32.gmra.mrb[0].mxu0 %v870
  %v1209 = vpop.f32.mrb[0].mxu0
  %v1210 = vadd.f32 %v744, %v1209
  %v1211 = vpop.f32.mrb[0].mxu0
  %1212 = vmatprep.mubr.f32.mxu0 0.0
  %1213 = vmatmul.mubr.f32.gmra.mrb[0].mxu0 %v873
  %v1214 = vpop.f32.mrb[0].mxu0
  %v1215 = vadd.f32 %v744, %v1214
  %v1216 = vpop.f32.mrb[0].mxu0
  %1217 = vmatprep.mubr.f32.mxu0 0.0
  %1218 = vmatmul.mubr.f32.gmra.mrb[0].mxu0 %v876
  %v1219 = vpop.f32.mrb[0].mxu0
  %v1220 = vadd.f32 %v744, %v1219
  %v1221 = vpop.f32.mrb[0].mxu0
  %1222 = vmatprep.mubr.f32.mxu0 0.0
  %1223 = vmatmul.mubr.f32.gmra.mrb[0].mxu0 %v879
  %v1224 = vpop.f32.mrb[0].mxu0
  %v1225 = vadd.f32 %v744, %v1224
  %v1226 = vpop.f32.mrb[0].mxu0
  %1227 = vmatprep.mubr.f32.mxu0 0.0
  %1228 = vmatmul.mubr.f32.gmra.mrb[0].mxu0 %v882
  %v1229 = vpop.f32.mrb[0].mxu0
  %v1230 = vadd.f32 %v744, %v1229
  %v1231 = vpop.f32.mrb[0].mxu0
  %1232 = vmatprep.mubr.f32.mxu0 0.0
  %1233 = vmatmul.mubr.f32.gmra.mrb[0].mxu0 %v885
  %v1234 = vpop.f32.mrb[0].mxu0
  %v1235 = vadd.f32 %v744, %v1234
  %v1236 = vpop.f32.mrb[0].mxu0
  %1237 = vmatprep.mubr.f32.mxu0 0.0
  %1238 = vmatmul.mubr.f32.gmra.mrb[0].mxu0 %v888
  %v1239 = vpop.f32.mrb[0].mxu0
  %v1240 = vadd.f32 %v744, %v1239
  %v1241 = vpop.f32.mrb[0].mxu0
  %1242 = vmatprep.mubr.f32.mxu0 0.0
  %1243 = vmatmul.mubr.f32.gmra.mrb[0].mxu0 %v891
  %v1244 = vpop.f32.mrb[0].mxu0
  %v1245 = vadd.f32 %v744, %v1244
  %v1246 = vpop.f32.mrb[0].mxu0
  %1247 = vmatprep.mubr.f32.mxu0 0.0
  %1248 = vmatmul.mubr.f32.gmra.mrb[0].mxu0 %v894
  %v1249 = vpop.f32.mrb[0].mxu0
  %v1250 = vadd.f32 %v744, %v1249
  %v1251 = vpop.f32.mrb[0].mxu0
  %1252 = vmatprep.mubr.f32.mxu0 0.0
  %1253 = vmatmul.mubr.f32.gmra.mrb[0].mxu0 %v897
  %v1254 = vpop.f32.mrb[0].mxu0
  %v1255 = vadd.f32 %v744, %v1254
  %v1256 = vpop.f32.mrb[0].mxu0
  %1257 = vmatprep.mubr.f32.mxu0 0.0
  %1258 = vmatmul.mubr.f32.gmra.mrb[0].mxu0 %v900
  %v1259 = vpop.f32.mrb[0].mxu0
  %v1260 = vadd.f32 %v744, %v1259
  %v1261 = vpop.f32.mrb[0].mxu0
  %1262 = vmatprep.mubr.f32.mxu0 0.0
  %1263 = vmatmul.mubr.f32.gmra.mrb[0].mxu0 %v903
  %v1264 = vpop.f32.mrb[0].mxu0
  %v1265 = vadd.f32 %v744, %v1264
  %v1266 = vpop.f32.mrb[0].mxu0
  %1267 = vmatprep.mubr.f32.mxu0 0.0
  %1268 = vmatmul.mubr.f32.gmra.mrb[0].mxu0 %v906
  %v1269 = vpop.f32.mrb[0].mxu0
  %v1270 = vadd.f32 %v744, %v1269
  %v1271 = vpop.f32.mrb[0].mxu0
  %1272 = vmatprep.mubr.f32.mxu0 0.0
  %1273 = vmatmul.mubr.f32.gmra.mrb[0].mxu0 %v909
  %v1274 = vpop.f32.mrb[0].mxu0
  %v1275 = vadd.f32 %v744, %v1274
  %v1276 = vpop.f32.mrb[0].mxu0
  %1277 = vmatprep.mubr.f32.mxu0 0.0
  %1278 = vmatmul.mubr.f32.gmra.mrb[0].mxu0 %v912
  %v1279 = vpop.f32.mrb[0].mxu0
  %v1280 = vadd.f32 %v744, %v1279
  %v1281 = vpop.f32.mrb[0].mxu0
  %1282 = vmatprep.mubr.f32.mxu0 0.0
  %1283 = vmatmul.mubr.f32.gmra.mrb[0].mxu0 %v915
  %v1284 = vpop.f32.mrb[0].mxu0
  %v1285 = vadd.f32 %v744, %v1284
  %v1286 = vpop.f32.mrb[0].mxu0
  %1287 = vmatprep.mubr.f32.mxu0 0.0
  %1288 = vmatmul.mubr.f32.gmra.mrb[0].mxu0 %v918
  %v1289 = vpop.f32.mrb[0].mxu0
  %v1290 = vadd.f32 %v744, %v1289
  %v1291 = vpop.f32.mrb[0].mxu0
  %1292 = vmatprep.mubr.f32.mxu0 0.0
  %1293 = vmatmul.mubr.f32.gmra.mrb[0].mxu0 %v921
  %v1294 = vpop.f32.mrb[0].mxu0
  %v1295 = vadd.f32 %v744, %v1294
  %v1296 = vpop.f32.mrb[0].mxu0
  %1297 = vmatprep.mubr.f32.mxu0 0.0
  %1298 = vmatmul.mubr.f32.gmra.mrb[0].mxu0 %v924
  %v1299 = vpop.f32.mrb[0].mxu0
  %v1300 = vadd.f32 %v744, %v1299
  %v1301 = vpop.f32.mrb[0].mxu0
  %1302 = vmatprep.mubr.f32.mxu0 0.0
  %1303 = vmatmul.mubr.f32.gmra.mrb[0].mxu0 %v927
  %v1304 = vpop.f32.mrb[0].mxu0
  %v1305 = vadd.f32 %v744, %v1304
  %v1306 = vpop.f32.mrb[0].mxu0
  %1307 = vmatprep.mubr.f32.mxu0 0.0
  %1308 = vmatmul.mubr.f32.gmra.mrb[0].mxu0 %v930
  %v1309 = vpop.f32.mrb[0].mxu0
  %v1310 = vadd.f32 %v744, %v1309
  %v1311 = vpop.f32.mrb[0].mxu0
  %1312 = vmatprep.mubr.f32.mxu0 0.0
  %1313 = vmatmul.mubr.f32.gmra.mrb[0].mxu0 %v933
  %v1314 = vpop.f32.mrb[0].mxu0
  %v1315 = vadd.f32 %v744, %v1314
  %v1316 = vpop.f32.mrb[0].mxu0
  %1317 = vmatprep.mubr.f32.mxu0 0.0
  %1318 = vmatmul.mubr.f32.gmra.mrb[0].mxu0 %v936
  %v1319 = vpop.f32.mrb[0].mxu0
  %v1320 = vadd.f32 %v744, %v1319
  %v1321 = vpop.f32.mrb[0].mxu0
  %1322 = vdwg.mxu0
  %v1323 = vmax.f32 %v1005, 0.0
  %v1324 = vmax.f32 %v1010, 0.0
  %v1325 = vmax.f32 %v1015, 0.0
  %v1326 = vmax.f32 %v1020, 0.0
  %v1327 = vmax.f32 %v1025, 0.0
  %v1328 = vmax.f32 %v1030, 0.0
  %v1329 = vmax.f32 %v1035, 0.0
  %v1330 = vmax.f32 %v1040, 0.0
  %v1331 = vmax.f32 %v1045, 0.0
  %v1332 = vmax.f32 %v1050, 0.0
  %v1333 = vmax.f32 %v1055, 0.0
  %v1334 = vmax.f32 %v1060, 0.0
  %v1335 = vmax.f32 %v1065, 0.0
  %v1336 = vmax.f32 %v1070, 0.0
  %v1337 = vmax.f32 %v1075, 0.0
  %v1338 = vmax.f32 %v1080, 0.0
  %v1339 = vmax.f32 %v1085, 0.0
  %v1340 = vmax.f32 %v1090, 0.0
  %v1341 = vmax.f32 %v1095, 0.0
  %v1342 = vmax.f32 %v1100, 0.0
  %v1343 = vmax.f32 %v1105, 0.0
  %v1344 = vmax.f32 %v1110, 0.0
  %v1345 = vmax.f32 %v1115, 0.0
  %v1346 = vmax.f32 %v1120, 0.0
  %v1347 = vmax.f32 %v1125, 0.0
  %v1348 = vmax.f32 %v1130, 0.0
  %v1349 = vmax.f32 %v1135, 0.0
  %v1350 = vmax.f32 %v1140, 0.0
  %v1351 = vmax.f32 %v1145, 0.0
  %v1352 = vmax.f32 %v1150, 0.0
  %v1353 = vmax.f32 %v1155, 0.0
  %v1354 = vmax.f32 %v1160, 0.0
  %v1355 = vmax.f32 %v1165, 0.0
  %v1356 = vmax.f32 %v1170, 0.0
  %v1357 = vmax.f32 %v1175, 0.0
  %v1358 = vmax.f32 %v1180, 0.0
  %v1359 = vmax.f32 %v1185, 0.0
  %v1360 = vmax.f32 %v1190, 0.0
  %v1361 = vmax.f32 %v1195, 0.0
  %v1362 = vmax.f32 %v1200, 0.0
  %v1363 = vmax.f32 %v1205, 0.0
  %v1364 = vmax.f32 %v1210, 0.0
  %v1365 = vmax.f32 %v1215, 0.0
  %v1366 = vmax.f32 %v1220, 0.0
  %v1367 = vmax.f32 %v1225, 0.0
  %v1368 = vmax.f32 %v1230, 0.0
  %v1369 = vmax.f32 %v1235, 0.0
  %v1370 = vmax.f32 %v1240, 0.0
  %v1371 = vmax.f32 %v1245, 0.0
  %v1372 = vmax.f32 %v1250, 0.0
  %v1373 = vmax.f32 %v1255, 0.0
  %v1374 = vmax.f32 %v1260, 0.0
  %v1375 = vmax.f32 %v1265, 0.0
  %v1376 = vmax.f32 %v1270, 0.0
  %v1377 = vmax.f32 %v1275, 0.0
  %v1378 = vmax.f32 %v1280, 0.0
  %v1379 = vmax.f32 %v1285, 0.0
  %v1380 = vmax.f32 %v1290, 0.0
  %v1381 = vmax.f32 %v1295, 0.0
  %v1382 = vmax.f32 %v1300, 0.0
  %v1383 = vmax.f32 %v1305, 0.0
  %v1384 = vmax.f32 %v1310, 0.0
  %v1385 = vmax.f32 %v1315, 0.0
  %v1386 = vmax.f32 %v1320, 0.0
  %v1387 = vld [vmem:[%s2 + $0x60] sm:$0xff]
  %v1388 = vld [vmem:[%s2 + $0x68] sm:$0xff]
  %v1389 = vld [vmem:[%s2 + $0x70] sm:$0xff]
  %v1390 = vld [vmem:[%s2 + $0x78] sm:$0xff]
  %v1391 = vld [vmem:[%s2 + $0x80] sm:$0xff]
  %v1392 = vld [vmem:[%s2 + $0x88] sm:$0xff]
  %v1393 = vld [vmem:[%s2 + $0x90] sm:$0xff]
  %v1394 = vld [vmem:[%s2 + $0x98] sm:$0xff]
  %v1395 = vld [vmem:[%s1] sm:$0xff]
  %v1396 = vld [vmem:[%s1 + $0x8] sm:$0xff]
  %v1397 = vld [vmem:[%s1 + $0x10] sm:$0xff]
  %v1398 = vld [vmem:[%s1 + $0x18] sm:$0xff]
  %v1399 = vld [vmem:[%s1 + $0x20] sm:$0xff]
  %v1400 = vld [vmem:[%s1 + $0x28] sm:$0xff]
  %v1401 = vld [vmem:[%s1 + $0x30] sm:$0xff]
  %v1402 = vld [vmem:[%s1 + $0x38] sm:$0xff]
  %v1403 = vld [vmem:[%s1 + $0x40] sm:$0xff]
  %v1404 = vld [vmem:[%s1 + $0x48] sm:$0xff]
  %v1405 = vld [vmem:[%s1 + $0x50] sm:$0xff]
  %v1406 = vld [vmem:[%s1 + $0x58] sm:$0xff]
  %v1407 = vld [vmem:[%s1 + $0x60] sm:$0xff]
  %v1408 = vld [vmem:[%s1 + $0x68] sm:$0xff]
  %v1409 = vld [vmem:[%s1 + $0x70] sm:$0xff]
  %v1410 = vld [vmem:[%s1 + $0x78] sm:$0xff]
  %v1411 = vld [vmem:[%s1 + $0x80] sm:$0xff]
  %v1412 = vld [vmem:[%s1 + $0x88] sm:$0xff]
  %v1413 = vld [vmem:[%s1 + $0x90] sm:$0xff]
  %v1414 = vld [vmem:[%s1 + $0x98] sm:$0xff]
  %v1415 = vld [vmem:[%s1 + $0xa0] sm:$0xff]
  %v1416 = vld [vmem:[%s1 + $0xa8] sm:$0xff]
  %v1417 = vld [vmem:[%s1 + $0xb0] sm:$0xff]
  %v1418 = vld [vmem:[%s1 + $0xb8] sm:$0xff]
  %v1419 = vld [vmem:[%s1 + $0xc0] sm:$0xff]
  %v1420 = vld [vmem:[%s1 + $0xc8] sm:$0xff]
  %v1421 = vld [vmem:[%s1 + $0xd0] sm:$0xff]
  %v1422 = vld [vmem:[%s1 + $0xd8] sm:$0xff]
  %v1423 = vld [vmem:[%s1 + $0xe0] sm:$0xff]
  %v1424 = vld [vmem:[%s1 + $0xe8] sm:$0xff]
  %v1425 = vld [vmem:[%s1 + $0xf0] sm:$0xff]
  %v1426 = vld [vmem:[%s1 + $0xf8] sm:$0xff]
  %v1427 = vld [vmem:[%s1 + $0x100] sm:$0xff]
  %v1428 = vld [vmem:[%s1 + $0x108] sm:$0xff]
  %v1429 = vld [vmem:[%s1 + $0x110] sm:$0xff]
  %v1430 = vld [vmem:[%s1 + $0x118] sm:$0xff]
  %v1431 = vld [vmem:[%s1 + $0x120] sm:$0xff]
  %v1432 = vld [vmem:[%s1 + $0x128] sm:$0xff]
  %v1433 = vld [vmem:[%s1 + $0x130] sm:$0xff]
  %v1434 = vld [vmem:[%s1 + $0x138] sm:$0xff]
  %v1435 = vld [vmem:[%s1 + $0x140] sm:$0xff]
  %v1436 = vld [vmem:[%s1 + $0x148] sm:$0xff]
  %v1437 = vld [vmem:[%s1 + $0x150] sm:$0xff]
  %v1438 = vld [vmem:[%s1 + $0x158] sm:$0xff]
  %v1439 = vld [vmem:[%s1 + $0x160] sm:$0xff]
  %v1440 = vld [vmem:[%s1 + $0x168] sm:$0xff]
  %v1441 = vld [vmem:[%s1 + $0x170] sm:$0xff]
  %v1442 = vld [vmem:[%s1 + $0x178] sm:$0xff]
  %v1443 = vld [vmem:[%s1 + $0x180] sm:$0xff]
  %v1444 = vld [vmem:[%s1 + $0x188] sm:$0xff]
  %v1445 = vld [vmem:[%s1 + $0x190] sm:$0xff]
  %v1446 = vld [vmem:[%s1 + $0x198] sm:$0xff]
  %v1447 = vld [vmem:[%s1 + $0x1a0] sm:$0xff]
  %v1448 = vld [vmem:[%s1 + $0x1a8] sm:$0xff]
  %v1449 = vld [vmem:[%s1 + $0x1b0] sm:$0xff]
  %v1450 = vld [vmem:[%s1 + $0x1b8] sm:$0xff]
  %v1451 = vld [vmem:[%s1 + $0x1c0] sm:$0xff]
  %v1452 = vld [vmem:[%s1 + $0x1c8] sm:$0xff]
  %v1453 = vld [vmem:[%s1 + $0x1d0] sm:$0xff]
  %v1454 = vld [vmem:[%s1 + $0x1d8] sm:$0xff]
  %v1455 = vld [vmem:[%s1 + $0x1e0] sm:$0xff]
  %v1456 = vld [vmem:[%s1 + $0x1e8] sm:$0xff]
  %v1457 = vld [vmem:[%s1 + $0x1f0] sm:$0xff]
  %v1458 = vld [vmem:[%s1 + $0x1f8] sm:$0xff]
  %v1459 = vld [vmem:[%s2 + $0xa0] sm:$0xff]
  %v1460 = vld [vmem:[%s2 + $0xa8] sm:$0xff]
  %v1461 = vld [vmem:[%s2 + $0xb0] sm:$0xff]
  %v1462 = vld [vmem:[%s2 + $0xb8] sm:$0xff]
  %v1464 = vsel %vm90, %v1395, 0
  %v1467 = vsel %vm90, %v1396, 0
  %v1470 = vsel %vm90, %v1397, 0
  %v1473 = vsel %vm90, %v1398, 0
  %v1476 = vsel %vm90, %v1399, 0
  %v1479 = vsel %vm90, %v1400, 0
  %v1482 = vsel %vm90, %v1401, 0
  %v1485 = vsel %vm90, %v1402, 0
  %v1488 = vsel %vm90, %v1403, 0
  %v1491 = vsel %vm90, %v1404, 0
  %v1494 = vsel %vm90, %v1405, 0
  %v1497 = vsel %vm90, %v1406, 0
  %v1500 = vsel %vm90, %v1407, 0
  %v1503 = vsel %vm90, %v1408, 0
  %v1506 = vsel %vm90, %v1409, 0
  %v1509 = vsel %vm90, %v1410, 0
  %v1512 = vsel %vm90, %v1411, 0
  %v1515 = vsel %vm90, %v1412, 0
  %v1518 = vsel %vm90, %v1413, 0
  %v1521 = vsel %vm90, %v1414, 0
  %v1524 = vsel %vm90, %v1415, 0
  %v1527 = vsel %vm90, %v1416, 0
  %v1530 = vsel %vm90, %v1417, 0
  %v1533 = vsel %vm90, %v1418, 0
  %v1536 = vsel %vm90, %v1419, 0
  %v1539 = vsel %vm90, %v1420, 0
  %v1542 = vsel %vm90, %v1421, 0
  %v1545 = vsel %vm90, %v1422, 0
  %v1548 = vsel %vm90, %v1423, 0
  %v1551 = vsel %vm90, %v1424, 0
  %v1554 = vsel %vm90, %v1425, 0
  %v1557 = vsel %vm90, %v1426, 0
  %v1560 = vsel %vm90, %v1427, 0
  %v1563 = vsel %vm90, %v1428, 0
  %v1566 = vsel %vm90, %v1429, 0
  %v1569 = vsel %vm90, %v1430, 0
  %v1572 = vsel %vm90, %v1431, 0
  %v1575 = vsel %vm90, %v1432, 0
  %v1578 = vsel %vm90, %v1433, 0
  %v1581 = vsel %vm90, %v1434, 0
  %v1584 = vsel %vm90, %v1435, 0
  %v1587 = vsel %vm90, %v1436, 0
  %v1590 = vsel %vm90, %v1437, 0
  %v1593 = vsel %vm90, %v1438, 0
  %v1596 = vsel %vm90, %v1439, 0
  %v1599 = vsel %vm90, %v1440, 0
  %v1602 = vsel %vm90, %v1441, 0
  %v1605 = vsel %vm90, %v1442, 0
  %v1608 = vsel %vm90, %v1443, 0
  %v1611 = vsel %vm90, %v1444, 0
  %v1614 = vsel %vm90, %v1445, 0
  %v1617 = vsel %vm90, %v1446, 0
  %v1620 = vsel %vm90, %v1447, 0
  %v1623 = vsel %vm90, %v1448, 0
  %v1626 = vsel %vm90, %v1449, 0
  %v1629 = vsel %vm90, %v1450, 0
  %v1632 = vsel %vm90, %v1451, 0
  %v1635 = vsel %vm90, %v1452, 0
  %v1638 = vsel %vm90, %v1453, 0
  %v1641 = vsel %vm90, %v1454, 0
  %v1644 = vsel %vm90, %v1455, 0
  %v1647 = vsel %vm90, %v1456, 0
  %v1650 = vsel %vm90, %v1457, 0
  %v1653 = vsel %vm90, %v1458, 0
  %1655 = vmatprep.subr.mxu0 0.0
  %1656 = vmatpush1.msra.mxu0 %v1459
  %1657 = vmatprep.subr.mxu0 0.0
  %1658 = vmatpush1.msra.mxu0 %v1460
  %1659 = vmatprep.subr.mxu0 0.0
  %1660 = vmatpush1.msra.mxu0 %v1461
  %1661 = vmatprep.subr.mxu0 0.0
  %1662 = vmatpush1.msra.mxu0 %v1462
  %1663 = vmatprep.subr.mxu0 0.0
  %1664 = vmatpush1.msra.mxu0 0.0
  %1665 = vmatprep.subr.mxu0 0.0
  %1666 = vmatpush1.msra.mxu0 0.0
  %1667 = vmatprep.subr.mxu0 0.0
  %1668 = vmatpush1.msra.mxu0 0.0
  %1669 = vmatprep.subr.mxu0 0.0
  %1670 = vmatpush1.msra.mxu0 0.0
  %1671 = vmatprep.subr.mxu0 0.0
  %1672 = vmatpush1.msra.mxu0 0.0
  %1673 = vmatprep.subr.mxu0 0.0
  %1674 = vmatpush1.msra.mxu0 0.0
  %1675 = vmatprep.subr.mxu0 0.0
  %1676 = vmatpush1.msra.mxu0 0.0
  %1677 = vmatprep.subr.mxu0 0.0
  %1678 = vmatpush1.msra.mxu0 0.0
  %1679 = vmatprep.subr.mxu0 0.0
  %1680 = vmatpush1.msra.mxu0 0.0
  %1681 = vmatprep.subr.mxu0 0.0
  %1682 = vmatpush1.msra.mxu0 0.0
  %1683 = vmatprep.subr.mxu0 0.0
  %1684 = vmatpush1.msra.mxu0 0.0
  %1685 = vmatprep.subr.mxu0 0.0
  %1686 = vmatpush1.msra.mxu0 0.0
  %1687 = vmatprep.subr.mxu0 0.0
  %1688 = vmatpush1.msra.mxu0 0.0
  %1689 = vmatprep.subr.mxu0 0.0
  %1690 = vmatpush1.msra.mxu0 0.0
  %1691 = vmatprep.subr.mxu0 0.0
  %1692 = vmatpush1.msra.mxu0 0.0
  %1693 = vmatprep.subr.mxu0 0.0
  %1694 = vmatpush1.msra.mxu0 0.0
  %1695 = vmatprep.subr.mxu0 0.0
  %1696 = vmatpush1.msra.mxu0 0.0
  %1697 = vmatprep.subr.mxu0 0.0
  %1698 = vmatpush1.msra.mxu0 0.0
  %1699 = vmatprep.subr.mxu0 0.0
  %1700 = vmatpush1.msra.mxu0 0.0
  %1701 = vmatprep.subr.mxu0 0.0
  %1702 = vmatpush1.msra.mxu0 0.0
  %1703 = vmatprep.subr.mxu0 0.0
  %1704 = vmatpush1.msra.mxu0 0.0
  %1705 = vmatprep.subr.mxu0 0.0
  %1706 = vmatpush1.msra.mxu0 0.0
  %1707 = vmatprep.subr.mxu0 0.0
  %1708 = vmatpush1.msra.mxu0 0.0
  %1709 = vmatprep.subr.mxu0 0.0
  %1710 = vmatpush1.msra.mxu0 0.0
  %1711 = vmatprep.subr.mxu0 0.0
  %1712 = vmatpush1.msra.mxu0 0.0
  %1713 = vmatprep.subr.mxu0 0.0
  %1714 = vmatpush1.msra.mxu0 0.0
  %1715 = vmatprep.subr.mxu0 0.0
  %1716 = vmatpush1.msra.mxu0 0.0
  %1717 = vmatprep.subr.mxu0 0.0
  %1718 = vmatpush1.msra.mxu0 0.0
  %1719 = vmatprep.mubr.f32.mxu0 0.0
  %1720 = vmatmul.mubr.f32.gmra.mrb[0].mxu0 %v1464
  %v1721 = vpop.f32.mrb[0].mxu0
  %v1722 = vadd.f32 0.0, %v1721
  %v1723 = vpop.f32.mrb[0].mxu0
  %1724 = vmatprep.mubr.f32.mxu0 0.0
  %1725 = vmatmul.mubr.f32.gmra.mrb[0].mxu0 %v1467
  %v1726 = vpop.f32.mrb[0].mxu0
  %v1727 = vadd.f32 0.0, %v1726
  %v1728 = vpop.f32.mrb[0].mxu0
  %1729 = vmatprep.mubr.f32.mxu0 0.0
  %1730 = vmatmul.mubr.f32.gmra.mrb[0].mxu0 %v1470
  %v1731 = vpop.f32.mrb[0].mxu0
  %v1732 = vadd.f32 0.0, %v1731
  %v1733 = vpop.f32.mrb[0].mxu0
  %1734 = vmatprep.mubr.f32.mxu0 0.0
  %1735 = vmatmul.mubr.f32.gmra.mrb[0].mxu0 %v1473
  %v1736 = vpop.f32.mrb[0].mxu0
  %v1737 = vadd.f32 0.0, %v1736
  %v1738 = vpop.f32.mrb[0].mxu0
  %1739 = vmatprep.mubr.f32.mxu0 0.0
  %1740 = vmatmul.mubr.f32.gmra.mrb[0].mxu0 %v1476
  %v1741 = vpop.f32.mrb[0].mxu0
  %v1742 = vadd.f32 0.0, %v1741
  %v1743 = vpop.f32.mrb[0].mxu0
  %1744 = vmatprep.mubr.f32.mxu0 0.0
  %1745 = vmatmul.mubr.f32.gmra.mrb[0].mxu0 %v1479
  %v1746 = vpop.f32.mrb[0].mxu0
  %v1747 = vadd.f32 0.0, %v1746
  %v1748 = vpop.f32.mrb[0].mxu0
  %1749 = vmatprep.mubr.f32.mxu0 0.0
  %1750 = vmatmul.mubr.f32.gmra.mrb[0].mxu0 %v1482
  %v1751 = vpop.f32.mrb[0].mxu0
  %v1752 = vadd.f32 0.0, %v1751
  %v1753 = vpop.f32.mrb[0].mxu0
  %1754 = vmatprep.mubr.f32.mxu0 0.0
  %1755 = vmatmul.mubr.f32.gmra.mrb[0].mxu0 %v1485
  %v1756 = vpop.f32.mrb[0].mxu0
  %v1757 = vadd.f32 0.0, %v1756
  %v1758 = vpop.f32.mrb[0].mxu0
  %1759 = vmatprep.mubr.f32.mxu0 0.0
  %1760 = vmatmul.mubr.f32.gmra.mrb[0].mxu0 %v1488
  %v1761 = vpop.f32.mrb[0].mxu0
  %v1762 = vadd.f32 0.0, %v1761
  %v1763 = vpop.f32.mrb[0].mxu0
  %1764 = vmatprep.mubr.f32.mxu0 0.0
  %1765 = vmatmul.mubr.f32.gmra.mrb[0].mxu0 %v1491
  %v1766 = vpop.f32.mrb[0].mxu0
  %v1767 = vadd.f32 0.0, %v1766
  %v1768 = vpop.f32.mrb[0].mxu0
  %1769 = vmatprep.mubr.f32.mxu0 0.0
  %1770 = vmatmul.mubr.f32.gmra.mrb[0].mxu0 %v1494
  %v1771 = vpop.f32.mrb[0].mxu0
  %v1772 = vadd.f32 0.0, %v1771
  %v1773 = vpop.f32.mrb[0].mxu0
  %1774 = vmatprep.mubr.f32.mxu0 0.0
  %1775 = vmatmul.mubr.f32.gmra.mrb[0].mxu0 %v1497
  %v1776 = vpop.f32.mrb[0].mxu0
  %v1777 = vadd.f32 0.0, %v1776
  %v1778 = vpop.f32.mrb[0].mxu0
  %1779 = vmatprep.mubr.f32.mxu0 0.0
  %1780 = vmatmul.mubr.f32.gmra.mrb[0].mxu0 %v1500
  %v1781 = vpop.f32.mrb[0].mxu0
  %v1782 = vadd.f32 0.0, %v1781
  %v1783 = vpop.f32.mrb[0].mxu0
  %1784 = vmatprep.mubr.f32.mxu0 0.0
  %1785 = vmatmul.mubr.f32.gmra.mrb[0].mxu0 %v1503
  %v1786 = vpop.f32.mrb[0].mxu0
  %v1787 = vadd.f32 0.0, %v1786
  %v1788 = vpop.f32.mrb[0].mxu0
  %1789 = vmatprep.mubr.f32.mxu0 0.0
  %1790 = vmatmul.mubr.f32.gmra.mrb[0].mxu0 %v1506
  %v1791 = vpop.f32.mrb[0].mxu0
  %v1792 = vadd.f32 0.0, %v1791
  %v1793 = vpop.f32.mrb[0].mxu0
  %1794 = vmatprep.mubr.f32.mxu0 0.0
  %1795 = vmatmul.mubr.f32.gmra.mrb[0].mxu0 %v1509
  %v1796 = vpop.f32.mrb[0].mxu0
  %v1797 = vadd.f32 0.0, %v1796
  %v1798 = vpop.f32.mrb[0].mxu0
  %1799 = vmatprep.mubr.f32.mxu0 0.0
  %1800 = vmatmul.mubr.f32.gmra.mrb[0].mxu0 %v1512
  %v1801 = vpop.f32.mrb[0].mxu0
  %v1802 = vadd.f32 0.0, %v1801
  %v1803 = vpop.f32.mrb[0].mxu0
  %1804 = vmatprep.mubr.f32.mxu0 0.0
  %1805 = vmatmul.mubr.f32.gmra.mrb[0].mxu0 %v1515
  %v1806 = vpop.f32.mrb[0].mxu0
  %v1807 = vadd.f32 0.0, %v1806
  %v1808 = vpop.f32.mrb[0].mxu0
  %1809 = vmatprep.mubr.f32.mxu0 0.0
  %1810 = vmatmul.mubr.f32.gmra.mrb[0].mxu0 %v1518
  %v1811 = vpop.f32.mrb[0].mxu0
  %v1812 = vadd.f32 0.0, %v1811
  %v1813 = vpop.f32.mrb[0].mxu0
  %1814 = vmatprep.mubr.f32.mxu0 0.0
  %1815 = vmatmul.mubr.f32.gmra.mrb[0].mxu0 %v1521
  %v1816 = vpop.f32.mrb[0].mxu0
  %v1817 = vadd.f32 0.0, %v1816
  %v1818 = vpop.f32.mrb[0].mxu0
  %1819 = vmatprep.mubr.f32.mxu0 0.0
  %1820 = vmatmul.mubr.f32.gmra.mrb[0].mxu0 %v1524
  %v1821 = vpop.f32.mrb[0].mxu0
  %v1822 = vadd.f32 0.0, %v1821
  %v1823 = vpop.f32.mrb[0].mxu0
  %1824 = vmatprep.mubr.f32.mxu0 0.0
  %1825 = vmatmul.mubr.f32.gmra.mrb[0].mxu0 %v1527
  %v1826 = vpop.f32.mrb[0].mxu0
  %v1827 = vadd.f32 0.0, %v1826
  %v1828 = vpop.f32.mrb[0].mxu0
  %1829 = vmatprep.mubr.f32.mxu0 0.0
  %1830 = vmatmul.mubr.f32.gmra.mrb[0].mxu0 %v1530
  %v1831 = vpop.f32.mrb[0].mxu0
  %v1832 = vadd.f32 0.0, %v1831
  %v1833 = vpop.f32.mrb[0].mxu0
  %1834 = vmatprep.mubr.f32.mxu0 0.0
  %1835 = vmatmul.mubr.f32.gmra.mrb[0].mxu0 %v1533
  %v1836 = vpop.f32.mrb[0].mxu0
  %v1837 = vadd.f32 0.0, %v1836
  %v1838 = vpop.f32.mrb[0].mxu0
  %1839 = vmatprep.mubr.f32.mxu0 0.0
  %1840 = vmatmul.mubr.f32.gmra.mrb[0].mxu0 %v1536
  %v1841 = vpop.f32.mrb[0].mxu0
  %v1842 = vadd.f32 0.0, %v1841
  %v1843 = vpop.f32.mrb[0].mxu0
  %1844 = vmatprep.mubr.f32.mxu0 0.0
  %1845 = vmatmul.mubr.f32.gmra.mrb[0].mxu0 %v1539
  %v1846 = vpop.f32.mrb[0].mxu0
  %v1847 = vadd.f32 0.0, %v1846
  %v1848 = vpop.f32.mrb[0].mxu0
  %1849 = vmatprep.mubr.f32.mxu0 0.0
  %1850 = vmatmul.mubr.f32.gmra.mrb[0].mxu0 %v1542
  %v1851 = vpop.f32.mrb[0].mxu0
  %v1852 = vadd.f32 0.0, %v1851
  %v1853 = vpop.f32.mrb[0].mxu0
  %1854 = vmatprep.mubr.f32.mxu0 0.0
  %1855 = vmatmul.mubr.f32.gmra.mrb[0].mxu0 %v1545
  %v1856 = vpop.f32.mrb[0].mxu0
  %v1857 = vadd.f32 0.0, %v1856
  %v1858 = vpop.f32.mrb[0].mxu0
  %1859 = vmatprep.mubr.f32.mxu0 0.0
  %1860 = vmatmul.mubr.f32.gmra.mrb[0].mxu0 %v1548
  %v1861 = vpop.f32.mrb[0].mxu0
  %v1862 = vadd.f32 0.0, %v1861
  %v1863 = vpop.f32.mrb[0].mxu0
  %1864 = vmatprep.mubr.f32.mxu0 0.0
  %1865 = vmatmul.mubr.f32.gmra.mrb[0].mxu0 %v1551
  %v1866 = vpop.f32.mrb[0].mxu0
  %v1867 = vadd.f32 0.0, %v1866
  %v1868 = vpop.f32.mrb[0].mxu0
  %1869 = vmatprep.mubr.f32.mxu0 0.0
  %1870 = vmatmul.mubr.f32.gmra.mrb[0].mxu0 %v1554
  %v1871 = vpop.f32.mrb[0].mxu0
  %v1872 = vadd.f32 0.0, %v1871
  %v1873 = vpop.f32.mrb[0].mxu0
  %1874 = vmatprep.mubr.f32.mxu0 0.0
  %1875 = vmatmul.mubr.f32.gmra.mrb[0].mxu0 %v1557
  %v1876 = vpop.f32.mrb[0].mxu0
  %v1877 = vadd.f32 0.0, %v1876
  %v1878 = vpop.f32.mrb[0].mxu0
  %1879 = vmatprep.mubr.f32.mxu0 0.0
  %1880 = vmatmul.mubr.f32.gmra.mrb[0].mxu0 %v1560
  %v1881 = vpop.f32.mrb[0].mxu0
  %v1882 = vadd.f32 0.0, %v1881
  %v1883 = vpop.f32.mrb[0].mxu0
  %1884 = vmatprep.mubr.f32.mxu0 0.0
  %1885 = vmatmul.mubr.f32.gmra.mrb[0].mxu0 %v1563
  %v1886 = vpop.f32.mrb[0].mxu0
  %v1887 = vadd.f32 0.0, %v1886
  %v1888 = vpop.f32.mrb[0].mxu0
  %1889 = vmatprep.mubr.f32.mxu0 0.0
  %1890 = vmatmul.mubr.f32.gmra.mrb[0].mxu0 %v1566
  %v1891 = vpop.f32.mrb[0].mxu0
  %v1892 = vadd.f32 0.0, %v1891
  %v1893 = vpop.f32.mrb[0].mxu0
  %1894 = vmatprep.mubr.f32.mxu0 0.0
  %1895 = vmatmul.mubr.f32.gmra.mrb[0].mxu0 %v1569
  %v1896 = vpop.f32.mrb[0].mxu0
  %v1897 = vadd.f32 0.0, %v1896
  %v1898 = vpop.f32.mrb[0].mxu0
  %1899 = vmatprep.mubr.f32.mxu0 0.0
  %1900 = vmatmul.mubr.f32.gmra.mrb[0].mxu0 %v1572
  %v1901 = vpop.f32.mrb[0].mxu0
  %v1902 = vadd.f32 0.0, %v1901
  %v1903 = vpop.f32.mrb[0].mxu0
  %1904 = vmatprep.mubr.f32.mxu0 0.0
  %1905 = vmatmul.mubr.f32.gmra.mrb[0].mxu0 %v1575
  %v1906 = vpop.f32.mrb[0].mxu0
  %v1907 = vadd.f32 0.0, %v1906
  %v1908 = vpop.f32.mrb[0].mxu0
  %1909 = vmatprep.mubr.f32.mxu0 0.0
  %1910 = vmatmul.mubr.f32.gmra.mrb[0].mxu0 %v1578
  %v1911 = vpop.f32.mrb[0].mxu0
  %v1912 = vadd.f32 0.0, %v1911
  %v1913 = vpop.f32.mrb[0].mxu0
  %1914 = vmatprep.mubr.f32.mxu0 0.0
  %1915 = vmatmul.mubr.f32.gmra.mrb[0].mxu0 %v1581
  %v1916 = vpop.f32.mrb[0].mxu0
  %v1917 = vadd.f32 0.0, %v1916
  %v1918 = vpop.f32.mrb[0].mxu0
  %1919 = vmatprep.mubr.f32.mxu0 0.0
  %1920 = vmatmul.mubr.f32.gmra.mrb[0].mxu0 %v1584
  %v1921 = vpop.f32.mrb[0].mxu0
  %v1922 = vadd.f32 0.0, %v1921
  %v1923 = vpop.f32.mrb[0].mxu0
  %1924 = vmatprep.mubr.f32.mxu0 0.0
  %1925 = vmatmul.mubr.f32.gmra.mrb[0].mxu0 %v1587
  %v1926 = vpop.f32.mrb[0].mxu0
  %v1927 = vadd.f32 0.0, %v1926
  %v1928 = vpop.f32.mrb[0].mxu0
  %1929 = vmatprep.mubr.f32.mxu0 0.0
  %1930 = vmatmul.mubr.f32.gmra.mrb[0].mxu0 %v1590
  %v1931 = vpop.f32.mrb[0].mxu0
  %v1932 = vadd.f32 0.0, %v1931
  %v1933 = vpop.f32.mrb[0].mxu0
  %1934 = vmatprep.mubr.f32.mxu0 0.0
  %1935 = vmatmul.mubr.f32.gmra.mrb[0].mxu0 %v1593
  %v1936 = vpop.f32.mrb[0].mxu0
  %v1937 = vadd.f32 0.0, %v1936
  %v1938 = vpop.f32.mrb[0].mxu0
  %1939 = vmatprep.mubr.f32.mxu0 0.0
  %1940 = vmatmul.mubr.f32.gmra.mrb[0].mxu0 %v1596
  %v1941 = vpop.f32.mrb[0].mxu0
  %v1942 = vadd.f32 0.0, %v1941
  %v1943 = vpop.f32.mrb[0].mxu0
  %1944 = vmatprep.mubr.f32.mxu0 0.0
  %1945 = vmatmul.mubr.f32.gmra.mrb[0].mxu0 %v1599
  %v1946 = vpop.f32.mrb[0].mxu0
  %v1947 = vadd.f32 0.0, %v1946
  %v1948 = vpop.f32.mrb[0].mxu0
  %1949 = vmatprep.mubr.f32.mxu0 0.0
  %1950 = vmatmul.mubr.f32.gmra.mrb[0].mxu0 %v1602
  %v1951 = vpop.f32.mrb[0].mxu0
  %v1952 = vadd.f32 0.0, %v1951
  %v1953 = vpop.f32.mrb[0].mxu0
  %1954 = vmatprep.mubr.f32.mxu0 0.0
  %1955 = vmatmul.mubr.f32.gmra.mrb[0].mxu0 %v1605
  %v1956 = vpop.f32.mrb[0].mxu0
  %v1957 = vadd.f32 0.0, %v1956
  %v1958 = vpop.f32.mrb[0].mxu0
  %1959 = vmatprep.mubr.f32.mxu0 0.0
  %1960 = vmatmul.mubr.f32.gmra.mrb[0].mxu0 %v1608
  %v1961 = vpop.f32.mrb[0].mxu0
  %v1962 = vadd.f32 0.0, %v1961
  %v1963 = vpop.f32.mrb[0].mxu0
  %1964 = vmatprep.mubr.f32.mxu0 0.0
  %1965 = vmatmul.mubr.f32.gmra.mrb[0].mxu0 %v1611
  %v1966 = vpop.f32.mrb[0].mxu0
  %v1967 = vadd.f32 0.0, %v1966
  %v1968 = vpop.f32.mrb[0].mxu0
  %1969 = vmatprep.mubr.f32.mxu0 0.0
  %1970 = vmatmul.mubr.f32.gmra.mrb[0].mxu0 %v1614
  %v1971 = vpop.f32.mrb[0].mxu0
  %v1972 = vadd.f32 0.0, %v1971
  %v1973 = vpop.f32.mrb[0].mxu0
  %1974 = vmatprep.mubr.f32.mxu0 0.0
  %1975 = vmatmul.mubr.f32.gmra.mrb[0].mxu0 %v1617
  %v1976 = vpop.f32.mrb[0].mxu0
  %v1977 = vadd.f32 0.0, %v1976
  %v1978 = vpop.f32.mrb[0].mxu0
  %1979 = vmatprep.mubr.f32.mxu0 0.0
  %1980 = vmatmul.mubr.f32.gmra.mrb[0].mxu0 %v1620
  %v1981 = vpop.f32.mrb[0].mxu0
  %v1982 = vadd.f32 0.0, %v1981
  %v1983 = vpop.f32.mrb[0].mxu0
  %1984 = vmatprep.mubr.f32.mxu0 0.0
  %1985 = vmatmul.mubr.f32.gmra.mrb[0].mxu0 %v1623
  %v1986 = vpop.f32.mrb[0].mxu0
  %v1987 = vadd.f32 0.0, %v1986
  %v1988 = vpop.f32.mrb[0].mxu0
  %1989 = vmatprep.mubr.f32.mxu0 0.0
  %1990 = vmatmul.mubr.f32.gmra.mrb[0].mxu0 %v1626
  %v1991 = vpop.f32.mrb[0].mxu0
  %v1992 = vadd.f32 0.0, %v1991
  %v1993 = vpop.f32.mrb[0].mxu0
  %1994 = vmatprep.mubr.f32.mxu0 0.0
  %1995 = vmatmul.mubr.f32.gmra.mrb[0].mxu0 %v1629
  %v1996 = vpop.f32.mrb[0].mxu0
  %v1997 = vadd.f32 0.0, %v1996
  %v1998 = vpop.f32.mrb[0].mxu0
  %1999 = vmatprep.mubr.f32.mxu0 0.0
  %2000 = vmatmul.mubr.f32.gmra.mrb[0].mxu0 %v1632
  %v2001 = vpop.f32.mrb[0].mxu0
  %v2002 = vadd.f32 0.0, %v2001
  %v2003 = vpop.f32.mrb[0].mxu0
  %2004 = vmatprep.mubr.f32.mxu0 0.0
  %2005 = vmatmul.mubr.f32.gmra.mrb[0].mxu0 %v1635
  %v2006 = vpop.f32.mrb[0].mxu0
  %v2007 = vadd.f32 0.0, %v2006
  %v2008 = vpop.f32.mrb[0].mxu0
  %2009 = vmatprep.mubr.f32.mxu0 0.0
  %2010 = vmatmul.mubr.f32.gmra.mrb[0].mxu0 %v1638
  %v2011 = vpop.f32.mrb[0].mxu0
  %v2012 = vadd.f32 0.0, %v2011
  %v2013 = vpop.f32.mrb[0].mxu0
  %2014 = vmatprep.mubr.f32.mxu0 0.0
  %2015 = vmatmul.mubr.f32.gmra.mrb[0].mxu0 %v1641
  %v2016 = vpop.f32.mrb[0].mxu0
  %v2017 = vadd.f32 0.0, %v2016
  %v2018 = vpop.f32.mrb[0].mxu0
  %2019 = vmatprep.mubr.f32.mxu0 0.0
  %2020 = vmatmul.mubr.f32.gmra.mrb[0].mxu0 %v1644
  %v2021 = vpop.f32.mrb[0].mxu0
  %v2022 = vadd.f32 0.0, %v2021
  %v2023 = vpop.f32.mrb[0].mxu0
  %2024 = vmatprep.mubr.f32.mxu0 0.0
  %2025 = vmatmul.mubr.f32.gmra.mrb[0].mxu0 %v1647
  %v2026 = vpop.f32.mrb[0].mxu0
  %v2027 = vadd.f32 0.0, %v2026
  %v2028 = vpop.f32.mrb[0].mxu0
  %2029 = vmatprep.mubr.f32.mxu0 0.0
  %2030 = vmatmul.mubr.f32.gmra.mrb[0].mxu0 %v1650
  %v2031 = vpop.f32.mrb[0].mxu0
  %v2032 = vadd.f32 0.0, %v2031
  %v2033 = vpop.f32.mrb[0].mxu0
  %2034 = vmatprep.mubr.f32.mxu0 0.0
  %2035 = vmatmul.mubr.f32.gmra.mrb[0].mxu0 %v1653
  %v2036 = vpop.f32.mrb[0].mxu0
  %v2037 = vadd.f32 0.0, %v2036
  %v2038 = vpop.f32.mrb[0].mxu0
  %2039 = vdwg.mxu0
  %v2041 = vsel %vm745, %v1323, 0
  %v2044 = vsel %vm745, %v1324, 0
  %v2047 = vsel %vm745, %v1325, 0
  %v2050 = vsel %vm745, %v1326, 0
  %v2053 = vsel %vm745, %v1327, 0
  %v2056 = vsel %vm745, %v1328, 0
  %v2059 = vsel %vm745, %v1329, 0
  %v2062 = vsel %vm745, %v1330, 0
  %v2065 = vsel %vm745, %v1331, 0
  %v2068 = vsel %vm745, %v1332, 0
  %v2071 = vsel %vm745, %v1333, 0
  %v2074 = vsel %vm745, %v1334, 0
  %v2077 = vsel %vm745, %v1335, 0
  %v2080 = vsel %vm745, %v1336, 0
  %v2083 = vsel %vm745, %v1337, 0
  %v2086 = vsel %vm745, %v1338, 0
  %v2089 = vsel %vm745, %v1339, 0
  %v2092 = vsel %vm745, %v1340, 0
  %v2095 = vsel %vm745, %v1341, 0
  %v2098 = vsel %vm745, %v1342, 0
  %v2101 = vsel %vm745, %v1343, 0
  %v2104 = vsel %vm745, %v1344, 0
  %v2107 = vsel %vm745, %v1345, 0
  %v2110 = vsel %vm745, %v1346, 0
  %v2113 = vsel %vm745, %v1347, 0
  %v2116 = vsel %vm745, %v1348, 0
  %v2119 = vsel %vm745, %v1349, 0
  %v2122 = vsel %vm745, %v1350, 0
  %v2125 = vsel %vm745, %v1351, 0
  %v2128 = vsel %vm745, %v1352, 0
  %v2131 = vsel %vm745, %v1353, 0
  %v2134 = vsel %vm745, %v1354, 0
  %v2137 = vsel %vm745, %v1355, 0
  %v2140 = vsel %vm745, %v1356, 0
  %v2143 = vsel %vm745, %v1357, 0
  %v2146 = vsel %vm745, %v1358, 0
  %v2149 = vsel %vm745, %v1359, 0
  %v2152 = vsel %vm745, %v1360, 0
  %v2155 = vsel %vm745, %v1361, 0
  %v2158 = vsel %vm745, %v1362, 0
  %v2161 = vsel %vm745, %v1363, 0
  %v2164 = vsel %vm745, %v1364, 0
  %v2167 = vsel %vm745, %v1365, 0
  %v2170 = vsel %vm745, %v1366, 0
  %v2173 = vsel %vm745, %v1367, 0
  %v2176 = vsel %vm745, %v1368, 0
  %v2179 = vsel %vm745, %v1369, 0
  %v2182 = vsel %vm745, %v1370, 0
  %v2185 = vsel %vm745, %v1371, 0
  %v2188 = vsel %vm745, %v1372, 0
  %v2191 = vsel %vm745, %v1373, 0
  %v2194 = vsel %vm745, %v1374, 0
  %v2197 = vsel %vm745, %v1375, 0
  %v2200 = vsel %vm745, %v1376, 0
  %v2203 = vsel %vm745, %v1377, 0
  %v2206 = vsel %vm745, %v1378, 0
  %v2209 = vsel %vm745, %v1379, 0
  %v2212 = vsel %vm745, %v1380, 0
  %v2215 = vsel %vm745, %v1381, 0
  %v2218 = vsel %vm745, %v1382, 0
  %v2221 = vsel %vm745, %v1383, 0
  %v2224 = vsel %vm745, %v1384, 0
  %v2227 = vsel %vm745, %v1385, 0
  %v2230 = vsel %vm745, %v1386, 0
  %2232 = vmatprep.subr.mxu0 0.0
  %2233 = vmatpush1.msra.mxu0 %v1387
  %2234 = vmatprep.subr.mxu0 0.0
  %2235 = vmatpush1.msra.mxu0 %v1388
  %2236 = vmatprep.subr.mxu0 0.0
  %2237 = vmatpush1.msra.mxu0 %v1389
  %2238 = vmatprep.subr.mxu0 0.0
  %2239 = vmatpush1.msra.mxu0 %v1390
  %2240 = vmatprep.subr.mxu0 0.0
  %2241 = vmatpush1.msra.mxu0 %v1391
  %2242 = vmatprep.subr.mxu0 0.0
  %2243 = vmatpush1.msra.mxu0 %v1392
  %2244 = vmatprep.subr.mxu0 0.0
  %2245 = vmatpush1.msra.mxu0 %v1393
  %2246 = vmatprep.subr.mxu0 0.0
  %2247 = vmatpush1.msra.mxu0 %v1394
  %2248 = vmatprep.subr.mxu0 0.0
  %2249 = vmatpush1.msra.mxu0 0.0
  %2250 = vmatprep.subr.mxu0 0.0
  %2251 = vmatpush1.msra.mxu0 0.0
  %2252 = vmatprep.subr.mxu0 0.0
  %2253 = vmatpush1.msra.mxu0 0.0
  %2254 = vmatprep.subr.mxu0 0.0
  %2255 = vmatpush1.msra.mxu0 0.0
  %2256 = vmatprep.subr.mxu0 0.0
  %2257 = vmatpush1.msra.mxu0 0.0
  %2258 = vmatprep.subr.mxu0 0.0
  %2259 = vmatpush1.msra.mxu0 0.0
  %2260 = vmatprep.subr.mxu0 0.0
  %2261 = vmatpush1.msra.mxu0 0.0
  %2262 = vmatprep.subr.mxu0 0.0
  %2263 = vmatpush1.msra.mxu0 0.0
  %2264 = vmatprep.subr.mxu0 0.0
  %2265 = vmatpush1.msra.mxu0 0.0
  %2266 = vmatprep.subr.mxu0 0.0
  %2267 = vmatpush1.msra.mxu0 0.0
  %2268 = vmatprep.subr.mxu0 0.0
  %2269 = vmatpush1.msra.mxu0 0.0
  %2270 = vmatprep.subr.mxu0 0.0
  %2271 = vmatpush1.msra.mxu0 0.0
  %2272 = vmatprep.subr.mxu0 0.0
  %2273 = vmatpush1.msra.mxu0 0.0
  %2274 = vmatprep.subr.mxu0 0.0
  %2275 = vmatpush1.msra.mxu0 0.0
  %2276 = vmatprep.subr.mxu0 0.0
  %2277 = vmatpush1.msra.mxu0 0.0
  %2278 = vmatprep.subr.mxu0 0.0
  %2279 = vmatpush1.msra.mxu0 0.0
  %2280 = vmatprep.subr.mxu0 0.0
  %2281 = vmatpush1.msra.mxu0 0.0
  %2282 = vmatprep.subr.mxu0 0.0
  %2283 = vmatpush1.msra.mxu0 0.0
  %2284 = vmatprep.subr.mxu0 0.0
  %2285 = vmatpush1.msra.mxu0 0.0
  %2286 = vmatprep.subr.mxu0 0.0
  %2287 = vmatpush1.msra.mxu0 0.0
  %2288 = vmatprep.subr.mxu0 0.0
  %2289 = vmatpush1.msra.mxu0 0.0
  %2290 = vmatprep.subr.mxu0 0.0
  %2291 = vmatpush1.msra.mxu0 0.0
  %2292 = vmatprep.subr.mxu0 0.0
  %2293 = vmatpush1.msra.mxu0 0.0
  %2294 = vmatprep.subr.mxu0 0.0
  %2295 = vmatpush1.msra.mxu0 0.0
  %2296 = vmatprep.mubr.f32.mxu0 0.0
  %2297 = vmatmul.mubr.f32.gmra.mrb[0].mxu0 %v2041
  %v2298 = vpop.f32.mrb[0].mxu0
  %v2299 = vadd.f32 %v1722, %v2298
  %v2300 = vpop.f32.mrb[0].mxu0
  %2301 = vmatprep.mubr.f32.mxu0 0.0
  %2302 = vmatmul.mubr.f32.gmra.mrb[0].mxu0 %v2044
  %v2303 = vpop.f32.mrb[0].mxu0
  %v2304 = vadd.f32 %v1727, %v2303
  %v2305 = vpop.f32.mrb[0].mxu0
  %2306 = vmatprep.mubr.f32.mxu0 0.0
  %2307 = vmatmul.mubr.f32.gmra.mrb[0].mxu0 %v2047
  %v2308 = vpop.f32.mrb[0].mxu0
  %v2309 = vadd.f32 %v1732, %v2308
  %v2310 = vpop.f32.mrb[0].mxu0
  %2311 = vmatprep.mubr.f32.mxu0 0.0
  %2312 = vmatmul.mubr.f32.gmra.mrb[0].mxu0 %v2050
  %v2313 = vpop.f32.mrb[0].mxu0
  %v2314 = vadd.f32 %v1737, %v2313
  %v2315 = vpop.f32.mrb[0].mxu0
  %2316 = vmatprep.mubr.f32.mxu0 0.0
  %2317 = vmatmul.mubr.f32.gmra.mrb[0].mxu0 %v2053
  %v2318 = vpop.f32.mrb[0].mxu0
  %v2319 = vadd.f32 %v1742, %v2318
  %v2320 = vpop.f32.mrb[0].mxu0
  %2321 = vmatprep.mubr.f32.mxu0 0.0
  %2322 = vmatmul.mubr.f32.gmra.mrb[0].mxu0 %v2056
  %v2323 = vpop.f32.mrb[0].mxu0
  %v2324 = vadd.f32 %v1747, %v2323
  %v2325 = vpop.f32.mrb[0].mxu0
  %2326 = vmatprep.mubr.f32.mxu0 0.0
  %2327 = vmatmul.mubr.f32.gmra.mrb[0].mxu0 %v2059
  %v2328 = vpop.f32.mrb[0].mxu0
  %v2329 = vadd.f32 %v1752, %v2328
  %v2330 = vpop.f32.mrb[0].mxu0
  %2331 = vmatprep.mubr.f32.mxu0 0.0
  %2332 = vmatmul.mubr.f32.gmra.mrb[0].mxu0 %v2062
  %v2333 = vpop.f32.mrb[0].mxu0
  %v2334 = vadd.f32 %v1757, %v2333
  %v2335 = vpop.f32.mrb[0].mxu0
  %2336 = vmatprep.mubr.f32.mxu0 0.0
  %2337 = vmatmul.mubr.f32.gmra.mrb[0].mxu0 %v2065
  %v2338 = vpop.f32.mrb[0].mxu0
  %v2339 = vadd.f32 %v1762, %v2338
  %v2340 = vpop.f32.mrb[0].mxu0
  %2341 = vmatprep.mubr.f32.mxu0 0.0
  %2342 = vmatmul.mubr.f32.gmra.mrb[0].mxu0 %v2068
  %v2343 = vpop.f32.mrb[0].mxu0
  %v2344 = vadd.f32 %v1767, %v2343
  %v2345 = vpop.f32.mrb[0].mxu0
  %2346 = vmatprep.mubr.f32.mxu0 0.0
  %2347 = vmatmul.mubr.f32.gmra.mrb[0].mxu0 %v2071
  %v2348 = vpop.f32.mrb[0].mxu0
  %v2349 = vadd.f32 %v1772, %v2348
  %v2350 = vpop.f32.mrb[0].mxu0
  %2351 = vmatprep.mubr.f32.mxu0 0.0
  %2352 = vmatmul.mubr.f32.gmra.mrb[0].mxu0 %v2074
  %v2353 = vpop.f32.mrb[0].mxu0
  %v2354 = vadd.f32 %v1777, %v2353
  %v2355 = vpop.f32.mrb[0].mxu0
  %2356 = vmatprep.mubr.f32.mxu0 0.0
  %2357 = vmatmul.mubr.f32.gmra.mrb[0].mxu0 %v2077
  %v2358 = vpop.f32.mrb[0].mxu0
  %v2359 = vadd.f32 %v1782, %v2358
  %v2360 = vpop.f32.mrb[0].mxu0
  %2361 = vmatprep.mubr.f32.mxu0 0.0
  %2362 = vmatmul.mubr.f32.gmra.mrb[0].mxu0 %v2080
  %v2363 = vpop.f32.mrb[0].mxu0
  %v2364 = vadd.f32 %v1787, %v2363
  %v2365 = vpop.f32.mrb[0].mxu0
  %2366 = vmatprep.mubr.f32.mxu0 0.0
  %2367 = vmatmul.mubr.f32.gmra.mrb[0].mxu0 %v2083
  %v2368 = vpop.f32.mrb[0].mxu0
  %v2369 = vadd.f32 %v1792, %v2368
  %v2370 = vpop.f32.mrb[0].mxu0
  %2371 = vmatprep.mubr.f32.mxu0 0.0
  %2372 = vmatmul.mubr.f32.gmra.mrb[0].mxu0 %v2086
  %v2373 = vpop.f32.mrb[0].mxu0
  %v2374 = vadd.f32 %v1797, %v2373
  %v2375 = vpop.f32.mrb[0].mxu0
  %2376 = vmatprep.mubr.f32.mxu0 0.0
  %2377 = vmatmul.mubr.f32.gmra.mrb[0].mxu0 %v2089
  %v2378 = vpop.f32.mrb[0].mxu0
  %v2379 = vadd.f32 %v1802, %v2378
  %v2380 = vpop.f32.mrb[0].mxu0
  %2381 = vmatprep.mubr.f32.mxu0 0.0
  %2382 = vmatmul.mubr.f32.gmra.mrb[0].mxu0 %v2092
  %v2383 = vpop.f32.mrb[0].mxu0
  %v2384 = vadd.f32 %v1807, %v2383
  %v2385 = vpop.f32.mrb[0].mxu0
  %2386 = vmatprep.mubr.f32.mxu0 0.0
  %2387 = vmatmul.mubr.f32.gmra.mrb[0].mxu0 %v2095
  %v2388 = vpop.f32.mrb[0].mxu0
  %v2389 = vadd.f32 %v1812, %v2388
  %v2390 = vpop.f32.mrb[0].mxu0
  %2391 = vmatprep.mubr.f32.mxu0 0.0
  %2392 = vmatmul.mubr.f32.gmra.mrb[0].mxu0 %v2098
  %v2393 = vpop.f32.mrb[0].mxu0
  %v2394 = vadd.f32 %v1817, %v2393
  %v2395 = vpop.f32.mrb[0].mxu0
  %2396 = vmatprep.mubr.f32.mxu0 0.0
  %2397 = vmatmul.mubr.f32.gmra.mrb[0].mxu0 %v2101
  %v2398 = vpop.f32.mrb[0].mxu0
  %v2399 = vadd.f32 %v1822, %v2398
  %v2400 = vpop.f32.mrb[0].mxu0
  %2401 = vmatprep.mubr.f32.mxu0 0.0
  %2402 = vmatmul.mubr.f32.gmra.mrb[0].mxu0 %v2104
  %v2403 = vpop.f32.mrb[0].mxu0
  %v2404 = vadd.f32 %v1827, %v2403
  %v2405 = vpop.f32.mrb[0].mxu0
  %2406 = vmatprep.mubr.f32.mxu0 0.0
  %2407 = vmatmul.mubr.f32.gmra.mrb[0].mxu0 %v2107
  %v2408 = vpop.f32.mrb[0].mxu0
  %v2409 = vadd.f32 %v1832, %v2408
  %v2410 = vpop.f32.mrb[0].mxu0
  %2411 = vmatprep.mubr.f32.mxu0 0.0
  %2412 = vmatmul.mubr.f32.gmra.mrb[0].mxu0 %v2110
  %v2413 = vpop.f32.mrb[0].mxu0
  %v2414 = vadd.f32 %v1837, %v2413
  %v2415 = vpop.f32.mrb[0].mxu0
  %2416 = vmatprep.mubr.f32.mxu0 0.0
  %2417 = vmatmul.mubr.f32.gmra.mrb[0].mxu0 %v2113
  %v2418 = vpop.f32.mrb[0].mxu0
  %v2419 = vadd.f32 %v1842, %v2418
  %v2420 = vpop.f32.mrb[0].mxu0
  %2421 = vmatprep.mubr.f32.mxu0 0.0
  %2422 = vmatmul.mubr.f32.gmra.mrb[0].mxu0 %v2116
  %v2423 = vpop.f32.mrb[0].mxu0
  %v2424 = vadd.f32 %v1847, %v2423
  %v2425 = vpop.f32.mrb[0].mxu0
  %2426 = vmatprep.mubr.f32.mxu0 0.0
  %2427 = vmatmul.mubr.f32.gmra.mrb[0].mxu0 %v2119
  %v2428 = vpop.f32.mrb[0].mxu0
  %v2429 = vadd.f32 %v1852, %v2428
  %v2430 = vpop.f32.mrb[0].mxu0
  %2431 = vmatprep.mubr.f32.mxu0 0.0
  %2432 = vmatmul.mubr.f32.gmra.mrb[0].mxu0 %v2122
  %v2433 = vpop.f32.mrb[0].mxu0
  %v2434 = vadd.f32 %v1857, %v2433
  %v2435 = vpop.f32.mrb[0].mxu0
  %2436 = vmatprep.mubr.f32.mxu0 0.0
  %2437 = vmatmul.mubr.f32.gmra.mrb[0].mxu0 %v2125
  %v2438 = vpop.f32.mrb[0].mxu0
  %v2439 = vadd.f32 %v1862, %v2438
  %v2440 = vpop.f32.mrb[0].mxu0
  %2441 = vmatprep.mubr.f32.mxu0 0.0
  %2442 = vmatmul.mubr.f32.gmra.mrb[0].mxu0 %v2128
  %v2443 = vpop.f32.mrb[0].mxu0
  %v2444 = vadd.f32 %v1867, %v2443
  %v2445 = vpop.f32.mrb[0].mxu0
  %2446 = vmatprep.mubr.f32.mxu0 0.0
  %2447 = vmatmul.mubr.f32.gmra.mrb[0].mxu0 %v2131
  %v2448 = vpop.f32.mrb[0].mxu0
  %v2449 = vadd.f32 %v1872, %v2448
  %v2450 = vpop.f32.mrb[0].mxu0
  %2451 = vmatprep.mubr.f32.mxu0 0.0
  %2452 = vmatmul.mubr.f32.gmra.mrb[0].mxu0 %v2134
  %v2453 = vpop.f32.mrb[0].mxu0
  %v2454 = vadd.f32 %v1877, %v2453
  %v2455 = vpop.f32.mrb[0].mxu0
  %2456 = vmatprep.mubr.f32.mxu0 0.0
  %2457 = vmatmul.mubr.f32.gmra.mrb[0].mxu0 %v2137
  %v2458 = vpop.f32.mrb[0].mxu0
  %v2459 = vadd.f32 %v1882, %v2458
  %v2460 = vpop.f32.mrb[0].mxu0
  %2461 = vmatprep.mubr.f32.mxu0 0.0
  %2462 = vmatmul.mubr.f32.gmra.mrb[0].mxu0 %v2140
  %v2463 = vpop.f32.mrb[0].mxu0
  %v2464 = vadd.f32 %v1887, %v2463
  %v2465 = vpop.f32.mrb[0].mxu0
  %2466 = vmatprep.mubr.f32.mxu0 0.0
  %2467 = vmatmul.mubr.f32.gmra.mrb[0].mxu0 %v2143
  %v2468 = vpop.f32.mrb[0].mxu0
  %v2469 = vadd.f32 %v1892, %v2468
  %v2470 = vpop.f32.mrb[0].mxu0
  %2471 = vmatprep.mubr.f32.mxu0 0.0
  %2472 = vmatmul.mubr.f32.gmra.mrb[0].mxu0 %v2146
  %v2473 = vpop.f32.mrb[0].mxu0
  %v2474 = vadd.f32 %v1897, %v2473
  %v2475 = vpop.f32.mrb[0].mxu0
  %2476 = vmatprep.mubr.f32.mxu0 0.0
  %2477 = vmatmul.mubr.f32.gmra.mrb[0].mxu0 %v2149
  %v2478 = vpop.f32.mrb[0].mxu0
  %v2479 = vadd.f32 %v1902, %v2478
  %v2480 = vpop.f32.mrb[0].mxu0
  %2481 = vmatprep.mubr.f32.mxu0 0.0
  %2482 = vmatmul.mubr.f32.gmra.mrb[0].mxu0 %v2152
  %v2483 = vpop.f32.mrb[0].mxu0
  %v2484 = vadd.f32 %v1907, %v2483
  %v2485 = vpop.f32.mrb[0].mxu0
  %2486 = vmatprep.mubr.f32.mxu0 0.0
  %2487 = vmatmul.mubr.f32.gmra.mrb[0].mxu0 %v2155
  %v2488 = vpop.f32.mrb[0].mxu0
  %v2489 = vadd.f32 %v1912, %v2488
  %v2490 = vpop.f32.mrb[0].mxu0
  %2491 = vmatprep.mubr.f32.mxu0 0.0
  %2492 = vmatmul.mubr.f32.gmra.mrb[0].mxu0 %v2158
  %v2493 = vpop.f32.mrb[0].mxu0
  %v2494 = vadd.f32 %v1917, %v2493
  %v2495 = vpop.f32.mrb[0].mxu0
  %2496 = vmatprep.mubr.f32.mxu0 0.0
  %2497 = vmatmul.mubr.f32.gmra.mrb[0].mxu0 %v2161
  %v2498 = vpop.f32.mrb[0].mxu0
  %v2499 = vadd.f32 %v1922, %v2498
  %v2500 = vpop.f32.mrb[0].mxu0
  %2501 = vmatprep.mubr.f32.mxu0 0.0
  %2502 = vmatmul.mubr.f32.gmra.mrb[0].mxu0 %v2164
  %v2503 = vpop.f32.mrb[0].mxu0
  %v2504 = vadd.f32 %v1927, %v2503
  %v2505 = vpop.f32.mrb[0].mxu0
  %2506 = vmatprep.mubr.f32.mxu0 0.0
  %2507 = vmatmul.mubr.f32.gmra.mrb[0].mxu0 %v2167
  %v2508 = vpop.f32.mrb[0].mxu0
  %v2509 = vadd.f32 %v1932, %v2508
  %v2510 = vpop.f32.mrb[0].mxu0
  %2511 = vmatprep.mubr.f32.mxu0 0.0
  %2512 = vmatmul.mubr.f32.gmra.mrb[0].mxu0 %v2170
  %v2513 = vpop.f32.mrb[0].mxu0
  %v2514 = vadd.f32 %v1937, %v2513
  %v2515 = vpop.f32.mrb[0].mxu0
  %2516 = vmatprep.mubr.f32.mxu0 0.0
  %2517 = vmatmul.mubr.f32.gmra.mrb[0].mxu0 %v2173
  %v2518 = vpop.f32.mrb[0].mxu0
  %v2519 = vadd.f32 %v1942, %v2518
  %v2520 = vpop.f32.mrb[0].mxu0
  %2521 = vmatprep.mubr.f32.mxu0 0.0
  %2522 = vmatmul.mubr.f32.gmra.mrb[0].mxu0 %v2176
  %v2523 = vpop.f32.mrb[0].mxu0
  %v2524 = vadd.f32 %v1947, %v2523
  %v2525 = vpop.f32.mrb[0].mxu0
  %2526 = vmatprep.mubr.f32.mxu0 0.0
  %2527 = vmatmul.mubr.f32.gmra.mrb[0].mxu0 %v2179
  %v2528 = vpop.f32.mrb[0].mxu0
  %v2529 = vadd.f32 %v1952, %v2528
  %v2530 = vpop.f32.mrb[0].mxu0
  %2531 = vmatprep.mubr.f32.mxu0 0.0
  %2532 = vmatmul.mubr.f32.gmra.mrb[0].mxu0 %v2182
  %v2533 = vpop.f32.mrb[0].mxu0
  %v2534 = vadd.f32 %v1957, %v2533
  %v2535 = vpop.f32.mrb[0].mxu0
  %2536 = vmatprep.mubr.f32.mxu0 0.0
  %2537 = vmatmul.mubr.f32.gmra.mrb[0].mxu0 %v2185
  %v2538 = vpop.f32.mrb[0].mxu0
  %v2539 = vadd.f32 %v1962, %v2538
  %v2540 = vpop.f32.mrb[0].mxu0
  %2541 = vmatprep.mubr.f32.mxu0 0.0
  %2542 = vmatmul.mubr.f32.gmra.mrb[0].mxu0 %v2188
  %v2543 = vpop.f32.mrb[0].mxu0
  %v2544 = vadd.f32 %v1967, %v2543
  %v2545 = vpop.f32.mrb[0].mxu0
  %2546 = vmatprep.mubr.f32.mxu0 0.0
  %2547 = vmatmul.mubr.f32.gmra.mrb[0].mxu0 %v2191
  %v2548 = vpop.f32.mrb[0].mxu0
  %v2549 = vadd.f32 %v1972, %v2548
  %v2550 = vpop.f32.mrb[0].mxu0
  %2551 = vmatprep.mubr.f32.mxu0 0.0
  %2552 = vmatmul.mubr.f32.gmra.mrb[0].mxu0 %v2194
  %v2553 = vpop.f32.mrb[0].mxu0
  %v2554 = vadd.f32 %v1977, %v2553
  %v2555 = vpop.f32.mrb[0].mxu0
  %2556 = vmatprep.mubr.f32.mxu0 0.0
  %2557 = vmatmul.mubr.f32.gmra.mrb[0].mxu0 %v2197
  %v2558 = vpop.f32.mrb[0].mxu0
  %v2559 = vadd.f32 %v1982, %v2558
  %v2560 = vpop.f32.mrb[0].mxu0
  %2561 = vmatprep.mubr.f32.mxu0 0.0
  %2562 = vmatmul.mubr.f32.gmra.mrb[0].mxu0 %v2200
  %v2563 = vpop.f32.mrb[0].mxu0
  %v2564 = vadd.f32 %v1987, %v2563
  %v2565 = vpop.f32.mrb[0].mxu0
  %2566 = vmatprep.mubr.f32.mxu0 0.0
  %2567 = vmatmul.mubr.f32.gmra.mrb[0].mxu0 %v2203
  %v2568 = vpop.f32.mrb[0].mxu0
  %v2569 = vadd.f32 %v1992, %v2568
  %v2570 = vpop.f32.mrb[0].mxu0
  %2571 = vmatprep.mubr.f32.mxu0 0.0
  %2572 = vmatmul.mubr.f32.gmra.mrb[0].mxu0 %v2206
  %v2573 = vpop.f32.mrb[0].mxu0
  %v2574 = vadd.f32 %v1997, %v2573
  %v2575 = vpop.f32.mrb[0].mxu0
  %2576 = vmatprep.mubr.f32.mxu0 0.0
  %2577 = vmatmul.mubr.f32.gmra.mrb[0].mxu0 %v2209
  %v2578 = vpop.f32.mrb[0].mxu0
  %v2579 = vadd.f32 %v2002, %v2578
  %v2580 = vpop.f32.mrb[0].mxu0
  %2581 = vmatprep.mubr.f32.mxu0 0.0
  %2582 = vmatmul.mubr.f32.gmra.mrb[0].mxu0 %v2212
  %v2583 = vpop.f32.mrb[0].mxu0
  %v2584 = vadd.f32 %v2007, %v2583
  %v2585 = vpop.f32.mrb[0].mxu0
  %2586 = vmatprep.mubr.f32.mxu0 0.0
  %2587 = vmatmul.mubr.f32.gmra.mrb[0].mxu0 %v2215
  %v2588 = vpop.f32.mrb[0].mxu0
  %v2589 = vadd.f32 %v2012, %v2588
  %v2590 = vpop.f32.mrb[0].mxu0
  %2591 = vmatprep.mubr.f32.mxu0 0.0
  %2592 = vmatmul.mubr.f32.gmra.mrb[0].mxu0 %v2218
  %v2593 = vpop.f32.mrb[0].mxu0
  %v2594 = vadd.f32 %v2017, %v2593
  %v2595 = vpop.f32.mrb[0].mxu0
  %2596 = vmatprep.mubr.f32.mxu0 0.0
  %2597 = vmatmul.mubr.f32.gmra.mrb[0].mxu0 %v2221
  %v2598 = vpop.f32.mrb[0].mxu0
  %v2599 = vadd.f32 %v2022, %v2598
  %v2600 = vpop.f32.mrb[0].mxu0
  %2601 = vmatprep.mubr.f32.mxu0 0.0
  %2602 = vmatmul.mubr.f32.gmra.mrb[0].mxu0 %v2224
  %v2603 = vpop.f32.mrb[0].mxu0
  %v2604 = vadd.f32 %v2027, %v2603
  %v2605 = vpop.f32.mrb[0].mxu0
  %2606 = vmatprep.mubr.f32.mxu0 0.0
  %2607 = vmatmul.mubr.f32.gmra.mrb[0].mxu0 %v2227
  %v2608 = vpop.f32.mrb[0].mxu0
  %v2609 = vadd.f32 %v2032, %v2608
  %v2610 = vpop.f32.mrb[0].mxu0
  %2611 = vmatprep.mubr.f32.mxu0 0.0
  %2612 = vmatmul.mubr.f32.gmra.mrb[0].mxu0 %v2230
  %v2613 = vpop.f32.mrb[0].mxu0
  %v2614 = vadd.f32 %v2037, %v2613
  %v2615 = vpop.f32.mrb[0].mxu0
  %2616 = vdwg.mxu0
  %v2617 = vld [vmem:[%s3 + $0x2] sm:$0x1]
  %v2618 = vlaneseq
  %v2619 = vshrl.u32 %v2618, 7
  %v2620 = vsub.s32 0, %v2619
  %v2621 = vrot.slane %v2617, %v2620
  %v2622 = vadd.f32 %v2299, %v2621
  %v2623 = vadd.f32 %v2304, %v2621
  %v2624 = vadd.f32 %v2309, %v2621
  %v2625 = vadd.f32 %v2314, %v2621
  %v2626 = vadd.f32 %v2319, %v2621
  %v2627 = vadd.f32 %v2324, %v2621
  %v2628 = vadd.f32 %v2329, %v2621
  %v2629 = vadd.f32 %v2334, %v2621
  %v2630 = vadd.f32 %v2339, %v2621
  %v2631 = vadd.f32 %v2344, %v2621
  %v2632 = vadd.f32 %v2349, %v2621
  %v2633 = vadd.f32 %v2354, %v2621
  %v2634 = vadd.f32 %v2359, %v2621
  %v2635 = vadd.f32 %v2364, %v2621
  %v2636 = vadd.f32 %v2369, %v2621
  %v2637 = vadd.f32 %v2374, %v2621
  %v2638 = vadd.f32 %v2379, %v2621
  %v2639 = vadd.f32 %v2384, %v2621
  %v2640 = vadd.f32 %v2389, %v2621
  %v2641 = vadd.f32 %v2394, %v2621
  %v2642 = vadd.f32 %v2399, %v2621
  %v2643 = vadd.f32 %v2404, %v2621
  %v2644 = vadd.f32 %v2409, %v2621
  %v2645 = vadd.f32 %v2414, %v2621
  %v2646 = vadd.f32 %v2419, %v2621
  %v2647 = vadd.f32 %v2424, %v2621
  %v2648 = vadd.f32 %v2429, %v2621
  %v2649 = vadd.f32 %v2434, %v2621
  %v2650 = vadd.f32 %v2439, %v2621
  %v2651 = vadd.f32 %v2444, %v2621
  %v2652 = vadd.f32 %v2449, %v2621
  %v2653 = vadd.f32 %v2454, %v2621
  %v2654 = vadd.f32 %v2459, %v2621
  %v2655 = vadd.f32 %v2464, %v2621
  %v2656 = vadd.f32 %v2469, %v2621
  %v2657 = vadd.f32 %v2474, %v2621
  %v2658 = vadd.f32 %v2479, %v2621
  %v2659 = vadd.f32 %v2484, %v2621
  %v2660 = vadd.f32 %v2489, %v2621
  %v2661 = vadd.f32 %v2494, %v2621
  %v2662 = vadd.f32 %v2499, %v2621
  %v2663 = vadd.f32 %v2504, %v2621
  %v2664 = vadd.f32 %v2509, %v2621
  %v2665 = vadd.f32 %v2514, %v2621
  %v2666 = vadd.f32 %v2519, %v2621
  %v2667 = vadd.f32 %v2524, %v2621
  %v2668 = vadd.f32 %v2529, %v2621
  %v2669 = vadd.f32 %v2534, %v2621
  %v2670 = vadd.f32 %v2539, %v2621
  %v2671 = vadd.f32 %v2544, %v2621
  %v2672 = vadd.f32 %v2549, %v2621
  %v2673 = vadd.f32 %v2554, %v2621
  %v2674 = vadd.f32 %v2559, %v2621
  %v2675 = vadd.f32 %v2564, %v2621
  %v2676 = vadd.f32 %v2569, %v2621
  %v2677 = vadd.f32 %v2574, %v2621
  %v2678 = vadd.f32 %v2579, %v2621
  %v2679 = vadd.f32 %v2584, %v2621
  %v2680 = vadd.f32 %v2589, %v2621
  %v2681 = vadd.f32 %v2594, %v2621
  %v2682 = vadd.f32 %v2599, %v2621
  %v2683 = vadd.f32 %v2604, %v2621
  %v2684 = vadd.f32 %v2609, %v2621
  %v2685 = vadd.f32 %v2614, %v2621
  %v2686 = vmax.f32 %v2622, 0.0
  %v2687 = vmax.f32 %v2623, 0.0
  %v2688 = vmax.f32 %v2624, 0.0
  %v2689 = vmax.f32 %v2625, 0.0
  %v2690 = vmax.f32 %v2626, 0.0
  %v2691 = vmax.f32 %v2627, 0.0
  %v2692 = vmax.f32 %v2628, 0.0
  %v2693 = vmax.f32 %v2629, 0.0
  %v2694 = vmax.f32 %v2630, 0.0
  %v2695 = vmax.f32 %v2631, 0.0
  %v2696 = vmax.f32 %v2632, 0.0
  %v2697 = vmax.f32 %v2633, 0.0
  %v2698 = vmax.f32 %v2634, 0.0
  %v2699 = vmax.f32 %v2635, 0.0
  %v2700 = vmax.f32 %v2636, 0.0
  %v2701 = vmax.f32 %v2637, 0.0
  %v2702 = vmax.f32 %v2638, 0.0
  %v2703 = vmax.f32 %v2639, 0.0
  %v2704 = vmax.f32 %v2640, 0.0
  %v2705 = vmax.f32 %v2641, 0.0
  %v2706 = vmax.f32 %v2642, 0.0
  %v2707 = vmax.f32 %v2643, 0.0
  %v2708 = vmax.f32 %v2644, 0.0
  %v2709 = vmax.f32 %v2645, 0.0
  %v2710 = vmax.f32 %v2646, 0.0
  %v2711 = vmax.f32 %v2647, 0.0
  %v2712 = vmax.f32 %v2648, 0.0
  %v2713 = vmax.f32 %v2649, 0.0
  %v2714 = vmax.f32 %v2650, 0.0
  %v2715 = vmax.f32 %v2651, 0.0
  %v2716 = vmax.f32 %v2652, 0.0
  %v2717 = vmax.f32 %v2653, 0.0
  %v2718 = vmax.f32 %v2654, 0.0
  %v2719 = vmax.f32 %v2655, 0.0
  %v2720 = vmax.f32 %v2656, 0.0
  %v2721 = vmax.f32 %v2657, 0.0
  %v2722 = vmax.f32 %v2658, 0.0
  %v2723 = vmax.f32 %v2659, 0.0
  %v2724 = vmax.f32 %v2660, 0.0
  %v2725 = vmax.f32 %v2661, 0.0
  %v2726 = vmax.f32 %v2662, 0.0
  %v2727 = vmax.f32 %v2663, 0.0
  %v2728 = vmax.f32 %v2664, 0.0
  %v2729 = vmax.f32 %v2665, 0.0
  %v2730 = vmax.f32 %v2666, 0.0
  %v2731 = vmax.f32 %v2667, 0.0
  %v2732 = vmax.f32 %v2668, 0.0
  %v2733 = vmax.f32 %v2669, 0.0
  %v2734 = vmax.f32 %v2670, 0.0
  %v2735 = vmax.f32 %v2671, 0.0
  %v2736 = vmax.f32 %v2672, 0.0
  %v2737 = vmax.f32 %v2673, 0.0
  %v2738 = vmax.f32 %v2674, 0.0
  %v2739 = vmax.f32 %v2675, 0.0
  %v2740 = vmax.f32 %v2676, 0.0
  %v2741 = vmax.f32 %v2677, 0.0
  %v2742 = vmax.f32 %v2678, 0.0
  %v2743 = vmax.f32 %v2679, 0.0
  %v2744 = vmax.f32 %v2680, 0.0
  %v2745 = vmax.f32 %v2681, 0.0
  %v2746 = vmax.f32 %v2682, 0.0
  %v2747 = vmax.f32 %v2683, 0.0
  %v2748 = vmax.f32 %v2684, 0.0
  %v2749 = vmax.f32 %v2685, 0.0
  %v2750 = vld [vmem:[%s2 + $0xc0] sm:$0xff]
  %v2751 = vld [vmem:[%s2 + $0xc8] sm:$0xff]
  %v2752 = vld [vmem:[%s2 + $0xd0] sm:$0xff]
  %v2753 = vld [vmem:[%s2 + $0xd8] sm:$0xff]
  %v2754 = vld [vmem:[%s2 + $0xe0] sm:$0xff]
  %v2755 = vld [vmem:[%s2 + $0xe8] sm:$0xff]
  %v2756 = vld [vmem:[%s2 + $0xf0] sm:$0xff]
  %v2757 = vld [vmem:[%s2 + $0xf8] sm:$0xff]
  %v2758 = vld [vmem:[%s3 + $0x3] sm:$0x1]
  %v2759 = vlaneseq
  %v2760 = vshrl.u32 %v2759, 7
  %v2761 = vsub.s32 0, %v2760
  %v2762 = vrot.slane %v2758, %v2761
  %v2764 = vsel %vm745, %v2686, 0
  %v2767 = vsel %vm745, %v2687, 0
  %v2770 = vsel %vm745, %v2688, 0
  %v2773 = vsel %vm745, %v2689, 0
  %v2776 = vsel %vm745, %v2690, 0
  %v2779 = vsel %vm745, %v2691, 0
  %v2782 = vsel %vm745, %v2692, 0
  %v2785 = vsel %vm745, %v2693, 0
  %v2788 = vsel %vm745, %v2694, 0
  %v2791 = vsel %vm745, %v2695, 0
  %v2794 = vsel %vm745, %v2696, 0
  %v2797 = vsel %vm745, %v2697, 0
  %v2800 = vsel %vm745, %v2698, 0
  %v2803 = vsel %vm745, %v2699, 0
  %v2806 = vsel %vm745, %v2700, 0
  %v2809 = vsel %vm745, %v2701, 0
  %v2812 = vsel %vm745, %v2702, 0
  %v2815 = vsel %vm745, %v2703, 0
  %v2818 = vsel %vm745, %v2704, 0
  %v2821 = vsel %vm745, %v2705, 0
  %v2824 = vsel %vm745, %v2706, 0
  %v2827 = vsel %vm745, %v2707, 0
  %v2830 = vsel %vm745, %v2708, 0
  %v2833 = vsel %vm745, %v2709, 0
  %v2836 = vsel %vm745, %v2710, 0
  %v2839 = vsel %vm745, %v2711, 0
  %v2842 = vsel %vm745, %v2712, 0
  %v2845 = vsel %vm745, %v2713, 0
  %v2848 = vsel %vm745, %v2714, 0
  %v2851 = vsel %vm745, %v2715, 0
  %v2854 = vsel %vm745, %v2716, 0
  %v2857 = vsel %vm745, %v2717, 0
  %v2860 = vsel %vm745, %v2718, 0
  %v2863 = vsel %vm745, %v2719, 0
  %v2866 = vsel %vm745, %v2720, 0
  %v2869 = vsel %vm745, %v2721, 0
  %v2872 = vsel %vm745, %v2722, 0
  %v2875 = vsel %vm745, %v2723, 0
  %v2878 = vsel %vm745, %v2724, 0
  %v2881 = vsel %vm745, %v2725, 0
  %v2884 = vsel %vm745, %v2726, 0
  %v2887 = vsel %vm745, %v2727, 0
  %v2890 = vsel %vm745, %v2728, 0
  %v2893 = vsel %vm745, %v2729, 0
  %v2896 = vsel %vm745, %v2730, 0
  %v2899 = vsel %vm745, %v2731, 0
  %v2902 = vsel %vm745, %v2732, 0
  %v2905 = vsel %vm745, %v2733, 0
  %v2908 = vsel %vm745, %v2734, 0
  %v2911 = vsel %vm745, %v2735, 0
  %v2914 = vsel %vm745, %v2736, 0
  %v2917 = vsel %vm745, %v2737, 0
  %v2920 = vsel %vm745, %v2738, 0
  %v2923 = vsel %vm745, %v2739, 0
  %v2926 = vsel %vm745, %v2740, 0
  %v2929 = vsel %vm745, %v2741, 0
  %v2932 = vsel %vm745, %v2742, 0
  %v2935 = vsel %vm745, %v2743, 0
  %v2938 = vsel %vm745, %v2744, 0
  %v2941 = vsel %vm745, %v2745, 0
  %v2944 = vsel %vm745, %v2746, 0
  %v2947 = vsel %vm745, %v2747, 0
  %v2950 = vsel %vm745, %v2748, 0
  %v2953 = vsel %vm745, %v2749, 0
  %2955 = vmatprep.subr.mxu0 0.0
  %2956 = vmatpush1.msra.mxu0 %v2750
  %2957 = vmatprep.subr.mxu0 0.0
  %2958 = vmatpush1.msra.mxu0 %v2751
  %2959 = vmatprep.subr.mxu0 0.0
  %2960 = vmatpush1.msra.mxu0 %v2752
  %2961 = vmatprep.subr.mxu0 0.0
  %2962 = vmatpush1.msra.mxu0 %v2753
  %2963 = vmatprep.subr.mxu0 0.0
  %2964 = vmatpush1.msra.mxu0 %v2754
  %2965 = vmatprep.subr.mxu0 0.0
  %2966 = vmatpush1.msra.mxu0 %v2755
  %2967 = vmatprep.subr.mxu0 0.0
  %2968 = vmatpush1.msra.mxu0 %v2756
  %2969 = vmatprep.subr.mxu0 0.0
  %2970 = vmatpush1.msra.mxu0 %v2757
  %2971 = vmatprep.subr.mxu0 0.0
  %2972 = vmatpush1.msra.mxu0 0.0
  %2973 = vmatprep.subr.mxu0 0.0
  %2974 = vmatpush1.msra.mxu0 0.0
  %2975 = vmatprep.subr.mxu0 0.0
  %2976 = vmatpush1.msra.mxu0 0.0
  %2977 = vmatprep.subr.mxu0 0.0
  %2978 = vmatpush1.msra.mxu0 0.0
  %2979 = vmatprep.subr.mxu0 0.0
  %2980 = vmatpush1.msra.mxu0 0.0
  %2981 = vmatprep.subr.mxu0 0.0
  %2982 = vmatpush1.msra.mxu0 0.0
  %2983 = vmatprep.subr.mxu0 0.0
  %2984 = vmatpush1.msra.mxu0 0.0
  %2985 = vmatprep.subr.mxu0 0.0
  %2986 = vmatpush1.msra.mxu0 0.0
  %2987 = vmatprep.subr.mxu0 0.0
  %2988 = vmatpush1.msra.mxu0 0.0
  %2989 = vmatprep.subr.mxu0 0.0
  %2990 = vmatpush1.msra.mxu0 0.0
  %2991 = vmatprep.subr.mxu0 0.0
  %2992 = vmatpush1.msra.mxu0 0.0
  %2993 = vmatprep.subr.mxu0 0.0
  %2994 = vmatpush1.msra.mxu0 0.0
  %2995 = vmatprep.subr.mxu0 0.0
  %2996 = vmatpush1.msra.mxu0 0.0
  %2997 = vmatprep.subr.mxu0 0.0
  %2998 = vmatpush1.msra.mxu0 0.0
  %2999 = vmatprep.subr.mxu0 0.0
  %3000 = vmatpush1.msra.mxu0 0.0
  %3001 = vmatprep.subr.mxu0 0.0
  %3002 = vmatpush1.msra.mxu0 0.0
  %3003 = vmatprep.subr.mxu0 0.0
  %3004 = vmatpush1.msra.mxu0 0.0
  %3005 = vmatprep.subr.mxu0 0.0
  %3006 = vmatpush1.msra.mxu0 0.0
  %3007 = vmatprep.subr.mxu0 0.0
  %3008 = vmatpush1.msra.mxu0 0.0
  %3009 = vmatprep.subr.mxu0 0.0
  %3010 = vmatpush1.msra.mxu0 0.0
  %3011 = vmatprep.subr.mxu0 0.0
  %3012 = vmatpush1.msra.mxu0 0.0
  %3013 = vmatprep.subr.mxu0 0.0
  %3014 = vmatpush1.msra.mxu0 0.0
  %3015 = vmatprep.subr.mxu0 0.0
  %3016 = vmatpush1.msra.mxu0 0.0
  %3017 = vmatprep.subr.mxu0 0.0
  %3018 = vmatpush1.msra.mxu0 0.0
  %3019 = vmatprep.mubr.f32.mxu0 0.0
  %3020 = vmatmul.mubr.f32.gmra.mrb[0].mxu0 %v2764
  %v3021 = vpop.f32.mrb[0].mxu0
  %v3022 = vadd.f32 %v2762, %v3021
  %v3023 = vpop.f32.mrb[0].mxu0
  %3024 = vmatprep.mubr.f32.mxu0 0.0
  %3025 = vmatmul.mubr.f32.gmra.mrb[0].mxu0 %v2767
  %v3026 = vpop.f32.mrb[0].mxu0
  %v3027 = vadd.f32 %v2762, %v3026
  %v3028 = vpop.f32.mrb[0].mxu0
  %3029 = vmatprep.mubr.f32.mxu0 0.0
  %3030 = vmatmul.mubr.f32.gmra.mrb[0].mxu0 %v2770
  %v3031 = vpop.f32.mrb[0].mxu0
  %v3032 = vadd.f32 %v2762, %v3031
  %v3033 = vpop.f32.mrb[0].mxu0
  %3034 = vmatprep.mubr.f32.mxu0 0.0
  %3035 = vmatmul.mubr.f32.gmra.mrb[0].mxu0 %v2773
  %v3036 = vpop.f32.mrb[0].mxu0
  %v3037 = vadd.f32 %v2762, %v3036
  %v3038 = vpop.f32.mrb[0].mxu0
  %3039 = vmatprep.mubr.f32.mxu0 0.0
  %3040 = vmatmul.mubr.f32.gmra.mrb[0].mxu0 %v2776
  %v3041 = vpop.f32.mrb[0].mxu0
  %v3042 = vadd.f32 %v2762, %v3041
  %v3043 = vpop.f32.mrb[0].mxu0
  %3044 = vmatprep.mubr.f32.mxu0 0.0
  %3045 = vmatmul.mubr.f32.gmra.mrb[0].mxu0 %v2779
  %v3046 = vpop.f32.mrb[0].mxu0
  %v3047 = vadd.f32 %v2762, %v3046
  %v3048 = vpop.f32.mrb[0].mxu0
  %3049 = vmatprep.mubr.f32.mxu0 0.0
  %3050 = vmatmul.mubr.f32.gmra.mrb[0].mxu0 %v2782
  %v3051 = vpop.f32.mrb[0].mxu0
  %v3052 = vadd.f32 %v2762, %v3051
  %v3053 = vpop.f32.mrb[0].mxu0
  %3054 = vmatprep.mubr.f32.mxu0 0.0
  %3055 = vmatmul.mubr.f32.gmra.mrb[0].mxu0 %v2785
  %v3056 = vpop.f32.mrb[0].mxu0
  %v3057 = vadd.f32 %v2762, %v3056
  %v3058 = vpop.f32.mrb[0].mxu0
  %3059 = vmatprep.mubr.f32.mxu0 0.0
  %3060 = vmatmul.mubr.f32.gmra.mrb[0].mxu0 %v2788
  %v3061 = vpop.f32.mrb[0].mxu0
  %v3062 = vadd.f32 %v2762, %v3061
  %v3063 = vpop.f32.mrb[0].mxu0
  %3064 = vmatprep.mubr.f32.mxu0 0.0
  %3065 = vmatmul.mubr.f32.gmra.mrb[0].mxu0 %v2791
  %v3066 = vpop.f32.mrb[0].mxu0
  %v3067 = vadd.f32 %v2762, %v3066
  %v3068 = vpop.f32.mrb[0].mxu0
  %3069 = vmatprep.mubr.f32.mxu0 0.0
  %3070 = vmatmul.mubr.f32.gmra.mrb[0].mxu0 %v2794
  %v3071 = vpop.f32.mrb[0].mxu0
  %v3072 = vadd.f32 %v2762, %v3071
  %v3073 = vpop.f32.mrb[0].mxu0
  %3074 = vmatprep.mubr.f32.mxu0 0.0
  %3075 = vmatmul.mubr.f32.gmra.mrb[0].mxu0 %v2797
  %v3076 = vpop.f32.mrb[0].mxu0
  %v3077 = vadd.f32 %v2762, %v3076
  %v3078 = vpop.f32.mrb[0].mxu0
  %3079 = vmatprep.mubr.f32.mxu0 0.0
  %3080 = vmatmul.mubr.f32.gmra.mrb[0].mxu0 %v2800
  %v3081 = vpop.f32.mrb[0].mxu0
  %v3082 = vadd.f32 %v2762, %v3081
  %v3083 = vpop.f32.mrb[0].mxu0
  %3084 = vmatprep.mubr.f32.mxu0 0.0
  %3085 = vmatmul.mubr.f32.gmra.mrb[0].mxu0 %v2803
  %v3086 = vpop.f32.mrb[0].mxu0
  %v3087 = vadd.f32 %v2762, %v3086
  %v3088 = vpop.f32.mrb[0].mxu0
  %3089 = vmatprep.mubr.f32.mxu0 0.0
  %3090 = vmatmul.mubr.f32.gmra.mrb[0].mxu0 %v2806
  %v3091 = vpop.f32.mrb[0].mxu0
  %v3092 = vadd.f32 %v2762, %v3091
  %v3093 = vpop.f32.mrb[0].mxu0
  %3094 = vmatprep.mubr.f32.mxu0 0.0
  %3095 = vmatmul.mubr.f32.gmra.mrb[0].mxu0 %v2809
  %v3096 = vpop.f32.mrb[0].mxu0
  %v3097 = vadd.f32 %v2762, %v3096
  %v3098 = vpop.f32.mrb[0].mxu0
  %3099 = vmatprep.mubr.f32.mxu0 0.0
  %3100 = vmatmul.mubr.f32.gmra.mrb[0].mxu0 %v2812
  %v3101 = vpop.f32.mrb[0].mxu0
  %v3102 = vadd.f32 %v2762, %v3101
  %v3103 = vpop.f32.mrb[0].mxu0
  %3104 = vmatprep.mubr.f32.mxu0 0.0
  %3105 = vmatmul.mubr.f32.gmra.mrb[0].mxu0 %v2815
  %v3106 = vpop.f32.mrb[0].mxu0
  %v3107 = vadd.f32 %v2762, %v3106
  %v3108 = vpop.f32.mrb[0].mxu0
  %3109 = vmatprep.mubr.f32.mxu0 0.0
  %3110 = vmatmul.mubr.f32.gmra.mrb[0].mxu0 %v2818
  %v3111 = vpop.f32.mrb[0].mxu0
  %v3112 = vadd.f32 %v2762, %v3111
  %v3113 = vpop.f32.mrb[0].mxu0
  %3114 = vmatprep.mubr.f32.mxu0 0.0
  %3115 = vmatmul.mubr.f32.gmra.mrb[0].mxu0 %v2821
  %v3116 = vpop.f32.mrb[0].mxu0
  %v3117 = vadd.f32 %v2762, %v3116
  %v3118 = vpop.f32.mrb[0].mxu0
  %3119 = vmatprep.mubr.f32.mxu0 0.0
  %3120 = vmatmul.mubr.f32.gmra.mrb[0].mxu0 %v2824
  %v3121 = vpop.f32.mrb[0].mxu0
  %v3122 = vadd.f32 %v2762, %v3121
  %v3123 = vpop.f32.mrb[0].mxu0
  %3124 = vmatprep.mubr.f32.mxu0 0.0
  %3125 = vmatmul.mubr.f32.gmra.mrb[0].mxu0 %v2827
  %v3126 = vpop.f32.mrb[0].mxu0
  %v3127 = vadd.f32 %v2762, %v3126
  %v3128 = vpop.f32.mrb[0].mxu0
  %3129 = vmatprep.mubr.f32.mxu0 0.0
  %3130 = vmatmul.mubr.f32.gmra.mrb[0].mxu0 %v2830
  %v3131 = vpop.f32.mrb[0].mxu0
  %v3132 = vadd.f32 %v2762, %v3131
  %v3133 = vpop.f32.mrb[0].mxu0
  %3134 = vmatprep.mubr.f32.mxu0 0.0
  %3135 = vmatmul.mubr.f32.gmra.mrb[0].mxu0 %v2833
  %v3136 = vpop.f32.mrb[0].mxu0
  %v3137 = vadd.f32 %v2762, %v3136
  %v3138 = vpop.f32.mrb[0].mxu0
  %3139 = vmatprep.mubr.f32.mxu0 0.0
  %3140 = vmatmul.mubr.f32.gmra.mrb[0].mxu0 %v2836
  %v3141 = vpop.f32.mrb[0].mxu0
  %v3142 = vadd.f32 %v2762, %v3141
  %v3143 = vpop.f32.mrb[0].mxu0
  %3144 = vmatprep.mubr.f32.mxu0 0.0
  %3145 = vmatmul.mubr.f32.gmra.mrb[0].mxu0 %v2839
  %v3146 = vpop.f32.mrb[0].mxu0
  %v3147 = vadd.f32 %v2762, %v3146
  %v3148 = vpop.f32.mrb[0].mxu0
  %3149 = vmatprep.mubr.f32.mxu0 0.0
  %3150 = vmatmul.mubr.f32.gmra.mrb[0].mxu0 %v2842
  %v3151 = vpop.f32.mrb[0].mxu0
  %v3152 = vadd.f32 %v2762, %v3151
  %v3153 = vpop.f32.mrb[0].mxu0
  %3154 = vmatprep.mubr.f32.mxu0 0.0
  %3155 = vmatmul.mubr.f32.gmra.mrb[0].mxu0 %v2845
  %v3156 = vpop.f32.mrb[0].mxu0
  %v3157 = vadd.f32 %v2762, %v3156
  %v3158 = vpop.f32.mrb[0].mxu0
  %3159 = vmatprep.mubr.f32.mxu0 0.0
  %3160 = vmatmul.mubr.f32.gmra.mrb[0].mxu0 %v2848
  %v3161 = vpop.f32.mrb[0].mxu0
  %v3162 = vadd.f32 %v2762, %v3161
  %v3163 = vpop.f32.mrb[0].mxu0
  %3164 = vmatprep.mubr.f32.mxu0 0.0
  %3165 = vmatmul.mubr.f32.gmra.mrb[0].mxu0 %v2851
  %v3166 = vpop.f32.mrb[0].mxu0
  %v3167 = vadd.f32 %v2762, %v3166
  %v3168 = vpop.f32.mrb[0].mxu0
  %3169 = vmatprep.mubr.f32.mxu0 0.0
  %3170 = vmatmul.mubr.f32.gmra.mrb[0].mxu0 %v2854
  %v3171 = vpop.f32.mrb[0].mxu0
  %v3172 = vadd.f32 %v2762, %v3171
  %v3173 = vpop.f32.mrb[0].mxu0
  %3174 = vmatprep.mubr.f32.mxu0 0.0
  %3175 = vmatmul.mubr.f32.gmra.mrb[0].mxu0 %v2857
  %v3176 = vpop.f32.mrb[0].mxu0
  %v3177 = vadd.f32 %v2762, %v3176
  %v3178 = vpop.f32.mrb[0].mxu0
  %3179 = vmatprep.mubr.f32.mxu0 0.0
  %3180 = vmatmul.mubr.f32.gmra.mrb[0].mxu0 %v2860
  %v3181 = vpop.f32.mrb[0].mxu0
  %v3182 = vadd.f32 %v2762, %v3181
  %v3183 = vpop.f32.mrb[0].mxu0
  %3184 = vmatprep.mubr.f32.mxu0 0.0
  %3185 = vmatmul.mubr.f32.gmra.mrb[0].mxu0 %v2863
  %v3186 = vpop.f32.mrb[0].mxu0
  %v3187 = vadd.f32 %v2762, %v3186
  %v3188 = vpop.f32.mrb[0].mxu0
  %3189 = vmatprep.mubr.f32.mxu0 0.0
  %3190 = vmatmul.mubr.f32.gmra.mrb[0].mxu0 %v2866
  %v3191 = vpop.f32.mrb[0].mxu0
  %v3192 = vadd.f32 %v2762, %v3191
  %v3193 = vpop.f32.mrb[0].mxu0
  %3194 = vmatprep.mubr.f32.mxu0 0.0
  %3195 = vmatmul.mubr.f32.gmra.mrb[0].mxu0 %v2869
  %v3196 = vpop.f32.mrb[0].mxu0
  %v3197 = vadd.f32 %v2762, %v3196
  %v3198 = vpop.f32.mrb[0].mxu0
  %3199 = vmatprep.mubr.f32.mxu0 0.0
  %3200 = vmatmul.mubr.f32.gmra.mrb[0].mxu0 %v2872
  %v3201 = vpop.f32.mrb[0].mxu0
  %v3202 = vadd.f32 %v2762, %v3201
  %v3203 = vpop.f32.mrb[0].mxu0
  %3204 = vmatprep.mubr.f32.mxu0 0.0
  %3205 = vmatmul.mubr.f32.gmra.mrb[0].mxu0 %v2875
  %v3206 = vpop.f32.mrb[0].mxu0
  %v3207 = vadd.f32 %v2762, %v3206
  %v3208 = vpop.f32.mrb[0].mxu0
  %3209 = vmatprep.mubr.f32.mxu0 0.0
  %3210 = vmatmul.mubr.f32.gmra.mrb[0].mxu0 %v2878
  %v3211 = vpop.f32.mrb[0].mxu0
  %v3212 = vadd.f32 %v2762, %v3211
  %v3213 = vpop.f32.mrb[0].mxu0
  %3214 = vmatprep.mubr.f32.mxu0 0.0
  %3215 = vmatmul.mubr.f32.gmra.mrb[0].mxu0 %v2881
  %v3216 = vpop.f32.mrb[0].mxu0
  %v3217 = vadd.f32 %v2762, %v3216
  %v3218 = vpop.f32.mrb[0].mxu0
  %3219 = vmatprep.mubr.f32.mxu0 0.0
  %3220 = vmatmul.mubr.f32.gmra.mrb[0].mxu0 %v2884
  %v3221 = vpop.f32.mrb[0].mxu0
  %v3222 = vadd.f32 %v2762, %v3221
  %v3223 = vpop.f32.mrb[0].mxu0
  %3224 = vmatprep.mubr.f32.mxu0 0.0
  %3225 = vmatmul.mubr.f32.gmra.mrb[0].mxu0 %v2887
  %v3226 = vpop.f32.mrb[0].mxu0
  %v3227 = vadd.f32 %v2762, %v3226
  %v3228 = vpop.f32.mrb[0].mxu0
  %3229 = vmatprep.mubr.f32.mxu0 0.0
  %3230 = vmatmul.mubr.f32.gmra.mrb[0].mxu0 %v2890
  %v3231 = vpop.f32.mrb[0].mxu0
  %v3232 = vadd.f32 %v2762, %v3231
  %v3233 = vpop.f32.mrb[0].mxu0
  %3234 = vmatprep.mubr.f32.mxu0 0.0
  %3235 = vmatmul.mubr.f32.gmra.mrb[0].mxu0 %v2893
  %v3236 = vpop.f32.mrb[0].mxu0
  %v3237 = vadd.f32 %v2762, %v3236
  %v3238 = vpop.f32.mrb[0].mxu0
  %3239 = vmatprep.mubr.f32.mxu0 0.0
  %3240 = vmatmul.mubr.f32.gmra.mrb[0].mxu0 %v2896
  %v3241 = vpop.f32.mrb[0].mxu0
  %v3242 = vadd.f32 %v2762, %v3241
  %v3243 = vpop.f32.mrb[0].mxu0
  %3244 = vmatprep.mubr.f32.mxu0 0.0
  %3245 = vmatmul.mubr.f32.gmra.mrb[0].mxu0 %v2899
  %v3246 = vpop.f32.mrb[0].mxu0
  %v3247 = vadd.f32 %v2762, %v3246
  %v3248 = vpop.f32.mrb[0].mxu0
  %3249 = vmatprep.mubr.f32.mxu0 0.0
  %3250 = vmatmul.mubr.f32.gmra.mrb[0].mxu0 %v2902
  %v3251 = vpop.f32.mrb[0].mxu0
  %v3252 = vadd.f32 %v2762, %v3251
  %v3253 = vpop.f32.mrb[0].mxu0
  %3254 = vmatprep.mubr.f32.mxu0 0.0
  %3255 = vmatmul.mubr.f32.gmra.mrb[0].mxu0 %v2905
  %v3256 = vpop.f32.mrb[0].mxu0
  %v3257 = vadd.f32 %v2762, %v3256
  %v3258 = vpop.f32.mrb[0].mxu0
  %3259 = vmatprep.mubr.f32.mxu0 0.0
  %3260 = vmatmul.mubr.f32.gmra.mrb[0].mxu0 %v2908
  %v3261 = vpop.f32.mrb[0].mxu0
  %v3262 = vadd.f32 %v2762, %v3261
  %v3263 = vpop.f32.mrb[0].mxu0
  %3264 = vmatprep.mubr.f32.mxu0 0.0
  %3265 = vmatmul.mubr.f32.gmra.mrb[0].mxu0 %v2911
  %v3266 = vpop.f32.mrb[0].mxu0
  %v3267 = vadd.f32 %v2762, %v3266
  %v3268 = vpop.f32.mrb[0].mxu0
  %3269 = vmatprep.mubr.f32.mxu0 0.0
  %3270 = vmatmul.mubr.f32.gmra.mrb[0].mxu0 %v2914
  %v3271 = vpop.f32.mrb[0].mxu0
  %v3272 = vadd.f32 %v2762, %v3271
  %v3273 = vpop.f32.mrb[0].mxu0
  %3274 = vmatprep.mubr.f32.mxu0 0.0
  %3275 = vmatmul.mubr.f32.gmra.mrb[0].mxu0 %v2917
  %v3276 = vpop.f32.mrb[0].mxu0
  %v3277 = vadd.f32 %v2762, %v3276
  %v3278 = vpop.f32.mrb[0].mxu0
  %3279 = vmatprep.mubr.f32.mxu0 0.0
  %3280 = vmatmul.mubr.f32.gmra.mrb[0].mxu0 %v2920
  %v3281 = vpop.f32.mrb[0].mxu0
  %v3282 = vadd.f32 %v2762, %v3281
  %v3283 = vpop.f32.mrb[0].mxu0
  %3284 = vmatprep.mubr.f32.mxu0 0.0
  %3285 = vmatmul.mubr.f32.gmra.mrb[0].mxu0 %v2923
  %v3286 = vpop.f32.mrb[0].mxu0
  %v3287 = vadd.f32 %v2762, %v3286
  %v3288 = vpop.f32.mrb[0].mxu0
  %3289 = vmatprep.mubr.f32.mxu0 0.0
  %3290 = vmatmul.mubr.f32.gmra.mrb[0].mxu0 %v2926
  %v3291 = vpop.f32.mrb[0].mxu0
  %v3292 = vadd.f32 %v2762, %v3291
  %v3293 = vpop.f32.mrb[0].mxu0
  %3294 = vmatprep.mubr.f32.mxu0 0.0
  %3295 = vmatmul.mubr.f32.gmra.mrb[0].mxu0 %v2929
  %v3296 = vpop.f32.mrb[0].mxu0
  %v3297 = vadd.f32 %v2762, %v3296
  %v3298 = vpop.f32.mrb[0].mxu0
  %3299 = vmatprep.mubr.f32.mxu0 0.0
  %3300 = vmatmul.mubr.f32.gmra.mrb[0].mxu0 %v2932
  %v3301 = vpop.f32.mrb[0].mxu0
  %v3302 = vadd.f32 %v2762, %v3301
  %v3303 = vpop.f32.mrb[0].mxu0
  %3304 = vmatprep.mubr.f32.mxu0 0.0
  %3305 = vmatmul.mubr.f32.gmra.mrb[0].mxu0 %v2935
  %v3306 = vpop.f32.mrb[0].mxu0
  %v3307 = vadd.f32 %v2762, %v3306
  %v3308 = vpop.f32.mrb[0].mxu0
  %3309 = vmatprep.mubr.f32.mxu0 0.0
  %3310 = vmatmul.mubr.f32.gmra.mrb[0].mxu0 %v2938
  %v3311 = vpop.f32.mrb[0].mxu0
  %v3312 = vadd.f32 %v2762, %v3311
  %v3313 = vpop.f32.mrb[0].mxu0
  %3314 = vmatprep.mubr.f32.mxu0 0.0
  %3315 = vmatmul.mubr.f32.gmra.mrb[0].mxu0 %v2941
  %v3316 = vpop.f32.mrb[0].mxu0
  %v3317 = vadd.f32 %v2762, %v3316
  %v3318 = vpop.f32.mrb[0].mxu0
  %3319 = vmatprep.mubr.f32.mxu0 0.0
  %3320 = vmatmul.mubr.f32.gmra.mrb[0].mxu0 %v2944
  %v3321 = vpop.f32.mrb[0].mxu0
  %v3322 = vadd.f32 %v2762, %v3321
  %v3323 = vpop.f32.mrb[0].mxu0
  %3324 = vmatprep.mubr.f32.mxu0 0.0
  %3325 = vmatmul.mubr.f32.gmra.mrb[0].mxu0 %v2947
  %v3326 = vpop.f32.mrb[0].mxu0
  %v3327 = vadd.f32 %v2762, %v3326
  %v3328 = vpop.f32.mrb[0].mxu0
  %3329 = vmatprep.mubr.f32.mxu0 0.0
  %3330 = vmatmul.mubr.f32.gmra.mrb[0].mxu0 %v2950
  %v3331 = vpop.f32.mrb[0].mxu0
  %v3332 = vadd.f32 %v2762, %v3331
  %v3333 = vpop.f32.mrb[0].mxu0
  %3334 = vmatprep.mubr.f32.mxu0 0.0
  %3335 = vmatmul.mubr.f32.gmra.mrb[0].mxu0 %v2953
  %v3336 = vpop.f32.mrb[0].mxu0
  %v3337 = vadd.f32 %v2762, %v3336
  %v3338 = vpop.f32.mrb[0].mxu0
  %3339 = vdwg.mxu0
  %v3340 = vmax.f32 %v3022, 0.0
  %v3341 = vmax.f32 %v3027, 0.0
  %v3342 = vmax.f32 %v3032, 0.0
  %v3343 = vmax.f32 %v3037, 0.0
  %v3344 = vmax.f32 %v3042, 0.0
  %v3345 = vmax.f32 %v3047, 0.0
  %v3346 = vmax.f32 %v3052, 0.0
  %v3347 = vmax.f32 %v3057, 0.0
  %v3348 = vmax.f32 %v3062, 0.0
  %v3349 = vmax.f32 %v3067, 0.0
  %v3350 = vmax.f32 %v3072, 0.0
  %v3351 = vmax.f32 %v3077, 0.0
  %v3352 = vmax.f32 %v3082, 0.0
  %v3353 = vmax.f32 %v3087, 0.0
  %v3354 = vmax.f32 %v3092, 0.0
  %v3355 = vmax.f32 %v3097, 0.0
  %v3356 = vmax.f32 %v3102, 0.0
  %v3357 = vmax.f32 %v3107, 0.0
  %v3358 = vmax.f32 %v3112, 0.0
  %v3359 = vmax.f32 %v3117, 0.0
  %v3360 = vmax.f32 %v3122, 0.0
  %v3361 = vmax.f32 %v3127, 0.0
  %v3362 = vmax.f32 %v3132, 0.0
  %v3363 = vmax.f32 %v3137, 0.0
  %v3364 = vmax.f32 %v3142, 0.0
  %v3365 = vmax.f32 %v3147, 0.0
  %v3366 = vmax.f32 %v3152, 0.0
  %v3367 = vmax.f32 %v3157, 0.0
  %v3368 = vmax.f32 %v3162, 0.0
  %v3369 = vmax.f32 %v3167, 0.0
  %v3370 = vmax.f32 %v3172, 0.0
  %v3371 = vmax.f32 %v3177, 0.0
  %v3372 = vmax.f32 %v3182, 0.0
  %v3373 = vmax.f32 %v3187, 0.0
  %v3374 = vmax.f32 %v3192, 0.0
  %v3375 = vmax.f32 %v3197, 0.0
  %v3376 = vmax.f32 %v3202, 0.0
  %v3377 = vmax.f32 %v3207, 0.0
  %v3378 = vmax.f32 %v3212, 0.0
  %v3379 = vmax.f32 %v3217, 0.0
  %v3380 = vmax.f32 %v3222, 0.0
  %v3381 = vmax.f32 %v3227, 0.0
  %v3382 = vmax.f32 %v3232, 0.0
  %v3383 = vmax.f32 %v3237, 0.0
  %v3384 = vmax.f32 %v3242, 0.0
  %v3385 = vmax.f32 %v3247, 0.0
  %v3386 = vmax.f32 %v3252, 0.0
  %v3387 = vmax.f32 %v3257, 0.0
  %v3388 = vmax.f32 %v3262, 0.0
  %v3389 = vmax.f32 %v3267, 0.0
  %v3390 = vmax.f32 %v3272, 0.0
  %v3391 = vmax.f32 %v3277, 0.0
  %v3392 = vmax.f32 %v3282, 0.0
  %v3393 = vmax.f32 %v3287, 0.0
  %v3394 = vmax.f32 %v3292, 0.0
  %v3395 = vmax.f32 %v3297, 0.0
  %v3396 = vmax.f32 %v3302, 0.0
  %v3397 = vmax.f32 %v3307, 0.0
  %v3398 = vmax.f32 %v3312, 0.0
  %v3399 = vmax.f32 %v3317, 0.0
  %v3400 = vmax.f32 %v3322, 0.0
  %v3401 = vmax.f32 %v3327, 0.0
  %v3402 = vmax.f32 %v3332, 0.0
  %v3403 = vmax.f32 %v3337, 0.0
  %3404 = vst.msk [vmem:[%s4] sm:$0xff] %vm745, %v3340
  %3405 = vst.msk [vmem:[%s4 + $0x8] sm:$0xff] %vm745, %v3341
  %3406 = vst.msk [vmem:[%s4 + $0x10] sm:$0xff] %vm745, %v3342
  %3407 = vst.msk [vmem:[%s4 + $0x18] sm:$0xff] %vm745, %v3343
  %3408 = vst.msk [vmem:[%s4 + $0x20] sm:$0xff] %vm745, %v3344
  %3409 = vst.msk [vmem:[%s4 + $0x28] sm:$0xff] %vm745, %v3345
  %3410 = vst.msk [vmem:[%s4 + $0x30] sm:$0xff] %vm745, %v3346
  %3411 = vst.msk [vmem:[%s4 + $0x38] sm:$0xff] %vm745, %v3347
  %3412 = vst.msk [vmem:[%s4 + $0x40] sm:$0xff] %vm745, %v3348
  %3413 = vst.msk [vmem:[%s4 + $0x48] sm:$0xff] %vm745, %v3349
  %3414 = vst.msk [vmem:[%s4 + $0x50] sm:$0xff] %vm745, %v3350
  %3415 = vst.msk [vmem:[%s4 + $0x58] sm:$0xff] %vm745, %v3351
  %3416 = vst.msk [vmem:[%s4 + $0x60] sm:$0xff] %vm745, %v3352
  %3417 = vst.msk [vmem:[%s4 + $0x68] sm:$0xff] %vm745, %v3353
  %3418 = vst.msk [vmem:[%s4 + $0x70] sm:$0xff] %vm745, %v3354
  %3419 = vst.msk [vmem:[%s4 + $0x78] sm:$0xff] %vm745, %v3355
  %3420 = vst.msk [vmem:[%s4 + $0x80] sm:$0xff] %vm745, %v3356
  %3421 = vst.msk [vmem:[%s4 + $0x88] sm:$0xff] %vm745, %v3357
  %3422 = vst.msk [vmem:[%s4 + $0x90] sm:$0xff] %vm745, %v3358
  %3423 = vst.msk [vmem:[%s4 + $0x98] sm:$0xff] %vm745, %v3359
  %3424 = vst.msk [vmem:[%s4 + $0xa0] sm:$0xff] %vm745, %v3360
  %3425 = vst.msk [vmem:[%s4 + $0xa8] sm:$0xff] %vm745, %v3361
  %3426 = vst.msk [vmem:[%s4 + $0xb0] sm:$0xff] %vm745, %v3362
  %3427 = vst.msk [vmem:[%s4 + $0xb8] sm:$0xff] %vm745, %v3363
  %3428 = vst.msk [vmem:[%s4 + $0xc0] sm:$0xff] %vm745, %v3364
  %3429 = vst.msk [vmem:[%s4 + $0xc8] sm:$0xff] %vm745, %v3365
  %3430 = vst.msk [vmem:[%s4 + $0xd0] sm:$0xff] %vm745, %v3366
  %3431 = vst.msk [vmem:[%s4 + $0xd8] sm:$0xff] %vm745, %v3367
  %3432 = vst.msk [vmem:[%s4 + $0xe0] sm:$0xff] %vm745, %v3368
  %3433 = vst.msk [vmem:[%s4 + $0xe8] sm:$0xff] %vm745, %v3369
  %3434 = vst.msk [vmem:[%s4 + $0xf0] sm:$0xff] %vm745, %v3370
  %3435 = vst.msk [vmem:[%s4 + $0xf8] sm:$0xff] %vm745, %v3371
  %3436 = vst.msk [vmem:[%s4 + $0x100] sm:$0xff] %vm745, %v3372
  %3437 = vst.msk [vmem:[%s4 + $0x108] sm:$0xff] %vm745, %v3373
  %3438 = vst.msk [vmem:[%s4 + $0x110] sm:$0xff] %vm745, %v3374
  %3439 = vst.msk [vmem:[%s4 + $0x118] sm:$0xff] %vm745, %v3375
  %3440 = vst.msk [vmem:[%s4 + $0x120] sm:$0xff] %vm745, %v3376
  %3441 = vst.msk [vmem:[%s4 + $0x128] sm:$0xff] %vm745, %v3377
  %3442 = vst.msk [vmem:[%s4 + $0x130] sm:$0xff] %vm745, %v3378
  %3443 = vst.msk [vmem:[%s4 + $0x138] sm:$0xff] %vm745, %v3379
  %3444 = vst.msk [vmem:[%s4 + $0x140] sm:$0xff] %vm745, %v3380
  %3445 = vst.msk [vmem:[%s4 + $0x148] sm:$0xff] %vm745, %v3381
  %3446 = vst.msk [vmem:[%s4 + $0x150] sm:$0xff] %vm745, %v3382
  %3447 = vst.msk [vmem:[%s4 + $0x158] sm:$0xff] %vm745, %v3383
  %3448 = vst.msk [vmem:[%s4 + $0x160] sm:$0xff] %vm745, %v3384
  %3449 = vst.msk [vmem:[%s4 + $0x168] sm:$0xff] %vm745, %v3385
  %3450 = vst.msk [vmem:[%s4 + $0x170] sm:$0xff] %vm745, %v3386
  %3451 = vst.msk [vmem:[%s4 + $0x178] sm:$0xff] %vm745, %v3387
  %3452 = vst.msk [vmem:[%s4 + $0x180] sm:$0xff] %vm745, %v3388
  %3453 = vst.msk [vmem:[%s4 + $0x188] sm:$0xff] %vm745, %v3389
  %3454 = vst.msk [vmem:[%s4 + $0x190] sm:$0xff] %vm745, %v3390
  %3455 = vst.msk [vmem:[%s4 + $0x198] sm:$0xff] %vm745, %v3391
  %3456 = vst.msk [vmem:[%s4 + $0x1a0] sm:$0xff] %vm745, %v3392
  %3457 = vst.msk [vmem:[%s4 + $0x1a8] sm:$0xff] %vm745, %v3393
  %3458 = vst.msk [vmem:[%s4 + $0x1b0] sm:$0xff] %vm745, %v3394
  %3459 = vst.msk [vmem:[%s4 + $0x1b8] sm:$0xff] %vm745, %v3395
  %3460 = vst.msk [vmem:[%s4 + $0x1c0] sm:$0xff] %vm745, %v3396
  %3461 = vst.msk [vmem:[%s4 + $0x1c8] sm:$0xff] %vm745, %v3397
  %3462 = vst.msk [vmem:[%s4 + $0x1d0] sm:$0xff] %vm745, %v3398
  %3463 = vst.msk [vmem:[%s4 + $0x1d8] sm:$0xff] %vm745, %v3399
  %3464 = vst.msk [vmem:[%s4 + $0x1e0] sm:$0xff] %vm745, %v3400
  %3465 = vst.msk [vmem:[%s4 + $0x1e8] sm:$0xff] %vm745, %v3401
  %3466 = vst.msk [vmem:[%s4 + $0x1f0] sm:$0xff] %vm745, %v3402
  %3467 = vst.msk [vmem:[%s4 + $0x1f8] sm:$0xff] %vm745, %v3403
  // Predicated region
  $region18: #{tpu_custom_call.1} parent=0 // pred_check
    _
  $region19: #{tpu_custom_call.1} parent=0 // pred_check_branch
    %3469 = sbr.rel (0) target = $region21
  $region20: #{tpu_custom_call.1} parent=0 // pred_region
    _
  $region21: #{tpu_custom_call.1} parent=0 // pred_fallthru
    _
  // Predicated region
  $region22: #{tpu_custom_call.1} parent=0 // pred_check
    _
  $region23: #{tpu_custom_call.1} parent=0 // pred_check_branch
    %3471 = sbr.rel (0) target = $region25
  $region24: #{tpu_custom_call.1} parent=0 // pred_region
    _
  $region25: #{tpu_custom_call.1} parent=0 // pred_fallthru
    _

</llo_original>
